<compile_context>
chip_gen: v5e
topology: v5e:2x2
jax: 0.10.0
libtpu: 0.0.40
codegen_flags: <defaults>
</compile_context>

<pallas_src>
import math
import functools

import jax
import jax.numpy as jnp
from jax import lax
from jax.experimental import pallas as pl
from jax.experimental.pallas import tpu as pltpu

NUM_GROUPS = 16      # GroupNorm(16, in_channels) as in the module
GN_EPS = 1e-5        # torch GroupNorm default eps


# ----------------------------------------------------------------------------
# Pallas kernel: one batch element of one pyramid level per grid step.
# num_convs x (3x3 conv -> GroupNorm(16) -> ReLU) followed by the final 3x3
# cls_logits conv, entirely in VMEM.
# ----------------------------------------------------------------------------
def _head_kernel(x_ref, convw_ref, convb_ref, gnw_ref, gnb_ref,
                 clsw_ref, clsb_ref, mcg_ref, mgc_ref,
                 out_ref, act_ref, *, H, W, num_convs, num_groups, eps):
    C = x_ref.shape[-1]
    HW = H * W
    cg = C // num_groups
    inv_count = 1.0 / float(HW * cg)

    # Column masks for the +/-1 W taps (w index of every flattened output row).
    w_idx = lax.broadcasted_iota(jnp.int32, (HW, 1), 0) % W
    lmask = w_idx != 0            # output row may take a contribution from column w-1
    rmask = w_idx != (W - 1)      # output row may take a contribution from column w+1

    # Zero only the two halo row-strips (top/bottom padded rows); the interior
    # is fully overwritten right below.  Re-done every grid step so the kernel
    # stays correct under "parallel" megacore sharding (per-core scratch).
    act_ref[0:W, :] = jnp.zeros((W, C), jnp.bfloat16)
    act_ref[W + HW:2 * W + HW, :] = jnp.zeros((W, C), jnp.bfloat16)
    act_ref[W:W + HW, :] = x_ref[...]                      # already bf16

    def conv3x3(get_w, out_width):
        """3x3 'same' conv of the current activation buffer.

        All 9 taps are pure leading-dim (row) slices of the H-padded buffer;
        the dx = 0 / 2 column shifts are applied to the f32 per-dx partial
        sums via an XLU rotate + column mask (no sublane-misaligned copies).
        """
        y = jnp.zeros((HW, out_width), jnp.float32)
        for dx in range(3):
            part = jnp.zeros((HW, out_width), jnp.float32)
            for dy in range(3):
                part = part + jnp.dot(
                    act_ref[dy * W:dy * W + HW, :], get_w(dy * 3 + dx),
                    preferred_element_type=jnp.float32)
            if dx == 0:       # contribution of input column w-1
                part = jnp.where(lmask, pltpu.roll(part, 1, axis=0), 0.0)
            elif dx == 2:     # contribution of input column w+1
                part = jnp.where(rmask, pltpu.roll(part, HW - 1, axis=0), 0.0)
            y = y + part
        return y

    mcg = mcg_ref[...]        # (C, G) group-membership matrix
    mgc = mgc_ref[...]        # (G, C) = mcg.T

    def layer_body(l, carry):
        # --- Conv2d(C, C, 3, padding=1)
        y = conv3x3(lambda t: convw_ref[l * 9 + t], C) + convb_ref[l]   # (HW, C) f32

        # --- GroupNorm(16, C): one-pass stats, fused C->G / G->C matmuls,
        #     affine folded into a single y*scale + shift.
        stats_c = jnp.concatenate(
            [jnp.sum(y, axis=0, keepdims=True),
             jnp.sum(y * y, axis=0, keepdims=True)], axis=0)             # (2, C)
        stats_g = jnp.dot(stats_c, mcg,
                          preferred_element_type=jnp.float32) * inv_count  # (2, G)
        g_mean = stats_g[0:1, :]
        g_rstd = lax.rsqrt(stats_g[1:2, :] - g_mean * g_mean + eps)        # (1, G)
        back = jnp.dot(jnp.concatenate([g_mean, g_rstd], axis=0), mgc,
                       preferred_element_type=jnp.float32)                 # (2, C)
        scale_c = back[1:2, :] * gnw_ref[l]
        shift_c = gnb_ref[l] - back[0:1, :] * scale_c

        # --- normalize + affine + ReLU, write back into the padded buffer
        act_ref[W:W + HW, :] = jnp.maximum(
            y * scale_c + shift_c, 0.0).astype(jnp.bfloat16)
        return carry

    lax.fori_loop(0, num_convs, layer_body, 0)

    # --- cls_logits: Conv2d(C, Kp, 3, padding=1), lane-dense Kp (128-padded)
    out_ref[...] = (conv3x3(lambda t: clsw_ref[t], out_ref.shape[-1])
                    + clsb_ref[...]).astype(out_ref.dtype)


# ----------------------------------------------------------------------------
# Wrappers
# ----------------------------------------------------------------------------
def _const_spec(arr):
    """Full-array BlockSpec for grid-invariant constants (no double-buffering)."""
    nd = arr.ndim
    idx = lambda n: (0,) * nd
    try:
        return pl.BlockSpec(arr.shape, idx, pipeline_mode=pl.Buffered(1))
    except TypeError:                         # older BlockSpec without pipeline_mode
        return pl.BlockSpec(arr.shape, idx)


def prepare_kernel_params(params, num_classes):
    """Reshape / pad / cast module params into the kernel-friendly form."""
    convw, convb, gnw, gnb, clsw, clsb = params
    num_convs = convw.shape[0]
    C = convw.shape[3]
    Kp = ((num_classes + 127) // 128) * 128          # lane-dense output width

    kconvw = convw.reshape(num_convs * 9, C, C).astype(jnp.bfloat16)   # [l*9 + dy*3 + dx]
    kclsw = jnp.pad(clsw.reshape(9, C, num_classes),
                    ((0, 0), (0, 0), (0, Kp - num_classes))).astype(jnp.bfloat16)
    kclsb = jnp.pad(clsb, ((0, 0), (0, Kp - num_classes))).astype(jnp.float32)

    cg = C // NUM_GROUPS
    mcg = (jnp.arange(C, dtype=jnp.int32)[:, None] // cg
           == jnp.arange(NUM_GROUPS, dtype=jnp.int32)[None, :]).astype(jnp.float32)

    return dict(convw=kconvw, convb=convb.astype(jnp.float32),
                gnw=gnw.astype(jnp.float32), gnb=gnb.astype(jnp.float32),
                clsw=kclsw, clsb=kclsb, mcg=mcg, mgc=mcg.T,
                num_convs=num_convs, Kp=Kp)


def _head_level(x_flat, H, W, kp):
    """x_flat: (N, H*W, C) bf16 (NHWC, spatially flattened)."""
    N, HW, C = x_flat.shape
    Kp = kp["Kp"]
    num_convs = kp["num_convs"]

    weights = (kp["convw"], kp["convb"], kp["gnw"], kp["gnb"],
               kp["clsw"], kp["clsb"], kp["mcg"], kp["mgc"])

    # VMEM budget: bf16 padded activations + two f32 accumulators + (double
    # buffered) in/out blocks + the resident weights, with 1.5x headroom.
    scratch_b = (HW + 2 * W) * C * 2
    acc_b = 2 * HW * max(C, Kp) * 4
    io_b = 2 * HW * C * 2 + 2 * HW * Kp * 4
    wts_b = sum(int(a.size) * a.dtype.itemsize for a in weights)
    vmem_limit = int(min(64 * 2 ** 20,
                         max(32 * 2 ** 20,
                             1.5 * (scratch_b + acc_b + io_b + wts_b) + (8 << 20))))

    kernel = functools.partial(_head_kernel, H=H, W=W, num_convs=num_convs,
                               num_groups=NUM_GROUPS, eps=GN_EPS)

    return pl.pallas_call(
        kernel,
        out_shape=jax.ShapeDtypeStruct((N, HW, Kp), jnp.float32),
        grid_spec=pltpu.PrefetchScalarGridSpec(
            num_scalar_prefetch=0,
            grid=(N,),
            in_specs=[pl.BlockSpec((None, HW, C), lambda n: (n, 0, 0))]
                     + [_const_spec(w) for w in weights],
            out_specs=pl.BlockSpec((None, HW, Kp), lambda n: (n, 0, 0)),
            scratch_shapes=[
                pltpu.VMEM((HW + 2 * W, C), jnp.bfloat16),   # H-padded activations
            ],
        ),
        compiler_params=pltpu.CompilerParams(
            dimension_semantics=("parallel",),
            vmem_limit_bytes=vmem_limit),
    )(x_flat, *weights)


def fcos_classification_head(feature_maps, params, num_classes,
                             data_format="NCHW", keep_lane_padding=False):
    """List of feature maps -> list of (N, H*W, num_classes) logits.

    Set keep_lane_padding=True to get the 128-lane-padded logits (extra class
    columns are zero) and skip the extra HBM slice pass when the downstream
    loss / inference can consume the padded layout directly.
    """
    # TODO(synk): production P3 shapes (C=256, ~100x152) on v7x (64 MiB VMEM)
    # need either spatial row-banding (which requires a two-pass GroupNorm,
    # since GN stats are global over H*W) or per-layer pallas_calls; the
    # current whole-level-per-grid-step plan fits v5e/v6e comfortably.
    kp = prepare_kernel_params(params, num_classes)
    outs = []
    for x in feature_maps:
        if data_format == "NCHW":
            N, C, H, W = x.shape
            x = jnp.transpose(x, (0, 2, 3, 1))
        else:
            N, H, W, C = x.shape
        # transpose + bf16 cast + spatial flatten fuse into one XLA input pass
        x = x.astype(jnp.bfloat16).reshape(N, H * W, C)
        out = _head_level(x, H, W, kp)
        outs.append(out if keep_lane_padding else out[:, :, :num_classes])
    return outs


# ----------------------------------------------------------------------------
# Deterministic parameter init (shapes follow FCOSClassificationHead.__init__)
# Weights are stored HWIO: (3, 3, Cin, Cout).
# ----------------------------------------------------------------------------
def init_params(key, in_channels, num_classes, num_convs=3, prior_probability=0.01):
    assert in_channels % NUM_GROUPS == 0
    k_cw, k_cb, k_cls = jax.random.split(key, 3)
    conv_std = 1.0 / math.sqrt(9 * in_channels)
    convw = jax.random.normal(
        k_cw, (num_convs, 3, 3, in_channels, in_channels), jnp.float32) * conv_std
    convb = jax.random.normal(k_cb, (num_convs, 1, in_channels), jnp.float32) * conv_std
    gnw = jnp.ones((num_convs, 1, in_channels), jnp.float32)      # GroupNorm default affine
    gnb = jnp.zeros((num_convs, 1, in_channels), jnp.float32)
    clsw = jax.random.normal(k_cls, (3, 3, in_channels, num_classes), jnp.float32) * 0.01
    clsb = jnp.full((1, num_classes),
                    -math.log((1 - prior_probability) / prior_probability), jnp.float32)
    return convw, convb, gnw, gnb, clsw, clsb


# ----------------------------------------------------------------------------
# Pure-JAX reference (for correctness check only)
# ----------------------------------------------------------------------------
def ref_head_level(x_nhwc, params, num_classes):
    convw, convb, gnw, gnb, clsw, clsb = params
    y = x_nhwc
    for l in range(convw.shape[0]):
        y = lax.conv_general_dilated(y, convw[l], (1, 1), "SAME",
                                     dimension_numbers=("NHWC", "HWIO", "NHWC"))
        y = y + convb[l].reshape(1, 1, 1, -1)
        N, H, W, C = y.shape
        g = y.reshape(N, H, W, NUM_GROUPS, C // NUM_GROUPS)
        mean = g.mean(axis=(1, 2, 4), keepdims=True)
        var = ((g - mean) ** 2).mean(axis=(1, 2, 4), keepdims=True)
        g = (g - mean) * lax.rsqrt(var + GN_EPS)
        y = g.reshape(N, H, W, C) * gnw[l].reshape(1, 1, 1, C) + gnb[l].reshape(1, 1, 1, C)
        y = jnp.maximum(y, 0.0)
    logit = lax.conv_general_dilated(y, clsw, (1, 1), "SAME",
                                     dimension_numbers=("NHWC", "HWIO", "NHWC"))
    logit = logit + clsb.reshape(1, 1, 1, -1)
    N, H, W, K = logit.shape
    return logit.reshape(N, H * W, K)


if __name__ == "__main__":
    in_channels = 32          # must be divisible by 16 (GroupNorm groups)
    num_classes = 8
    num_convs = 3

    key = jax.random.PRNGKey(0)
    kp_key, k0, k1 = jax.random.split(key, 3)
    params = init_params(kp_key, in_channels, num_classes, num_convs)

    # two pyramid levels, NCHW like the PyTorch module expects
    feats_nchw = [
        jax.random.normal(k0, (2, in_channels, 16, 16), jnp.float32),
        jax.random.normal(k1, (2, in_channels, 8, 8), jnp.float32),
    ]

    outs = fcos_classification_head(feats_nchw, params, num_classes)
    outs = jax.block_until_ready(outs)

    # bf16 matmul operands in the kernel (vs f32 reference) -> use a
    # bf16-appropriate tolerance for the smoke test.
    ok = True
    for x_nchw, out in zip(feats_nchw, outs):
        N, C, H, W = x_nchw.shape
        assert out.shape == (N, H * W, num_classes)
        ref = ref_head_level(jnp.transpose(x_nchw, (0, 2, 3, 1)), params, num_classes)
        ok = ok and bool(jnp.allclose(out, ref, atol=2e-2, rtol=2e-2))

    if ok:
        print("KERNEL_OK")
    else:
        raise SystemExit("kernel output does not match JAX reference")
</pallas_src>

<mosaic_0001>
module attributes {stable_mosaic.version = 11 : i64} {
  func.func @_head_kernel(%arg0: i32, %arg1: memref<1x256x32xbf16, #tpu.memory_space<vmem>>, %arg2: memref<27x32x32xbf16, #tpu.memory_space<vmem>>, %arg3: memref<3x1x32xf32, #tpu.memory_space<vmem>>, %arg4: memref<3x1x32xf32, #tpu.memory_space<vmem>>, %arg5: memref<3x1x32xf32, #tpu.memory_space<vmem>>, %arg6: memref<9x32x128xbf16, #tpu.memory_space<vmem>>, %arg7: memref<1x128xf32, #tpu.memory_space<vmem>>, %arg8: memref<32x16xf32, #tpu.memory_space<vmem>>, %arg9: memref<16x32xf32, #tpu.memory_space<vmem>>, %arg10: memref<1x256x128xf32, #tpu.memory_space<vmem>>, %arg11: memref<288x32xbf16, #tpu.memory_space<vmem>>) attributes {dimension_semantics = [#tpu.dimension_semantics<parallel>], iteration_bounds = array<i64: 2>, scalar_prefetch = 0 : i64, scratch_operands = 1 : i64, tpu.core_type = #tpu.core_type<tc>, window_params = [{transform_indices = @transform_0, window_bounds = array<i64: 1, 256, 32>}, {pipeline_mode = #tpu.pipeline_mode<synchronous>, transform_indices = @transform_1, window_bounds = array<i64: 27, 32, 32>}, {pipeline_mode = #tpu.pipeline_mode<synchronous>, transform_indices = @transform_2, window_bounds = array<i64: 3, 1, 32>}, {pipeline_mode = #tpu.pipeline_mode<synchronous>, transform_indices = @transform_3, window_bounds = array<i64: 3, 1, 32>}, {pipeline_mode = #tpu.pipeline_mode<synchronous>, transform_indices = @transform_4, window_bounds = array<i64: 3, 1, 32>}, {pipeline_mode = #tpu.pipeline_mode<synchronous>, transform_indices = @transform_5, window_bounds = array<i64: 9, 32, 128>}, {pipeline_mode = #tpu.pipeline_mode<synchronous>, transform_indices = @transform_6, window_bounds = array<i64: 1, 128>}, {pipeline_mode = #tpu.pipeline_mode<synchronous>, transform_indices = @transform_7, window_bounds = array<i64: 32, 16>}, {pipeline_mode = #tpu.pipeline_mode<synchronous>, transform_indices = @transform_8, window_bounds = array<i64: 16, 32>}, {transform_indices = @transform_9, window_bounds = array<i64: 1, 256, 128>}]} {
    %0 = tpu.iota {dimensions = array<i32: 0>} : vector<256x1xi32>
    %c16_i32 = arith.constant 16 : i32
    %c0_i32 = arith.constant 0 : i32
    %1 = arith.cmpi eq, %c16_i32, %c0_i32 : i32
    %c1_i32 = arith.constant 1 : i32
    %2 = arith.select %1, %c1_i32, %c16_i32 : i32
    %3 = vector.broadcast %2 : i32 to vector<256x1xi32>
    %4 = arith.remsi %0, %3 : vector<256x1xi32>
    %c0_i32_0 = arith.constant 0 : i32
    %5 = vector.broadcast %c0_i32_0 : i32 to vector<256x1xi32>
    %6 = arith.cmpi ne, %4, %5 : vector<256x1xi32>
    %c0_i32_1 = arith.constant 0 : i32
    %7 = vector.broadcast %c0_i32_1 : i32 to vector<256x1xi32>
    %8 = arith.cmpi slt, %4, %7 : vector<256x1xi32>
    %c0_i32_2 = arith.constant 0 : i32
    %9 = arith.cmpi slt, %2, %c0_i32_2 : i32
    %10 = vector.broadcast %9 : i1 to vector<256x1xi1>
    %11 = vector.broadcast %10 : vector<256x1xi1> to vector<256x1xi1>
    %12 = arith.xori %8, %11 : vector<256x1xi1>
    %13 = arith.andi %12, %6 : vector<256x1xi1>
    %14 = vector.broadcast %2 : i32 to vector<256x1xi32>
    %15 = arith.addi %4, %14 : vector<256x1xi32>
    %16 = arith.select %13, %15, %4 : vector<256x1xi1>, vector<256x1xi32>
    %c0_i32_3 = arith.constant 0 : i32
    %17 = vector.broadcast %c0_i32_3 : i32 to vector<256x1xi32>
    %18 = arith.cmpi ne, %16, %17 : vector<256x1xi32>
    %c15_i32 = arith.constant 15 : i32
    %19 = vector.broadcast %c15_i32 : i32 to vector<256x1xi32>
    %20 = arith.cmpi ne, %16, %19 : vector<256x1xi32>
    %cst = arith.constant 0.000000e+00 : bf16
    %21 = vector.broadcast %cst : bf16 to vector<16x32xbf16>
    %c0 = arith.constant 0 : index
    %c0_4 = arith.constant 0 : index
    %22 = vector.load %arg11[%c0, %c0_4] : memref<288x32xbf16, #tpu.memory_space<vmem>>, vector<16x32xbf16>
    tpu.vector_store %arg11[%c0, %c0_4], %21 {strides = array<i32>} : memref<288x32xbf16, #tpu.memory_space<vmem>>, vector<16x32xbf16>,
    %cst_5 = arith.constant 0.000000e+00 : bf16
    %23 = vector.broadcast %cst_5 : bf16 to vector<16x32xbf16>
    %c272 = arith.constant 272 : index
    %c0_6 = arith.constant 0 : index
    %24 = vector.load %arg11[%c272, %c0_6] : memref<288x32xbf16, #tpu.memory_space<vmem>>, vector<16x32xbf16>
    tpu.vector_store %arg11[%c272, %c0_6], %23 {strides = array<i32>} : memref<288x32xbf16, #tpu.memory_space<vmem>>, vector<16x32xbf16>,
    %c0_7 = arith.constant 0 : index
    %c0_8 = arith.constant 0 : index
    %c0_9 = arith.constant 0 : index
    %25 = vector.load %arg1[%c0_7, %c0_8, %c0_9] : memref<1x256x32xbf16, #tpu.memory_space<vmem>>, vector<1x256x32xbf16>
    %26 = vector.shape_cast %25 : vector<1x256x32xbf16> to vector<256x32xbf16>
    %c16 = arith.constant 16 : index
    %c0_10 = arith.constant 0 : index
    %27 = vector.load %arg11[%c16, %c0_10] : memref<288x32xbf16, #tpu.memory_space<vmem>>, vector<256x32xbf16>
    tpu.vector_store %arg11[%c16, %c0_10], %26 {strides = array<i32>} : memref<288x32xbf16, #tpu.memory_space<vmem>>, vector<256x32xbf16>,
    %c0_11 = arith.constant 0 : index
    %c0_12 = arith.constant 0 : index
    %28 = vector.load %arg8[%c0_11, %c0_12] : memref<32x16xf32, #tpu.memory_space<vmem>>, vector<32x16xf32>
    %c0_13 = arith.constant 0 : index
    %c0_14 = arith.constant 0 : index
    %29 = vector.load %arg9[%c0_13, %c0_14] : memref<16x32xf32, #tpu.memory_space<vmem>>, vector<16x32xf32>
    %c0_i32_15 = arith.constant 0 : i32
    %c3_i32 = arith.constant 3 : i32
    %30 = arith.addi %c0_i32_15, %c3_i32 : i32
    %c1_i32_16 = arith.constant 1 : i32
    scf.for %arg12 = %c0_i32_15 to %30 step %c1_i32_16  : i32 {
      %cst_75 = arith.constant 0.000000e+00 : f32
      %99 = vector.broadcast %cst_75 : f32 to vector<256x32xf32>
      %cst_76 = arith.constant 0.000000e+00 : f32
      %100 = vector.broadcast %cst_76 : f32 to vector<256x32xf32>
      %c0_77 = arith.constant 0 : index
      %c0_78 = arith.constant 0 : index
      %101 = vector.load %arg11[%c0_77, %c0_78] : memref<288x32xbf16, #tpu.memory_space<vmem>>, vector<256x32xbf16>
      %c9_i32 = arith.constant 9 : i32
      %102 = arith.muli %arg12, %c9_i32 : i32
      %c0_i32_79 = arith.constant 0 : i32
      %103 = arith.addi %102, %c0_i32_79 : i32
      %104 = arith.index_cast %103 : i32 to index
      %c0_80 = arith.constant 0 : index
      %c0_81 = arith.constant 0 : index
      %105 = vector.load %arg2[%104, %c0_80, %c0_81] : memref<27x32x32xbf16, #tpu.memory_space<vmem>>, vector<1x32x32xbf16>
      %106 = vector.shape_cast %105 : vector<1x32x32xbf16> to vector<32x32xbf16>
      %cst_82 = arith.constant dense<0.000000e+00> : vector<256x32xf32>
      %107 = tpu.matmul %101, %106, %cst_82 {dimension_numbers = #tpu.dot_dimension_numbers<[1], [0], [0], [1], [0, 0, 1, 1], [], []>} : vector<256x32xbf16>, vector<32x32xbf16>, vector<256x32xf32> -> vector<256x32xf32>
      %108 = arith.addf %100, %107 : vector<256x32xf32>
      %c16_83 = arith.constant 16 : index
      %c0_84 = arith.constant 0 : index
      %109 = vector.load %arg11[%c16_83, %c0_84] : memref<288x32xbf16, #tpu.memory_space<vmem>>, vector<256x32xbf16>
      %c9_i32_85 = arith.constant 9 : i32
      %110 = arith.muli %arg12, %c9_i32_85 : i32
      %c3_i32_86 = arith.constant 3 : i32
      %111 = arith.addi %110, %c3_i32_86 : i32
      %112 = arith.index_cast %111 : i32 to index
      %c0_87 = arith.constant 0 : index
      %c0_88 = arith.constant 0 : index
      %113 = vector.load %arg2[%112, %c0_87, %c0_88] : memref<27x32x32xbf16, #tpu.memory_space<vmem>>, vector<1x32x32xbf16>
      %114 = vector.shape_cast %113 : vector<1x32x32xbf16> to vector<32x32xbf16>
      %cst_89 = arith.constant dense<0.000000e+00> : vector<256x32xf32>
      %115 = tpu.matmul %109, %114, %cst_89 {dimension_numbers = #tpu.dot_dimension_numbers<[1], [0], [0], [1], [0, 0, 1, 1], [], []>} : vector<256x32xbf16>, vector<32x32xbf16>, vector<256x32xf32> -> vector<256x32xf32>
      %116 = arith.addf %108, %115 : vector<256x32xf32>
      %c32_90 = arith.constant 32 : index
      %c0_91 = arith.constant 0 : index
      %117 = vector.load %arg11[%c32_90, %c0_91] : memref<288x32xbf16, #tpu.memory_space<vmem>>, vector<256x32xbf16>
      %c9_i32_92 = arith.constant 9 : i32
      %118 = arith.muli %arg12, %c9_i32_92 : i32
      %c6_i32 = arith.constant 6 : i32
      %119 = arith.addi %118, %c6_i32 : i32
      %120 = arith.index_cast %119 : i32 to index
      %c0_93 = arith.constant 0 : index
      %c0_94 = arith.constant 0 : index
      %121 = vector.load %arg2[%120, %c0_93, %c0_94] : memref<27x32x32xbf16, #tpu.memory_space<vmem>>, vector<1x32x32xbf16>
      %122 = vector.shape_cast %121 : vector<1x32x32xbf16> to vector<32x32xbf16>
      %cst_95 = arith.constant dense<0.000000e+00> : vector<256x32xf32>
      %123 = tpu.matmul %117, %122, %cst_95 {dimension_numbers = #tpu.dot_dimension_numbers<[1], [0], [0], [1], [0, 0, 1, 1], [], []>} : vector<256x32xbf16>, vector<32x32xbf16>, vector<256x32xf32> -> vector<256x32xf32>
      %124 = arith.addf %116, %123 : vector<256x32xf32>
      %c1_i32_96 = arith.constant 1 : i32
      %125 = tpu.dynamic_rotate %124 by %c1_i32_96 dim 0 : vector<256x32xf32>, i32 -> vector<256x32xf32>
      %cst_97 = arith.constant 0.000000e+00 : f32
      %126 = vector.shape_cast %18 : vector<256x1xi1> to vector<256x1xi1>
      %127 = vector.broadcast %126 : vector<256x1xi1> to vector<256x32xi1>
      %128 = vector.broadcast %cst_97 : f32 to vector<256x32xf32>
      %129 = arith.select %127, %125, %128 : vector<256x32xi1>, vector<256x32xf32>
      %130 = arith.addf %99, %129 : vector<256x32xf32>
      %cst_98 = arith.constant 0.000000e+00 : f32
      %131 = vector.broadcast %cst_98 : f32 to vector<256x32xf32>
      %c0_99 = arith.constant 0 : index
      %c0_100 = arith.constant 0 : index
      %132 = vector.load %arg11[%c0_99, %c0_100] : memref<288x32xbf16, #tpu.memory_space<vmem>>, vector<256x32xbf16>
      %c9_i32_101 = arith.constant 9 : i32
      %133 = arith.muli %arg12, %c9_i32_101 : i32
      %c1_i32_102 = arith.constant 1 : i32
      %134 = arith.addi %133, %c1_i32_102 : i32
      %135 = arith.index_cast %134 : i32 to index
      %c0_103 = arith.constant 0 : index
      %c0_104 = arith.constant 0 : index
      %136 = vector.load %arg2[%135, %c0_103, %c0_104] : memref<27x32x32xbf16, #tpu.memory_space<vmem>>, vector<1x32x32xbf16>
      %137 = vector.shape_cast %136 : vector<1x32x32xbf16> to vector<32x32xbf16>
      %cst_105 = arith.constant dense<0.000000e+00> : vector<256x32xf32>
      %138 = tpu.matmul %132, %137, %cst_105 {dimension_numbers = #tpu.dot_dimension_numbers<[1], [0], [0], [1], [0, 0, 1, 1], [], []>} : vector<256x32xbf16>, vector<32x32xbf16>, vector<256x32xf32> -> vector<256x32xf32>
      %139 = arith.addf %131, %138 : vector<256x32xf32>
      %c16_106 = arith.constant 16 : index
      %c0_107 = arith.constant 0 : index
      %140 = vector.load %arg11[%c16_106, %c0_107] : memref<288x32xbf16, #tpu.memory_space<vmem>>, vector<256x32xbf16>
      %c9_i32_108 = arith.constant 9 : i32
      %141 = arith.muli %arg12, %c9_i32_108 : i32
      %c4_i32 = arith.constant 4 : i32
      %142 = arith.addi %141, %c4_i32 : i32
      %143 = arith.index_cast %142 : i32 to index
      %c0_109 = arith.constant 0 : index
      %c0_110 = arith.constant 0 : index
      %144 = vector.load %arg2[%143, %c0_109, %c0_110] : memref<27x32x32xbf16, #tpu.memory_space<vmem>>, vector<1x32x32xbf16>
      %145 = vector.shape_cast %144 : vector<1x32x32xbf16> to vector<32x32xbf16>
      %cst_111 = arith.constant dense<0.000000e+00> : vector<256x32xf32>
      %146 = tpu.matmul %140, %145, %cst_111 {dimension_numbers = #tpu.dot_dimension_numbers<[1], [0], [0], [1], [0, 0, 1, 1], [], []>} : vector<256x32xbf16>, vector<32x32xbf16>, vector<256x32xf32> -> vector<256x32xf32>
      %147 = arith.addf %139, %146 : vector<256x32xf32>
      %c32_112 = arith.constant 32 : index
      %c0_113 = arith.constant 0 : index
      %148 = vector.load %arg11[%c32_112, %c0_113] : memref<288x32xbf16, #tpu.memory_space<vmem>>, vector<256x32xbf16>
      %c9_i32_114 = arith.constant 9 : i32
      %149 = arith.muli %arg12, %c9_i32_114 : i32
      %c7_i32 = arith.constant 7 : i32
      %150 = arith.addi %149, %c7_i32 : i32
      %151 = arith.index_cast %150 : i32 to index
      %c0_115 = arith.constant 0 : index
      %c0_116 = arith.constant 0 : index
      %152 = vector.load %arg2[%151, %c0_115, %c0_116] : memref<27x32x32xbf16, #tpu.memory_space<vmem>>, vector<1x32x32xbf16>
      %153 = vector.shape_cast %152 : vector<1x32x32xbf16> to vector<32x32xbf16>
      %cst_117 = arith.constant dense<0.000000e+00> : vector<256x32xf32>
      %154 = tpu.matmul %148, %153, %cst_117 {dimension_numbers = #tpu.dot_dimension_numbers<[1], [0], [0], [1], [0, 0, 1, 1], [], []>} : vector<256x32xbf16>, vector<32x32xbf16>, vector<256x32xf32> -> vector<256x32xf32>
      %155 = arith.addf %147, %154 : vector<256x32xf32>
      %156 = arith.addf %130, %155 : vector<256x32xf32>
      %cst_118 = arith.constant 0.000000e+00 : f32
      %157 = vector.broadcast %cst_118 : f32 to vector<256x32xf32>
      %c0_119 = arith.constant 0 : index
      %c0_120 = arith.constant 0 : index
      %158 = vector.load %arg11[%c0_119, %c0_120] : memref<288x32xbf16, #tpu.memory_space<vmem>>, vector<256x32xbf16>
      %c9_i32_121 = arith.constant 9 : i32
      %159 = arith.muli %arg12, %c9_i32_121 : i32
      %c2_i32 = arith.constant 2 : i32
      %160 = arith.addi %159, %c2_i32 : i32
      %161 = arith.index_cast %160 : i32 to index
      %c0_122 = arith.constant 0 : index
      %c0_123 = arith.constant 0 : index
      %162 = vector.load %arg2[%161, %c0_122, %c0_123] : memref<27x32x32xbf16, #tpu.memory_space<vmem>>, vector<1x32x32xbf16>
      %163 = vector.shape_cast %162 : vector<1x32x32xbf16> to vector<32x32xbf16>
      %cst_124 = arith.constant dense<0.000000e+00> : vector<256x32xf32>
      %164 = tpu.matmul %158, %163, %cst_124 {dimension_numbers = #tpu.dot_dimension_numbers<[1], [0], [0], [1], [0, 0, 1, 1], [], []>} : vector<256x32xbf16>, vector<32x32xbf16>, vector<256x32xf32> -> vector<256x32xf32>
      %165 = arith.addf %157, %164 : vector<256x32xf32>
      %c16_125 = arith.constant 16 : index
      %c0_126 = arith.constant 0 : index
      %166 = vector.load %arg11[%c16_125, %c0_126] : memref<288x32xbf16, #tpu.memory_space<vmem>>, vector<256x32xbf16>
      %c9_i32_127 = arith.constant 9 : i32
      %167 = arith.muli %arg12, %c9_i32_127 : i32
      %c5_i32 = arith.constant 5 : i32
      %168 = arith.addi %167, %c5_i32 : i32
      %169 = arith.index_cast %168 : i32 to index
      %c0_128 = arith.constant 0 : index
      %c0_129 = arith.constant 0 : index
      %170 = vector.load %arg2[%169, %c0_128, %c0_129] : memref<27x32x32xbf16, #tpu.memory_space<vmem>>, vector<1x32x32xbf16>
      %171 = vector.shape_cast %170 : vector<1x32x32xbf16> to vector<32x32xbf16>
      %cst_130 = arith.constant dense<0.000000e+00> : vector<256x32xf32>
      %172 = tpu.matmul %166, %171, %cst_130 {dimension_numbers = #tpu.dot_dimension_numbers<[1], [0], [0], [1], [0, 0, 1, 1], [], []>} : vector<256x32xbf16>, vector<32x32xbf16>, vector<256x32xf32> -> vector<256x32xf32>
      %173 = arith.addf %165, %172 : vector<256x32xf32>
      %c32_131 = arith.constant 32 : index
      %c0_132 = arith.constant 0 : index
      %174 = vector.load %arg11[%c32_131, %c0_132] : memref<288x32xbf16, #tpu.memory_space<vmem>>, vector<256x32xbf16>
      %c9_i32_133 = arith.constant 9 : i32
      %175 = arith.muli %arg12, %c9_i32_133 : i32
      %c8_i32 = arith.constant 8 : i32
      %176 = arith.addi %175, %c8_i32 : i32
      %177 = arith.index_cast %176 : i32 to index
      %c0_134 = arith.constant 0 : index
      %c0_135 = arith.constant 0 : index
      %178 = vector.load %arg2[%177, %c0_134, %c0_135] : memref<27x32x32xbf16, #tpu.memory_space<vmem>>, vector<1x32x32xbf16>
      %179 = vector.shape_cast %178 : vector<1x32x32xbf16> to vector<32x32xbf16>
      %cst_136 = arith.constant dense<0.000000e+00> : vector<256x32xf32>
      %180 = tpu.matmul %174, %179, %cst_136 {dimension_numbers = #tpu.dot_dimension_numbers<[1], [0], [0], [1], [0, 0, 1, 1], [], []>} : vector<256x32xbf16>, vector<32x32xbf16>, vector<256x32xf32> -> vector<256x32xf32>
      %181 = arith.addf %173, %180 : vector<256x32xf32>
      %c255_i32_137 = arith.constant 255 : i32
      %182 = tpu.dynamic_rotate %181 by %c255_i32_137 dim 0 : vector<256x32xf32>, i32 -> vector<256x32xf32>
      %cst_138 = arith.constant 0.000000e+00 : f32
      %183 = vector.shape_cast %20 : vector<256x1xi1> to vector<256x1xi1>
      %184 = vector.broadcast %183 : vector<256x1xi1> to vector<256x32xi1>
      %185 = vector.broadcast %cst_138 : f32 to vector<256x32xf32>
      %186 = arith.select %184, %182, %185 : vector<256x32xi1>, vector<256x32xf32>
      %187 = arith.addf %156, %186 : vector<256x32xf32>
      %188 = arith.index_cast %arg12 : i32 to index
      %c0_139 = arith.constant 0 : index
      %c0_140 = arith.constant 0 : index
      %189 = vector.load %arg3[%188, %c0_139, %c0_140] : memref<3x1x32xf32, #tpu.memory_space<vmem>>, vector<1x1x32xf32>
      %190 = vector.shape_cast %189 : vector<1x1x32xf32> to vector<1x32xf32>
      %191 = vector.broadcast %190 : vector<1x32xf32> to vector<256x32xf32>
      %192 = arith.addf %187, %191 : vector<256x32xf32>
      %cst_141 = arith.constant dense<0.000000e+00> : vector<32xf32>
      %193 = vector.multi_reduction <add>, %192, %cst_141 [0] : vector<256x32xf32> to vector<32xf32>
      %194 = vector.shape_cast %193 : vector<32xf32> to vector<1x32xf32>
      %195 = arith.mulf %192, %192 : vector<256x32xf32>
      %cst_142 = arith.constant dense<0.000000e+00> : vector<32xf32>
      %196 = vector.multi_reduction <add>, %195, %cst_142 [0] : vector<256x32xf32> to vector<32xf32>
      %197 = vector.shape_cast %196 : vector<32xf32> to vector<1x32xf32>
      %198 = tpu.concatenate %194, %197 in 0 : vector<1x32xf32>, vector<1x32xf32> -> vector<2x32xf32>
      %cst_143 = arith.constant dense<0.000000e+00> : vector<2x16xf32>
      %199 = tpu.matmul %198, %28, %cst_143 {dimension_numbers = #tpu.dot_dimension_numbers<[1], [0], [0], [1], [0, 0, 1, 1], [], []>} : vector<2x32xf32>, vector<32x16xf32>, vector<2x16xf32> -> vector<2x16xf32>
      %cst_144 = arith.constant 0.001953125 : f32
      %200 = vector.broadcast %cst_144 : f32 to vector<2x16xf32>
      %201 = arith.mulf %199, %200 : vector<2x16xf32>
      %202 = vector.extract_strided_slice %201 {offsets = [0, 0], sizes = [1, 16], strides = [1, 1]} : vector<2x16xf32> to vector<1x16xf32>
      %203 = vector.extract_strided_slice %201 {offsets = [1, 0], sizes = [1, 16], strides = [1, 1]} : vector<2x16xf32> to vector<1x16xf32>
      %204 = arith.mulf %202, %202 : vector<1x16xf32>
      %205 = arith.subf %203, %204 : vector<1x16xf32>
      %cst_145 = arith.constant 9.99999974E-6 : f32
      %206 = vector.broadcast %cst_145 : f32 to vector<1x16xf32>
      %207 = arith.addf %205, %206 : vector<1x16xf32>
      %208 = math.rsqrt %207 : vector<1x16xf32>
      %209 = tpu.concatenate %202, %208 in 0 : vector<1x16xf32>, vector<1x16xf32> -> vector<2x16xf32>
      %cst_146 = arith.constant dense<0.000000e+00> : vector<2x32xf32>
      %210 = tpu.matmul %209, %29, %cst_146 {dimension_numbers = #tpu.dot_dimension_numbers<[1], [0], [0], [1], [0, 0, 1, 1], [], []>} : vector<2x16xf32>, vector<16x32xf32>, vector<2x32xf32> -> vector<2x32xf32>
      %211 = vector.extract_strided_slice %210 {offsets = [1, 0], sizes = [1, 32], strides = [1, 1]} : vector<2x32xf32> to vector<1x32xf32>
      %212 = arith.index_cast %arg12 : i32 to index
      %c0_147 = arith.constant 0 : index
      %c0_148 = arith.constant 0 : index
      %213 = vector.load %arg4[%212, %c0_147, %c0_148] : memref<3x1x32xf32, #tpu.memory_space<vmem>>, vector<1x1x32xf32>
      %214 = vector.shape_cast %213 : vector<1x1x32xf32> to vector<1x32xf32>
      %215 = arith.mulf %211, %214 : vector<1x32xf32>
      %216 = arith.index_cast %arg12 : i32 to index
      %c0_149 = arith.constant 0 : index
      %c0_150 = arith.constant 0 : index
      %217 = vector.load %arg5[%216, %c0_149, %c0_150] : memref<3x1x32xf32, #tpu.memory_space<vmem>>, vector<1x1x32xf32>
      %218 = vector.shape_cast %217 : vector<1x1x32xf32> to vector<1x32xf32>
      %219 = vector.extract_strided_slice %210 {offsets = [0, 0], sizes = [1, 32], strides = [1, 1]} : vector<2x32xf32> to vector<1x32xf32>
      %220 = arith.mulf %219, %215 : vector<1x32xf32>
      %221 = arith.subf %218, %220 : vector<1x32xf32>
      %222 = vector.broadcast %215 : vector<1x32xf32> to vector<256x32xf32>
      %223 = arith.mulf %192, %222 : vector<256x32xf32>
      %224 = vector.broadcast %221 : vector<1x32xf32> to vector<256x32xf32>
      %225 = arith.addf %223, %224 : vector<256x32xf32>
      %cst_151 = arith.constant 0.000000e+00 : f32
      %226 = vector.broadcast %cst_151 : f32 to vector<256x32xf32>
      %227 = arith.maximumf %225, %226 : vector<256x32xf32>
      %228 = arith.truncf %227 : vector<256x32xf32> to vector<256x32xbf16>
      %c16_152 = arith.constant 16 : index
      %c0_153 = arith.constant 0 : index
      %229 = vector.load %arg11[%c16_152, %c0_153] : memref<288x32xbf16, #tpu.memory_space<vmem>>, vector<256x32xbf16>
      tpu.vector_store %arg11[%c16_152, %c0_153], %228 {strides = array<i32>} : memref<288x32xbf16, #tpu.memory_space<vmem>>, vector<256x32xbf16>,
    }
    %c3_i32_17 = arith.constant 3 : i32
    %cst_18 = arith.constant 0.000000e+00 : f32
    %31 = vector.broadcast %cst_18 : f32 to vector<256x128xf32>
    %cst_19 = arith.constant 0.000000e+00 : f32
    %32 = vector.broadcast %cst_19 : f32 to vector<256x128xf32>
    %c0_20 = arith.constant 0 : index
    %c0_21 = arith.constant 0 : index
    %33 = vector.load %arg11[%c0_20, %c0_21] : memref<288x32xbf16, #tpu.memory_space<vmem>>, vector<256x32xbf16>
    %c0_22 = arith.constant 0 : index
    %c0_23 = arith.constant 0 : index
    %c0_24 = arith.constant 0 : index
    %34 = vector.load %arg6[%c0_22, %c0_23, %c0_24] : memref<9x32x128xbf16, #tpu.memory_space<vmem>>, vector<1x32x128xbf16>
    %35 = vector.shape_cast %34 : vector<1x32x128xbf16> to vector<32x128xbf16>
    %cst_25 = arith.constant dense<0.000000e+00> : vector<256x128xf32>
    %36 = tpu.matmul %33, %35, %cst_25 {dimension_numbers = #tpu.dot_dimension_numbers<[1], [0], [0], [1], [0, 0, 1, 1], [], []>} : vector<256x32xbf16>, vector<32x128xbf16>, vector<256x128xf32> -> vector<256x128xf32>
    %37 = arith.addf %32, %36 : vector<256x128xf32>
    %c16_26 = arith.constant 16 : index
    %c0_27 = arith.constant 0 : index
    %38 = vector.load %arg11[%c16_26, %c0_27] : memref<288x32xbf16, #tpu.memory_space<vmem>>, vector<256x32xbf16>
    %c3 = arith.constant 3 : index
    %c0_28 = arith.constant 0 : index
    %c0_29 = arith.constant 0 : index
    %39 = vector.load %arg6[%c3, %c0_28, %c0_29] : memref<9x32x128xbf16, #tpu.memory_space<vmem>>, vector<1x32x128xbf16>
    %40 = vector.shape_cast %39 : vector<1x32x128xbf16> to vector<32x128xbf16>
    %cst_30 = arith.constant dense<0.000000e+00> : vector<256x128xf32>
    %41 = tpu.matmul %38, %40, %cst_30 {dimension_numbers = #tpu.dot_dimension_numbers<[1], [0], [0], [1], [0, 0, 1, 1], [], []>} : vector<256x32xbf16>, vector<32x128xbf16>, vector<256x128xf32> -> vector<256x128xf32>
    %42 = arith.addf %37, %41 : vector<256x128xf32>
    %c32 = arith.constant 32 : index
    %c0_31 = arith.constant 0 : index
    %43 = vector.load %arg11[%c32, %c0_31] : memref<288x32xbf16, #tpu.memory_space<vmem>>, vector<256x32xbf16>
    %c6 = arith.constant 6 : index
    %c0_32 = arith.constant 0 : index
    %c0_33 = arith.constant 0 : index
    %44 = vector.load %arg6[%c6, %c0_32, %c0_33] : memref<9x32x128xbf16, #tpu.memory_space<vmem>>, vector<1x32x128xbf16>
    %45 = vector.shape_cast %44 : vector<1x32x128xbf16> to vector<32x128xbf16>
    %cst_34 = arith.constant dense<0.000000e+00> : vector<256x128xf32>
    %46 = tpu.matmul %43, %45, %cst_34 {dimension_numbers = #tpu.dot_dimension_numbers<[1], [0], [0], [1], [0, 0, 1, 1], [], []>} : vector<256x32xbf16>, vector<32x128xbf16>, vector<256x128xf32> -> vector<256x128xf32>
    %47 = arith.addf %42, %46 : vector<256x128xf32>
    %c1_i32_35 = arith.constant 1 : i32
    %48 = tpu.dynamic_rotate %47 by %c1_i32_35 dim 0 : vector<256x128xf32>, i32 -> vector<256x128xf32>
    %cst_36 = arith.constant 0.000000e+00 : f32
    %49 = vector.shape_cast %18 : vector<256x1xi1> to vector<256x1xi1>
    %50 = vector.broadcast %49 : vector<256x1xi1> to vector<256x128xi1>
    %51 = vector.broadcast %cst_36 : f32 to vector<256x128xf32>
    %52 = arith.select %50, %48, %51 : vector<256x128xi1>, vector<256x128xf32>
    %53 = arith.addf %31, %52 : vector<256x128xf32>
    %cst_37 = arith.constant 0.000000e+00 : f32
    %54 = vector.broadcast %cst_37 : f32 to vector<256x128xf32>
    %c0_38 = arith.constant 0 : index
    %c0_39 = arith.constant 0 : index
    %55 = vector.load %arg11[%c0_38, %c0_39] : memref<288x32xbf16, #tpu.memory_space<vmem>>, vector<256x32xbf16>
    %c1 = arith.constant 1 : index
    %c0_40 = arith.constant 0 : index
    %c0_41 = arith.constant 0 : index
    %56 = vector.load %arg6[%c1, %c0_40, %c0_41] : memref<9x32x128xbf16, #tpu.memory_space<vmem>>, vector<1x32x128xbf16>
    %57 = vector.shape_cast %56 : vector<1x32x128xbf16> to vector<32x128xbf16>
    %cst_42 = arith.constant dense<0.000000e+00> : vector<256x128xf32>
    %58 = tpu.matmul %55, %57, %cst_42 {dimension_numbers = #tpu.dot_dimension_numbers<[1], [0], [0], [1], [0, 0, 1, 1], [], []>} : vector<256x32xbf16>, vector<32x128xbf16>, vector<256x128xf32> -> vector<256x128xf32>
    %59 = arith.addf %54, %58 : vector<256x128xf32>
    %c16_43 = arith.constant 16 : index
    %c0_44 = arith.constant 0 : index
    %60 = vector.load %arg11[%c16_43, %c0_44] : memref<288x32xbf16, #tpu.memory_space<vmem>>, vector<256x32xbf16>
    %c4 = arith.constant 4 : index
    %c0_45 = arith.constant 0 : index
    %c0_46 = arith.constant 0 : index
    %61 = vector.load %arg6[%c4, %c0_45, %c0_46] : memref<9x32x128xbf16, #tpu.memory_space<vmem>>, vector<1x32x128xbf16>
    %62 = vector.shape_cast %61 : vector<1x32x128xbf16> to vector<32x128xbf16>
    %cst_47 = arith.constant dense<0.000000e+00> : vector<256x128xf32>
    %63 = tpu.matmul %60, %62, %cst_47 {dimension_numbers = #tpu.dot_dimension_numbers<[1], [0], [0], [1], [0, 0, 1, 1], [], []>} : vector<256x32xbf16>, vector<32x128xbf16>, vector<256x128xf32> -> vector<256x128xf32>
    %64 = arith.addf %59, %63 : vector<256x128xf32>
    %c32_48 = arith.constant 32 : index
    %c0_49 = arith.constant 0 : index
    %65 = vector.load %arg11[%c32_48, %c0_49] : memref<288x32xbf16, #tpu.memory_space<vmem>>, vector<256x32xbf16>
    %c7 = arith.constant 7 : index
    %c0_50 = arith.constant 0 : index
    %c0_51 = arith.constant 0 : index
    %66 = vector.load %arg6[%c7, %c0_50, %c0_51] : memref<9x32x128xbf16, #tpu.memory_space<vmem>>, vector<1x32x128xbf16>
    %67 = vector.shape_cast %66 : vector<1x32x128xbf16> to vector<32x128xbf16>
    %cst_52 = arith.constant dense<0.000000e+00> : vector<256x128xf32>
    %68 = tpu.matmul %65, %67, %cst_52 {dimension_numbers = #tpu.dot_dimension_numbers<[1], [0], [0], [1], [0, 0, 1, 1], [], []>} : vector<256x32xbf16>, vector<32x128xbf16>, vector<256x128xf32> -> vector<256x128xf32>
    %69 = arith.addf %64, %68 : vector<256x128xf32>
    %70 = arith.addf %53, %69 : vector<256x128xf32>
    %cst_53 = arith.constant 0.000000e+00 : f32
    %71 = vector.broadcast %cst_53 : f32 to vector<256x128xf32>
    %c0_54 = arith.constant 0 : index
    %c0_55 = arith.constant 0 : index
    %72 = vector.load %arg11[%c0_54, %c0_55] : memref<288x32xbf16, #tpu.memory_space<vmem>>, vector<256x32xbf16>
    %c2 = arith.constant 2 : index
    %c0_56 = arith.constant 0 : index
    %c0_57 = arith.constant 0 : index
    %73 = vector.load %arg6[%c2, %c0_56, %c0_57] : memref<9x32x128xbf16, #tpu.memory_space<vmem>>, vector<1x32x128xbf16>
    %74 = vector.shape_cast %73 : vector<1x32x128xbf16> to vector<32x128xbf16>
    %cst_58 = arith.constant dense<0.000000e+00> : vector<256x128xf32>
    %75 = tpu.matmul %72, %74, %cst_58 {dimension_numbers = #tpu.dot_dimension_numbers<[1], [0], [0], [1], [0, 0, 1, 1], [], []>} : vector<256x32xbf16>, vector<32x128xbf16>, vector<256x128xf32> -> vector<256x128xf32>
    %76 = arith.addf %71, %75 : vector<256x128xf32>
    %c16_59 = arith.constant 16 : index
    %c0_60 = arith.constant 0 : index
    %77 = vector.load %arg11[%c16_59, %c0_60] : memref<288x32xbf16, #tpu.memory_space<vmem>>, vector<256x32xbf16>
    %c5 = arith.constant 5 : index
    %c0_61 = arith.constant 0 : index
    %c0_62 = arith.constant 0 : index
    %78 = vector.load %arg6[%c5, %c0_61, %c0_62] : memref<9x32x128xbf16, #tpu.memory_space<vmem>>, vector<1x32x128xbf16>
    %79 = vector.shape_cast %78 : vector<1x32x128xbf16> to vector<32x128xbf16>
    %cst_63 = arith.constant dense<0.000000e+00> : vector<256x128xf32>
    %80 = tpu.matmul %77, %79, %cst_63 {dimension_numbers = #tpu.dot_dimension_numbers<[1], [0], [0], [1], [0, 0, 1, 1], [], []>} : vector<256x32xbf16>, vector<32x128xbf16>, vector<256x128xf32> -> vector<256x128xf32>
    %81 = arith.addf %76, %80 : vector<256x128xf32>
    %c32_64 = arith.constant 32 : index
    %c0_65 = arith.constant 0 : index
    %82 = vector.load %arg11[%c32_64, %c0_65] : memref<288x32xbf16, #tpu.memory_space<vmem>>, vector<256x32xbf16>
    %c8 = arith.constant 8 : index
    %c0_66 = arith.constant 0 : index
    %c0_67 = arith.constant 0 : index
    %83 = vector.load %arg6[%c8, %c0_66, %c0_67] : memref<9x32x128xbf16, #tpu.memory_space<vmem>>, vector<1x32x128xbf16>
    %84 = vector.shape_cast %83 : vector<1x32x128xbf16> to vector<32x128xbf16>
    %cst_68 = arith.constant dense<0.000000e+00> : vector<256x128xf32>
    %85 = tpu.matmul %82, %84, %cst_68 {dimension_numbers = #tpu.dot_dimension_numbers<[1], [0], [0], [1], [0, 0, 1, 1], [], []>} : vector<256x32xbf16>, vector<32x128xbf16>, vector<256x128xf32> -> vector<256x128xf32>
    %86 = arith.addf %81, %85 : vector<256x128xf32>
    %c255_i32 = arith.constant 255 : i32
    %87 = tpu.dynamic_rotate %86 by %c255_i32 dim 0 : vector<256x128xf32>, i32 -> vector<256x128xf32>
    %cst_69 = arith.constant 0.000000e+00 : f32
    %88 = vector.shape_cast %20 : vector<256x1xi1> to vector<256x1xi1>
    %89 = vector.broadcast %88 : vector<256x1xi1> to vector<256x128xi1>
    %90 = vector.broadcast %cst_69 : f32 to vector<256x128xf32>
    %91 = arith.select %89, %87, %90 : vector<256x128xi1>, vector<256x128xf32>
    %92 = arith.addf %70, %91 : vector<256x128xf32>
    %c0_70 = arith.constant 0 : index
    %c0_71 = arith.constant 0 : index
    %93 = vector.load %arg7[%c0_70, %c0_71] : memref<1x128xf32, #tpu.memory_space<vmem>>, vector<1x128xf32>
    %94 = vector.broadcast %93 : vector<1x128xf32> to vector<256x128xf32>
    %95 = arith.addf %92, %94 : vector<256x128xf32>
    %c0_72 = arith.constant 0 : index
    %c0_73 = arith.constant 0 : index
    %c0_74 = arith.constant 0 : index
    %96 = vector.load %arg10[%c0_72, %c0_73, %c0_74] : memref<1x256x128xf32, #tpu.memory_space<vmem>>, vector<1x256x128xf32>
    %97 = vector.shape_cast %96 : vector<1x256x128xf32> to vector<256x128xf32>
    %98 = vector.shape_cast %95 : vector<256x128xf32> to vector<1x256x128xf32>
    tpu.vector_store %arg10[%c0_72, %c0_73, %c0_74], %98 {strides = array<i32>} : memref<1x256x128xf32, #tpu.memory_space<vmem>>, vector<1x256x128xf32>,
    return
  }
  func.func @transform_0(%arg0: i32) -> (i32, i32, i32) {
    %c0_i32 = arith.constant 0 : i32
    %c0_i32_0 = arith.constant 0 : i32
    %c0_i32_1 = arith.constant 0 : i32
    return %arg0, %c0_i32, %c0_i32_0 : i32, i32, i32
  }
  func.func @transform_1(%arg0: i32) -> (i32, i32, i32) {
    %c0_i32 = arith.constant 0 : i32
    %c0_i32_0 = arith.constant 0 : i32
    %c0_i32_1 = arith.constant 0 : i32
    %c0_i32_2 = arith.constant 0 : i32
    return %c0_i32, %c0_i32_0, %c0_i32_1 : i32, i32, i32
  }
  func.func @transform_2(%arg0: i32) -> (i32, i32, i32) {
    %c0_i32 = arith.constant 0 : i32
    %c0_i32_0 = arith.constant 0 : i32
    %c0_i32_1 = arith.constant 0 : i32
    %c0_i32_2 = arith.constant 0 : i32
    return %c0_i32, %c0_i32_0, %c0_i32_1 : i32, i32, i32
  }
  func.func @transform_3(%arg0: i32) -> (i32, i32, i32) {
    %c0_i32 = arith.constant 0 : i32
    %c0_i32_0 = arith.constant 0 : i32
    %c0_i32_1 = arith.constant 0 : i32
    %c0_i32_2 = arith.constant 0 : i32
    return %c0_i32, %c0_i32_0, %c0_i32_1 : i32, i32, i32
  }
  func.func @transform_4(%arg0: i32) -> (i32, i32, i32) {
    %c0_i32 = arith.constant 0 : i32
    %c0_i32_0 = arith.constant 0 : i32
    %c0_i32_1 = arith.constant 0 : i32
    %c0_i32_2 = arith.constant 0 : i32
    return %c0_i32, %c0_i32_0, %c0_i32_1 : i32, i32, i32
  }
  func.func @transform_5(%arg0: i32) -> (i32, i32, i32) {
    %c0_i32 = arith.constant 0 : i32
    %c0_i32_0 = arith.constant 0 : i32
    %c0_i32_1 = arith.constant 0 : i32
    %c0_i32_2 = arith.constant 0 : i32
    return %c0_i32, %c0_i32_0, %c0_i32_1 : i32, i32, i32
  }
  func.func @transform_6(%arg0: i32) -> (i32, i32) {
    %c0_i32 = arith.constant 0 : i32
    %c0_i32_0 = arith.constant 0 : i32
    %c0_i32_1 = arith.constant 0 : i32
    return %c0_i32, %c0_i32_0 : i32, i32
  }
  func.func @transform_7(%arg0: i32) -> (i32, i32) {
    %c0_i32 = arith.constant 0 : i32
    %c0_i32_0 = arith.constant 0 : i32
    %c0_i32_1 = arith.constant 0 : i32
    return %c0_i32, %c0_i32_0 : i32, i32
  }
  func.func @transform_8(%arg0: i32) -> (i32, i32) {
    %c0_i32 = arith.constant 0 : i32
    %c0_i32_0 = arith.constant 0 : i32
    %c0_i32_1 = arith.constant 0 : i32
    return %c0_i32, %c0_i32_0 : i32, i32
  }
  func.func @transform_9(%arg0: i32) -> (i32, i32, i32) {
    %c0_i32 = arith.constant 0 : i32
    %c0_i32_0 = arith.constant 0 : i32
    %c0_i32_1 = arith.constant 0 : i32
    return %arg0, %c0_i32, %c0_i32_0 : i32, i32, i32
  }
}

</mosaic_0001>

<llo_original>
// kernel: tpu_custom_call.1
$region0: #{tpu_custom_call.1}
  #allocation0 [shape = 'u32[]', space=smem, size = 0x4, offset = 0x4, fixed_abs, tag = 'smem constant byte address 0x4 - core index']
  #allocation1 [shape = 'u32[72,128]{1,0:T(1,128)}', space=vmem, size = 0x9000, scoped, tag = 'internal scratch']
  #allocation2 [shape = 'bf16[288,32]{1,0:T(8,128)(2,1)}', space=vmem, size = 0x12000, scoped, tag = 'scratch operand']
  %s0 = inlined_call_operand.vmem [shape: bf16[2,256,32], index: 0, kind: input, shape index: {}]
  %s1 = inlined_call_operand.hbm [shape: bf16[27,32,32], index: 1, kind: input, shape index: {}]
  %s2 = inlined_call_operand.vmem [shape: f32[3,1,32], index: 2, kind: input, shape index: {}]
  %s3 = inlined_call_operand.vmem [shape: f32[3,1,32], index: 3, kind: input, shape index: {}]
  %s4 = inlined_call_operand.vmem [shape: f32[3,1,32], index: 4, kind: input, shape index: {}]
  %s5 = inlined_call_operand.vmem [shape: bf16[9,32,128], index: 5, kind: input, shape index: {}]
  %s6 = inlined_call_operand.vmem [shape: f32[1,128], index: 6, kind: input, shape index: {}]
  %s7 = inlined_call_operand.vmem [shape: f32[32,16], index: 7, kind: input, shape index: {}]
  %s8 = inlined_call_operand.vmem [shape: f32[16,32], index: 8, kind: input, shape index: {}]
  %s9 = inlined_call_operand.hbm [shape: f32[2,256,128], index: 9, kind: output, shape index: {}]
  %s10 = sld [smem:[#allocation0]]
  $region80: #{tpu_custom_call.1} parent=0
    _
  %s12 = ssub.s32 1, %s10
  %s13 = scalar_select 0, %s12, %s10
  $region1: #{tpu_custom_call.1} parent=0
    #allocation3 [shape = 'u8[221184]{0}', space=vmem, size = 0x36000, scoped, tag = 'input window, operand 1, single buffered']
    #allocation4 [shape = 's32[2]{0}', space=sflag, size = 0x8, scoped, tag = 'scoped memory for tpu_custom_call.1']
    #allocation5 [shape = 's32[2]{0}', space=sflag, size = 0x8, scoped, tag = 'scoped memory for tpu_custom_call.1']
    #allocation6 [shape = 'u8[262144]{0}', space=vmem, size = 0x40000, scoped, tag = 'output window, operand 0']
    %14 = vsyncpa [#allocation4], 0
    %15 = vsyncpa [#allocation5], 0
    %s16 = scalar_lea.sflag [#allocation5], 1
    %17 = vsyncpa %s16, 0
    loop: start=0, step=1, limit=4
    $region2: #{tpu_custom_call.1} parent=1 // loop_pre_header
      _
    $region3: #{tpu_custom_call.1} parent=1 // loop_header
      %s19 = sphi 0, %s23
      %p20 = scmp.ge.s32.totalorder %s19, 4
      %s29 = sphi 0, %s31
      %s32 = sphi 0, %s29
      %s33 = sphi 0, %s32
      %s49 = sphi 0, %s33
      %s53 = sphi 0, %s53
      %s55 = sphi 0, %s53
      %s56 = sphi 0, %s55
      %s70 = sphi 0, %s56
      %s74 = sphi 0, %s74
      %s76 = sphi 0, %s74
      %s77 = sphi 0, %s76
      %s91 = sphi 0, %s77
      %s95 = sphi 0, %s95
      %s97 = sphi 0, %s95
      %s98 = sphi 0, %s97
      %s112 = sphi 0, %s98
      %s116 = sphi 0, %s116
      %s118 = sphi 0, %s116
      %s119 = sphi 0, %s118
      %s133 = sphi 0, %s119
      %s137 = sphi 0, %s137
      %s139 = sphi 0, %s137
      %s140 = sphi 0, %s139
      %s154 = sphi 0, %s140
      %s158 = sphi 0, %s158
      %s160 = sphi 0, %s158
      %s161 = sphi 0, %s160
      %s175 = sphi 0, %s161
      %s179 = sphi 0, %s179
      %s181 = sphi 0, %s179
      %s182 = sphi 0, %s181
      %s196 = sphi 0, %s182
      %s200 = sphi 0, %s200
      %s202 = sphi 0, %s200
      %s203 = sphi 0, %s202
      %s217 = sphi 0, %s203
      %s223 = sphi 0, %s225
      %s226 = sphi 0, %s223
      %s227 = sphi 0, %s226
      %s243 = sphi 0, %s227
    $region4: #{tpu_custom_call.1} parent=1 // loop_header_branch
      %22 = sbr.rel (%p20) target = $region8
    $region5: #{tpu_custom_call.1} parent=1 // loop_body
      %s24 = ssub.s32 %s19, 1
      %s25 = ssub.s32 %s19, 2
      %s26 = sadd.s32 %s19, 1
      %s27 = ssub.s32 %s19, %s26
      %p28 = scmp.eq.s32.totalorder %s27, 0
      %s30 = sadd.s32 %s29, 1
      %s31 = scalar_select %p28, %s29, %s30
      %p34 = pneg %p28
      %p35 = scmp.eq.s32.totalorder %s19, 1
      %p36 = por %p34, %p35
      %p37 = scmp.ne.s32.totalorder %s29, %s32
      %p38 = scmp.eq.s32.totalorder %s19, 0
      %p39 = por %p37, %p38
      %p40 = scmp.ne.s32.totalorder %s29, %s32
      %p41 = scmp.eq.s32.totalorder %s24, 1
      %p42 = por %p40, %p41
      %p43 = scmp.ne.s32.totalorder %s32, %s33
      %p44 = scmp.eq.s32.totalorder %s24, 0
      %p45 = por %p43, %p44
      %p46 = scmp.ne.s32.totalorder %s32, %s33
      %p47 = scmp.eq.s32.totalorder %s25, 1
      %p48 = por %p46, %p47
      %p50 = scmp.ne.s32.totalorder %s33, %s49
      %p51 = scmp.eq.s32.totalorder %s25, 0
      %p52 = por %p50, %p51
      %s54 = sadd.s32 %s53, 1
      %p57 = scmp.eq.s32.totalorder %s19, 1
      %p58 = scmp.ne.s32.totalorder %s53, %s55
      %p59 = scmp.eq.s32.totalorder %s19, 0
      %p60 = por %p58, %p59
      %p61 = scmp.ne.s32.totalorder %s53, %s55
      %p62 = scmp.eq.s32.totalorder %s24, 1
      %p63 = por %p61, %p62
      %p64 = scmp.ne.s32.totalorder %s55, %s56
      %p65 = scmp.eq.s32.totalorder %s24, 0
      %p66 = por %p64, %p65
      %p67 = scmp.ne.s32.totalorder %s55, %s56
      %p68 = scmp.eq.s32.totalorder %s25, 1
      %p69 = por %p67, %p68
      %p71 = scmp.ne.s32.totalorder %s56, %s70
      %p72 = scmp.eq.s32.totalorder %s25, 0
      %p73 = por %p71, %p72
      %s75 = sadd.s32 %s74, 1
      %p78 = scmp.eq.s32.totalorder %s19, 1
      %p79 = scmp.ne.s32.totalorder %s74, %s76
      %p80 = scmp.eq.s32.totalorder %s19, 0
      %p81 = por %p79, %p80
      %p82 = scmp.ne.s32.totalorder %s74, %s76
      %p83 = scmp.eq.s32.totalorder %s24, 1
      %p84 = por %p82, %p83
      %p85 = scmp.ne.s32.totalorder %s76, %s77
      %p86 = scmp.eq.s32.totalorder %s24, 0
      %p87 = por %p85, %p86
      %p88 = scmp.ne.s32.totalorder %s76, %s77
      %p89 = scmp.eq.s32.totalorder %s25, 1
      %p90 = por %p88, %p89
      %p92 = scmp.ne.s32.totalorder %s77, %s91
      %p93 = scmp.eq.s32.totalorder %s25, 0
      %p94 = por %p92, %p93
      %s96 = sadd.s32 %s95, 1
      %p99 = scmp.eq.s32.totalorder %s19, 1
      %p100 = scmp.ne.s32.totalorder %s95, %s97
      %p101 = scmp.eq.s32.totalorder %s19, 0
      %p102 = por %p100, %p101
      %p103 = scmp.ne.s32.totalorder %s95, %s97
      %p104 = scmp.eq.s32.totalorder %s24, 1
      %p105 = por %p103, %p104
      %p106 = scmp.ne.s32.totalorder %s97, %s98
      %p107 = scmp.eq.s32.totalorder %s24, 0
      %p108 = por %p106, %p107
      %p109 = scmp.ne.s32.totalorder %s97, %s98
      %p110 = scmp.eq.s32.totalorder %s25, 1
      %p111 = por %p109, %p110
      %p113 = scmp.ne.s32.totalorder %s98, %s112
      %p114 = scmp.eq.s32.totalorder %s25, 0
      %p115 = por %p113, %p114
      %s117 = sadd.s32 %s116, 1
      %p120 = scmp.eq.s32.totalorder %s19, 1
      %p121 = scmp.ne.s32.totalorder %s116, %s118
      %p122 = scmp.eq.s32.totalorder %s19, 0
      %p123 = por %p121, %p122
      %p124 = scmp.ne.s32.totalorder %s116, %s118
      %p125 = scmp.eq.s32.totalorder %s24, 1
      %p126 = por %p124, %p125
      %p127 = scmp.ne.s32.totalorder %s118, %s119
      %p128 = scmp.eq.s32.totalorder %s24, 0
      %p129 = por %p127, %p128
      %p130 = scmp.ne.s32.totalorder %s118, %s119
      %p131 = scmp.eq.s32.totalorder %s25, 1
      %p132 = por %p130, %p131
      %p134 = scmp.ne.s32.totalorder %s119, %s133
      %p135 = scmp.eq.s32.totalorder %s25, 0
      %p136 = por %p134, %p135
      %s138 = sadd.s32 %s137, 1
      %p141 = scmp.eq.s32.totalorder %s19, 1
      %p142 = scmp.ne.s32.totalorder %s137, %s139
      %p143 = scmp.eq.s32.totalorder %s19, 0
      %p144 = por %p142, %p143
      %p145 = scmp.ne.s32.totalorder %s137, %s139
      %p146 = scmp.eq.s32.totalorder %s24, 1
      %p147 = por %p145, %p146
      %p148 = scmp.ne.s32.totalorder %s139, %s140
      %p149 = scmp.eq.s32.totalorder %s24, 0
      %p150 = por %p148, %p149
      %p151 = scmp.ne.s32.totalorder %s139, %s140
      %p152 = scmp.eq.s32.totalorder %s25, 1
      %p153 = por %p151, %p152
      %p155 = scmp.ne.s32.totalorder %s140, %s154
      %p156 = scmp.eq.s32.totalorder %s25, 0
      %p157 = por %p155, %p156
      %s159 = sadd.s32 %s158, 1
      %p162 = scmp.eq.s32.totalorder %s19, 1
      %p163 = scmp.ne.s32.totalorder %s158, %s160
      %p164 = scmp.eq.s32.totalorder %s19, 0
      %p165 = por %p163, %p164
      %p166 = scmp.ne.s32.totalorder %s158, %s160
      %p167 = scmp.eq.s32.totalorder %s24, 1
      %p168 = por %p166, %p167
      %p169 = scmp.ne.s32.totalorder %s160, %s161
      %p170 = scmp.eq.s32.totalorder %s24, 0
      %p171 = por %p169, %p170
      %p172 = scmp.ne.s32.totalorder %s160, %s161
      %p173 = scmp.eq.s32.totalorder %s25, 1
      %p174 = por %p172, %p173
      %p176 = scmp.ne.s32.totalorder %s161, %s175
      %p177 = scmp.eq.s32.totalorder %s25, 0
      %p178 = por %p176, %p177
      %s180 = sadd.s32 %s179, 1
      %p183 = scmp.eq.s32.totalorder %s19, 1
      %p184 = scmp.ne.s32.totalorder %s179, %s181
      %p185 = scmp.eq.s32.totalorder %s19, 0
      %p186 = por %p184, %p185
      %p187 = scmp.ne.s32.totalorder %s179, %s181
      %p188 = scmp.eq.s32.totalorder %s24, 1
      %p189 = por %p187, %p188
      %p190 = scmp.ne.s32.totalorder %s181, %s182
      %p191 = scmp.eq.s32.totalorder %s24, 0
      %p192 = por %p190, %p191
      %p193 = scmp.ne.s32.totalorder %s181, %s182
      %p194 = scmp.eq.s32.totalorder %s25, 1
      %p195 = por %p193, %p194
      %p197 = scmp.ne.s32.totalorder %s182, %s196
      %p198 = scmp.eq.s32.totalorder %s25, 0
      %p199 = por %p197, %p198
      %s201 = sadd.s32 %s200, 1
      %p204 = scmp.eq.s32.totalorder %s19, 1
      %p205 = scmp.ne.s32.totalorder %s200, %s202
      %p206 = scmp.eq.s32.totalorder %s19, 0
      %p207 = por %p205, %p206
      %p208 = scmp.ne.s32.totalorder %s200, %s202
      %p209 = scmp.eq.s32.totalorder %s24, 1
      %p210 = por %p208, %p209
      %p211 = scmp.ne.s32.totalorder %s202, %s203
      %p212 = scmp.eq.s32.totalorder %s24, 0
      %p213 = por %p211, %p212
      %p214 = scmp.ne.s32.totalorder %s202, %s203
      %p215 = scmp.eq.s32.totalorder %s25, 1
      %p216 = por %p214, %p215
      %p218 = scmp.ne.s32.totalorder %s203, %s217
      %p219 = scmp.eq.s32.totalorder %s25, 0
      %p220 = por %p218, %p219
      %s221 = ssub.s32 %s19, %s26
      %p222 = scmp.eq.s32.totalorder %s221, 0
      %s224 = sadd.s32 %s223, 1
      %s225 = scalar_select %p222, %s223, %s224
      %p228 = pneg %p222
      %p229 = scmp.eq.s32.totalorder %s19, 1
      %p230 = por %p228, %p229
      %p231 = scmp.ne.s32.totalorder %s223, %s226
      %p232 = scmp.eq.s32.totalorder %s19, 0
      %p233 = por %p231, %p232
      %p234 = scmp.ne.s32.totalorder %s223, %s226
      %p235 = scmp.eq.s32.totalorder %s24, 1
      %p236 = por %p234, %p235
      %p237 = scmp.ne.s32.totalorder %s226, %s227
      %p238 = scmp.eq.s32.totalorder %s24, 0
      %p239 = por %p237, %p238
      %p240 = scmp.ne.s32.totalorder %s226, %s227
      %p241 = scmp.eq.s32.totalorder %s25, 1
      %p242 = por %p240, %p241
      %p244 = scmp.ne.s32.totalorder %s227, %s243
      %p245 = scmp.eq.s32.totalorder %s25, 0
      %p246 = por %p244, %p245
      %p247 = scmp.le.s32.totalorder 1, %s19
      %p248 = scmp.lt.s32.totalorder %s19, 3
      %p249 = pnand %p247, %p248
      %p250 = pneg %p249
      // Predicated region
      $region9: #{tpu_custom_call.1} parent=5 // pred_check
        _
      $region10: #{tpu_custom_call.1} parent=5 // pred_check_branch
        %252 = sbr.rel (%p249) target = $region12
      $region11: #{tpu_custom_call.1} parent=5 // pred_region
        %s253 = ssub.s32 %s19, 1
        // Predicated region
        $region13: #{tpu_custom_call.1} parent=11 // pred_check
          %p254 = pneg %p66
        $region14: #{tpu_custom_call.1} parent=11 // pred_check_branch
          %256 = sbr.rel (%p254) target = $region16
        $region15: #{tpu_custom_call.1} parent=11 // pred_region
          %258 = vsyncadd [#allocation4], 0
          %s259 = sshll.u32 %s1, 4
          %s260 = int_to_ptr.hbm [resolvable:$true] %s259
          %s261 = sshll.u32 [#allocation3], 4
          %s262 = int_to_ptr.vmem [resolvable:$true] %s261
          %267 = dma.hbm_to_vmem [thread:$0]  %s260, 6912, %s262, [#allocation4], 64, 64, 4
        $region16: #{tpu_custom_call.1} parent=11 // pred_fallthru
          _
        // Predicated region
        $region17: #{tpu_custom_call.1} parent=11 // pred_check
          %p268 = pneg %p87
        $region18: #{tpu_custom_call.1} parent=11 // pred_check_branch
          %270 = sbr.rel (%p268) target = $region20
        $region19: #{tpu_custom_call.1} parent=11 // pred_region
          _
        $region20: #{tpu_custom_call.1} parent=11 // pred_fallthru
          _
        // Predicated region
        $region21: #{tpu_custom_call.1} parent=11 // pred_check
          %p271 = pneg %p108
        $region22: #{tpu_custom_call.1} parent=11 // pred_check_branch
          %273 = sbr.rel (%p271) target = $region24
        $region23: #{tpu_custom_call.1} parent=11 // pred_region
          _
        $region24: #{tpu_custom_call.1} parent=11 // pred_fallthru
          _
        // Predicated region
        $region25: #{tpu_custom_call.1} parent=11 // pred_check
          %p274 = pneg %p129
        $region26: #{tpu_custom_call.1} parent=11 // pred_check_branch
          %276 = sbr.rel (%p274) target = $region28
        $region27: #{tpu_custom_call.1} parent=11 // pred_region
          _
        $region28: #{tpu_custom_call.1} parent=11 // pred_fallthru
          _
        // Predicated region
        $region29: #{tpu_custom_call.1} parent=11 // pred_check
          %p277 = pneg %p150
        $region30: #{tpu_custom_call.1} parent=11 // pred_check_branch
          %279 = sbr.rel (%p277) target = $region32
        $region31: #{tpu_custom_call.1} parent=11 // pred_region
          _
        $region32: #{tpu_custom_call.1} parent=11 // pred_fallthru
          _
        // Predicated region
        $region33: #{tpu_custom_call.1} parent=11 // pred_check
          %p280 = pneg %p171
        $region34: #{tpu_custom_call.1} parent=11 // pred_check_branch
          %282 = sbr.rel (%p280) target = $region36
        $region35: #{tpu_custom_call.1} parent=11 // pred_region
          _
        $region36: #{tpu_custom_call.1} parent=11 // pred_fallthru
          _
        // Predicated region
        $region37: #{tpu_custom_call.1} parent=11 // pred_check
          %p283 = pneg %p192
        $region38: #{tpu_custom_call.1} parent=11 // pred_check_branch
          %285 = sbr.rel (%p283) target = $region40
        $region39: #{tpu_custom_call.1} parent=11 // pred_region
          _
        $region40: #{tpu_custom_call.1} parent=11 // pred_fallthru
          _
        // Predicated region
        $region41: #{tpu_custom_call.1} parent=11 // pred_check
          %p286 = pneg %p213
        $region42: #{tpu_custom_call.1} parent=11 // pred_check_branch
          %288 = sbr.rel (%p286) target = $region44
        $region43: #{tpu_custom_call.1} parent=11 // pred_region
          _
        $region44: #{tpu_custom_call.1} parent=11 // pred_fallthru
          _
      $region12: #{tpu_custom_call.1} parent=5 // pred_fallthru
        _
      %p289 = scmp.lt.s32.totalorder %s19, 2
      // Predicated region
      $region45: #{tpu_custom_call.1} parent=5 // pred_check
        %p290 = pneg %p289
      $region46: #{tpu_custom_call.1} parent=5 // pred_check_branch
        %292 = sbr.rel (%p290) target = $region48
      $region47: #{tpu_custom_call.1} parent=5 // pred_region
        // Predicated region
        $region49: #{tpu_custom_call.1} parent=47 // pred_check
          %p293 = pneg %p39
        $region50: #{tpu_custom_call.1} parent=47 // pred_check_branch
          %295 = sbr.rel (%p293) target = $region52
        $region51: #{tpu_custom_call.1} parent=47 // pred_region
          %p296 = scmp.lt.s32.totalorder %s19, 1
          %s297 = scalar_select %p296, %s19, 1
          %s298 = smul.addr %s297, 32
          %s299 = smul.addr %s298, 4
          %s300 = scalar_lea.vmem %s0, %s299
        $region52: #{tpu_custom_call.1} parent=47 // pred_fallthru
          _
      $region48: #{tpu_custom_call.1} parent=5 // pred_fallthru
        _
      %p301 = scmp.le.s32.totalorder 1, %s19
      %p302 = scmp.lt.s32.totalorder %s19, 3
      %p303 = pnand %p301, %p302
      %p304 = pneg %p303
      // Predicated region
      $region53: #{tpu_custom_call.1} parent=5 // pred_check
        _
      $region54: #{tpu_custom_call.1} parent=5 // pred_check_branch
        %306 = sbr.rel (%p303) target = $region56
      $region55: #{tpu_custom_call.1} parent=5 // pred_region
        %s307 = ssub.s32 %s19, 1
        // Predicated region
        $region57: #{tpu_custom_call.1} parent=55 // pred_check
          %p308 = pneg %p66
        $region58: #{tpu_custom_call.1} parent=55 // pred_check_branch
          %310 = sbr.rel (%p308) target = $region60
        $region59: #{tpu_custom_call.1} parent=55 // pred_region
          %312 = dma.done [#allocation4], 6912
        $region60: #{tpu_custom_call.1} parent=55 // pred_fallthru
          _
        %p313 = scmp.lt.s32.totalorder %s24, 1
        %s314 = scalar_select %p313, %s24, 1
        %s315 = smul.addr %s314, 32
        %s316 = smul.addr %s315, 4
        %s317 = scalar_lea.vmem %s0, %s316
        %p318 = pneg %p45
        %p319 = pneg %p42
        %p320 = pneg %p66
        %p321 = pneg %p63
        %p322 = pneg %p87
        %p323 = pneg %p84
        %p324 = pneg %p108
        %p325 = pneg %p105
        %p326 = pneg %p129
        %p327 = pneg %p126
        %p328 = pneg %p150
        %p329 = pneg %p147
        %p330 = pneg %p171
        %p331 = pneg %p168
        %p332 = pneg %p192
        %p333 = pneg %p189
        %p334 = pneg %p213
        %p335 = pneg %p210
        %p336 = pneg %p239
        %p337 = pneg %p236
        %s338 = sand.u32 %s226, 1
        %s339 = scalar_lea.sflag [#allocation5], %s338
        %s340 = sand.u32 %s226, 1
        %s341 = smul.addr %s340, 256
        %s342 = scalar_lea.vmem [#allocation6], %s341
        %p343 = scmp.lt.s32.totalorder %s24, 1
        %s344 = scalar_select %p343, %s24, 1
        %s345 = smul.addr %s344, 32
        %s346 = smul.addr %s345, 4
        %s347 = scalar_lea.vmem %s0, %s346
        %v349 = vlaneseq
        %v350 = vshrl.u32 %v349, 7
        %v351 = vadd.s32 %v350, 8
        %v352 = vadd.s32 %v350, 16
        %v353 = vadd.s32 %v350, 24
        %v354 = vadd.s32 %v350, 32
        %v355 = vadd.s32 %v350, 40
        %v356 = vadd.s32 %v350, 48
        %v357 = vadd.s32 %v350, 56
        %v358 = vadd.s32 %v350, 64
        %v359 = vadd.s32 %v350, 72
        %v360 = vadd.s32 %v350, 80
        %v361 = vadd.s32 %v350, 88
        %v362 = vadd.s32 %v350, 96
        %v363 = vadd.s32 %v350, 104
        %v364 = vadd.s32 %v350, 112
        %v365 = vadd.s32 %v350, 120
        %v366 = vadd.s32 %v350, 128
        %v367 = vadd.s32 %v350, 136
        %v368 = vadd.s32 %v350, 144
        %v369 = vadd.s32 %v350, 152
        %v370 = vadd.s32 %v350, 160
        %v371 = vadd.s32 %v350, 168
        %v372 = vadd.s32 %v350, 176
        %v373 = vadd.s32 %v350, 184
        %v374 = vadd.s32 %v350, 192
        %v375 = vadd.s32 %v350, 200
        %v376 = vadd.s32 %v350, 208
        %v377 = vadd.s32 %v350, 216
        %v378 = vadd.s32 %v350, 224
        %v379 = vadd.s32 %v350, 232
        %v380 = vadd.s32 %v350, 240
        %v381 = vadd.s32 %v350, 248
        %vm382 = vcmp.lt.s32.totalorder %v350, 0
        %v383 = vsub.s32 0, %v350
        %v384 = vsel %vm382, %v383, %v350
        %v385 = vshrl.u32 %v384, 4
        %v386 = vand.u32 %v384, 15
        %v387 = vsub.s32 0, %v386
        %v388 = vsel %vm382, %v387, %v386
        %vm389 = vcmp.lt.s32.totalorder %v351, 0
        %v390 = vsub.s32 0, %v351
        %v391 = vsel %vm389, %v390, %v351
        %v392 = vshrl.u32 %v391, 4
        %v393 = vand.u32 %v391, 15
        %v394 = vsub.s32 0, %v393
        %v395 = vsel %vm389, %v394, %v393
        %vm396 = vcmp.lt.s32.totalorder %v352, 0
        %v397 = vsub.s32 0, %v352
        %v398 = vsel %vm396, %v397, %v352
        %v399 = vshrl.u32 %v398, 4
        %v400 = vand.u32 %v398, 15
        %v401 = vsub.s32 0, %v400
        %v402 = vsel %vm396, %v401, %v400
        %vm403 = vcmp.lt.s32.totalorder %v353, 0
        %v404 = vsub.s32 0, %v353
        %v405 = vsel %vm403, %v404, %v353
        %v406 = vshrl.u32 %v405, 4
        %v407 = vand.u32 %v405, 15
        %v408 = vsub.s32 0, %v407
        %v409 = vsel %vm403, %v408, %v407
        %vm410 = vcmp.lt.s32.totalorder %v354, 0
        %v411 = vsub.s32 0, %v354
        %v412 = vsel %vm410, %v411, %v354
        %v413 = vshrl.u32 %v412, 4
        %v414 = vand.u32 %v412, 15
        %v415 = vsub.s32 0, %v414
        %v416 = vsel %vm410, %v415, %v414
        %vm417 = vcmp.lt.s32.totalorder %v355, 0
        %v418 = vsub.s32 0, %v355
        %v419 = vsel %vm417, %v418, %v355
        %v420 = vshrl.u32 %v419, 4
        %v421 = vand.u32 %v419, 15
        %v422 = vsub.s32 0, %v421
        %v423 = vsel %vm417, %v422, %v421
        %vm424 = vcmp.lt.s32.totalorder %v356, 0
        %v425 = vsub.s32 0, %v356
        %v426 = vsel %vm424, %v425, %v356
        %v427 = vshrl.u32 %v426, 4
        %v428 = vand.u32 %v426, 15
        %v429 = vsub.s32 0, %v428
        %v430 = vsel %vm424, %v429, %v428
        %vm431 = vcmp.lt.s32.totalorder %v357, 0
        %v432 = vsub.s32 0, %v357
        %v433 = vsel %vm431, %v432, %v357
        %v434 = vshrl.u32 %v433, 4
        %v435 = vand.u32 %v433, 15
        %v436 = vsub.s32 0, %v435
        %v437 = vsel %vm431, %v436, %v435
        %vm438 = vcmp.lt.s32.totalorder %v358, 0
        %v439 = vsub.s32 0, %v358
        %v440 = vsel %vm438, %v439, %v358
        %v441 = vshrl.u32 %v440, 4
        %v442 = vand.u32 %v440, 15
        %v443 = vsub.s32 0, %v442
        %v444 = vsel %vm438, %v443, %v442
        %vm445 = vcmp.lt.s32.totalorder %v359, 0
        %v446 = vsub.s32 0, %v359
        %v447 = vsel %vm445, %v446, %v359
        %v448 = vshrl.u32 %v447, 4
        %v449 = vand.u32 %v447, 15
        %v450 = vsub.s32 0, %v449
        %v451 = vsel %vm445, %v450, %v449
        %vm452 = vcmp.lt.s32.totalorder %v360, 0
        %v453 = vsub.s32 0, %v360
        %v454 = vsel %vm452, %v453, %v360
        %v455 = vshrl.u32 %v454, 4
        %v456 = vand.u32 %v454, 15
        %v457 = vsub.s32 0, %v456
        %v458 = vsel %vm452, %v457, %v456
        %vm459 = vcmp.lt.s32.totalorder %v361, 0
        %v460 = vsub.s32 0, %v361
        %v461 = vsel %vm459, %v460, %v361
        %v462 = vshrl.u32 %v461, 4
        %v463 = vand.u32 %v461, 15
        %v464 = vsub.s32 0, %v463
        %v465 = vsel %vm459, %v464, %v463
        %vm466 = vcmp.lt.s32.totalorder %v362, 0
        %v467 = vsub.s32 0, %v362
        %v468 = vsel %vm466, %v467, %v362
        %v469 = vshrl.u32 %v468, 4
        %v470 = vand.u32 %v468, 15
        %v471 = vsub.s32 0, %v470
        %v472 = vsel %vm466, %v471, %v470
        %vm473 = vcmp.lt.s32.totalorder %v363, 0
        %v474 = vsub.s32 0, %v363
        %v475 = vsel %vm473, %v474, %v363
        %v476 = vshrl.u32 %v475, 4
        %v477 = vand.u32 %v475, 15
        %v478 = vsub.s32 0, %v477
        %v479 = vsel %vm473, %v478, %v477
        %vm480 = vcmp.lt.s32.totalorder %v364, 0
        %v481 = vsub.s32 0, %v364
        %v482 = vsel %vm480, %v481, %v364
        %v483 = vshrl.u32 %v482, 4
        %v484 = vand.u32 %v482, 15
        %v485 = vsub.s32 0, %v484
        %v486 = vsel %vm480, %v485, %v484
        %vm487 = vcmp.lt.s32.totalorder %v365, 0
        %v488 = vsub.s32 0, %v365
        %v489 = vsel %vm487, %v488, %v365
        %v490 = vshrl.u32 %v489, 4
        %v491 = vand.u32 %v489, 15
        %v492 = vsub.s32 0, %v491
        %v493 = vsel %vm487, %v492, %v491
        %vm494 = vcmp.lt.s32.totalorder %v366, 0
        %v495 = vsub.s32 0, %v366
        %v496 = vsel %vm494, %v495, %v366
        %v497 = vshrl.u32 %v496, 4
        %v498 = vand.u32 %v496, 15
        %v499 = vsub.s32 0, %v498
        %v500 = vsel %vm494, %v499, %v498
        %vm501 = vcmp.lt.s32.totalorder %v367, 0
        %v502 = vsub.s32 0, %v367
        %v503 = vsel %vm501, %v502, %v367
        %v504 = vshrl.u32 %v503, 4
        %v505 = vand.u32 %v503, 15
        %v506 = vsub.s32 0, %v505
        %v507 = vsel %vm501, %v506, %v505
        %vm508 = vcmp.lt.s32.totalorder %v368, 0
        %v509 = vsub.s32 0, %v368
        %v510 = vsel %vm508, %v509, %v368
        %v511 = vshrl.u32 %v510, 4
        %v512 = vand.u32 %v510, 15
        %v513 = vsub.s32 0, %v512
        %v514 = vsel %vm508, %v513, %v512
        %vm515 = vcmp.lt.s32.totalorder %v369, 0
        %v516 = vsub.s32 0, %v369
        %v517 = vsel %vm515, %v516, %v369
        %v518 = vshrl.u32 %v517, 4
        %v519 = vand.u32 %v517, 15
        %v520 = vsub.s32 0, %v519
        %v521 = vsel %vm515, %v520, %v519
        %vm522 = vcmp.lt.s32.totalorder %v370, 0
        %v523 = vsub.s32 0, %v370
        %v524 = vsel %vm522, %v523, %v370
        %v525 = vshrl.u32 %v524, 4
        %v526 = vand.u32 %v524, 15
        %v527 = vsub.s32 0, %v526
        %v528 = vsel %vm522, %v527, %v526
        %vm529 = vcmp.lt.s32.totalorder %v371, 0
        %v530 = vsub.s32 0, %v371
        %v531 = vsel %vm529, %v530, %v371
        %v532 = vshrl.u32 %v531, 4
        %v533 = vand.u32 %v531, 15
        %v534 = vsub.s32 0, %v533
        %v535 = vsel %vm529, %v534, %v533
        %vm536 = vcmp.lt.s32.totalorder %v372, 0
        %v537 = vsub.s32 0, %v372
        %v538 = vsel %vm536, %v537, %v372
        %v539 = vshrl.u32 %v538, 4
        %v540 = vand.u32 %v538, 15
        %v541 = vsub.s32 0, %v540
        %v542 = vsel %vm536, %v541, %v540
        %vm543 = vcmp.lt.s32.totalorder %v373, 0
        %v544 = vsub.s32 0, %v373
        %v545 = vsel %vm543, %v544, %v373
        %v546 = vshrl.u32 %v545, 4
        %v547 = vand.u32 %v545, 15
        %v548 = vsub.s32 0, %v547
        %v549 = vsel %vm543, %v548, %v547
        %vm550 = vcmp.lt.s32.totalorder %v374, 0
        %v551 = vsub.s32 0, %v374
        %v552 = vsel %vm550, %v551, %v374
        %v553 = vshrl.u32 %v552, 4
        %v554 = vand.u32 %v552, 15
        %v555 = vsub.s32 0, %v554
        %v556 = vsel %vm550, %v555, %v554
        %vm557 = vcmp.lt.s32.totalorder %v375, 0
        %v558 = vsub.s32 0, %v375
        %v559 = vsel %vm557, %v558, %v375
        %v560 = vshrl.u32 %v559, 4
        %v561 = vand.u32 %v559, 15
        %v562 = vsub.s32 0, %v561
        %v563 = vsel %vm557, %v562, %v561
        %vm564 = vcmp.lt.s32.totalorder %v376, 0
        %v565 = vsub.s32 0, %v376
        %v566 = vsel %vm564, %v565, %v376
        %v567 = vshrl.u32 %v566, 4
        %v568 = vand.u32 %v566, 15
        %v569 = vsub.s32 0, %v568
        %v570 = vsel %vm564, %v569, %v568
        %vm571 = vcmp.lt.s32.totalorder %v377, 0
        %v572 = vsub.s32 0, %v377
        %v573 = vsel %vm571, %v572, %v377
        %v574 = vshrl.u32 %v573, 4
        %v575 = vand.u32 %v573, 15
        %v576 = vsub.s32 0, %v575
        %v577 = vsel %vm571, %v576, %v575
        %vm578 = vcmp.lt.s32.totalorder %v378, 0
        %v579 = vsub.s32 0, %v378
        %v580 = vsel %vm578, %v579, %v378
        %v581 = vshrl.u32 %v580, 4
        %v582 = vand.u32 %v580, 15
        %v583 = vsub.s32 0, %v582
        %v584 = vsel %vm578, %v583, %v582
        %vm585 = vcmp.lt.s32.totalorder %v379, 0
        %v586 = vsub.s32 0, %v379
        %v587 = vsel %vm585, %v586, %v379
        %v588 = vshrl.u32 %v587, 4
        %v589 = vand.u32 %v587, 15
        %v590 = vsub.s32 0, %v589
        %v591 = vsel %vm585, %v590, %v589
        %vm592 = vcmp.lt.s32.totalorder %v380, 0
        %v593 = vsub.s32 0, %v380
        %v594 = vsel %vm592, %v593, %v380
        %v595 = vshrl.u32 %v594, 4
        %v596 = vand.u32 %v594, 15
        %v597 = vsub.s32 0, %v596
        %v598 = vsel %vm592, %v597, %v596
        %vm599 = vcmp.lt.s32.totalorder %v381, 0
        %v600 = vsub.s32 0, %v381
        %v601 = vsel %vm599, %v600, %v381
        %v602 = vshrl.u32 %v601, 4
        %v603 = vand.u32 %v601, 15
        %v604 = vsub.s32 0, %v603
        %v605 = vsel %vm599, %v604, %v603
        %vm606 = vcmp.ne.s32.totalorder %v388, 0
        %vm607 = vcmp.ne.s32.totalorder %v395, 0
        %vm608 = vcmp.ne.s32.totalorder %v402, 0
        %vm609 = vcmp.ne.s32.totalorder %v409, 0
        %vm610 = vcmp.ne.s32.totalorder %v416, 0
        %vm611 = vcmp.ne.s32.totalorder %v423, 0
        %vm612 = vcmp.ne.s32.totalorder %v430, 0
        %vm613 = vcmp.ne.s32.totalorder %v437, 0
        %vm614 = vcmp.ne.s32.totalorder %v444, 0
        %vm615 = vcmp.ne.s32.totalorder %v451, 0
        %vm616 = vcmp.ne.s32.totalorder %v458, 0
        %vm617 = vcmp.ne.s32.totalorder %v465, 0
        %vm618 = vcmp.ne.s32.totalorder %v472, 0
        %vm619 = vcmp.ne.s32.totalorder %v479, 0
        %vm620 = vcmp.ne.s32.totalorder %v486, 0
        %vm621 = vcmp.ne.s32.totalorder %v493, 0
        %vm622 = vcmp.ne.s32.totalorder %v500, 0
        %vm623 = vcmp.ne.s32.totalorder %v507, 0
        %vm624 = vcmp.ne.s32.totalorder %v514, 0
        %vm625 = vcmp.ne.s32.totalorder %v521, 0
        %vm626 = vcmp.ne.s32.totalorder %v528, 0
        %vm627 = vcmp.ne.s32.totalorder %v535, 0
        %vm628 = vcmp.ne.s32.totalorder %v542, 0
        %vm629 = vcmp.ne.s32.totalorder %v549, 0
        %vm630 = vcmp.ne.s32.totalorder %v556, 0
        %vm631 = vcmp.ne.s32.totalorder %v563, 0
        %vm632 = vcmp.ne.s32.totalorder %v570, 0
        %vm633 = vcmp.ne.s32.totalorder %v577, 0
        %vm634 = vcmp.ne.s32.totalorder %v584, 0
        %vm635 = vcmp.ne.s32.totalorder %v591, 0
        %vm636 = vcmp.ne.s32.totalorder %v598, 0
        %vm637 = vcmp.ne.s32.totalorder %v605, 0
        %vm638 = vcmp.lt.s32.totalorder %v388, 0
        %vm639 = vcmp.lt.s32.totalorder %v395, 0
        %vm640 = vcmp.lt.s32.totalorder %v402, 0
        %vm641 = vcmp.lt.s32.totalorder %v409, 0
        %vm642 = vcmp.lt.s32.totalorder %v416, 0
        %vm643 = vcmp.lt.s32.totalorder %v423, 0
        %vm644 = vcmp.lt.s32.totalorder %v430, 0
        %vm645 = vcmp.lt.s32.totalorder %v437, 0
        %vm646 = vcmp.lt.s32.totalorder %v444, 0
        %vm647 = vcmp.lt.s32.totalorder %v451, 0
        %vm648 = vcmp.lt.s32.totalorder %v458, 0
        %vm649 = vcmp.lt.s32.totalorder %v465, 0
        %vm650 = vcmp.lt.s32.totalorder %v472, 0
        %vm651 = vcmp.lt.s32.totalorder %v479, 0
        %vm652 = vcmp.lt.s32.totalorder %v486, 0
        %vm653 = vcmp.lt.s32.totalorder %v493, 0
        %vm654 = vcmp.lt.s32.totalorder %v500, 0
        %vm655 = vcmp.lt.s32.totalorder %v507, 0
        %vm656 = vcmp.lt.s32.totalorder %v514, 0
        %vm657 = vcmp.lt.s32.totalorder %v521, 0
        %vm658 = vcmp.lt.s32.totalorder %v528, 0
        %vm659 = vcmp.lt.s32.totalorder %v535, 0
        %vm660 = vcmp.lt.s32.totalorder %v542, 0
        %vm661 = vcmp.lt.s32.totalorder %v549, 0
        %vm662 = vcmp.lt.s32.totalorder %v556, 0
        %vm663 = vcmp.lt.s32.totalorder %v563, 0
        %vm664 = vcmp.lt.s32.totalorder %v570, 0
        %vm665 = vcmp.lt.s32.totalorder %v577, 0
        %vm666 = vcmp.lt.s32.totalorder %v584, 0
        %vm667 = vcmp.lt.s32.totalorder %v591, 0
        %vm668 = vcmp.lt.s32.totalorder %v598, 0
        %vm669 = vcmp.lt.s32.totalorder %v605, 0
        %vm670 = vmand %vm638, %vm606
        %vm671 = vmand %vm639, %vm607
        %vm672 = vmand %vm640, %vm608
        %vm673 = vmand %vm641, %vm609
        %vm674 = vmand %vm642, %vm610
        %vm675 = vmand %vm643, %vm611
        %vm676 = vmand %vm644, %vm612
        %vm677 = vmand %vm645, %vm613
        %vm678 = vmand %vm646, %vm614
        %vm679 = vmand %vm647, %vm615
        %vm680 = vmand %vm648, %vm616
        %vm681 = vmand %vm649, %vm617
        %vm682 = vmand %vm650, %vm618
        %vm683 = vmand %vm651, %vm619
        %vm684 = vmand %vm652, %vm620
        %vm685 = vmand %vm653, %vm621
        %vm686 = vmand %vm654, %vm622
        %vm687 = vmand %vm655, %vm623
        %vm688 = vmand %vm656, %vm624
        %vm689 = vmand %vm657, %vm625
        %vm690 = vmand %vm658, %vm626
        %vm691 = vmand %vm659, %vm627
        %vm692 = vmand %vm660, %vm628
        %vm693 = vmand %vm661, %vm629
        %vm694 = vmand %vm662, %vm630
        %vm695 = vmand %vm663, %vm631
        %vm696 = vmand %vm664, %vm632
        %vm697 = vmand %vm665, %vm633
        %vm698 = vmand %vm666, %vm634
        %vm699 = vmand %vm667, %vm635
        %vm700 = vmand %vm668, %vm636
        %vm701 = vmand %vm669, %vm637
        %v702 = vadd.s32 %v388, 16
        %v703 = vadd.s32 %v395, 16
        %v704 = vadd.s32 %v402, 16
        %v705 = vadd.s32 %v409, 16
        %v706 = vadd.s32 %v416, 16
        %v707 = vadd.s32 %v423, 16
        %v708 = vadd.s32 %v430, 16
        %v709 = vadd.s32 %v437, 16
        %v710 = vadd.s32 %v444, 16
        %v711 = vadd.s32 %v451, 16
        %v712 = vadd.s32 %v458, 16
        %v713 = vadd.s32 %v465, 16
        %v714 = vadd.s32 %v472, 16
        %v715 = vadd.s32 %v479, 16
        %v716 = vadd.s32 %v486, 16
        %v717 = vadd.s32 %v493, 16
        %v718 = vadd.s32 %v500, 16
        %v719 = vadd.s32 %v507, 16
        %v720 = vadd.s32 %v514, 16
        %v721 = vadd.s32 %v521, 16
        %v722 = vadd.s32 %v528, 16
        %v723 = vadd.s32 %v535, 16
        %v724 = vadd.s32 %v542, 16
        %v725 = vadd.s32 %v549, 16
        %v726 = vadd.s32 %v556, 16
        %v727 = vadd.s32 %v563, 16
        %v728 = vadd.s32 %v570, 16
        %v729 = vadd.s32 %v577, 16
        %v730 = vadd.s32 %v584, 16
        %v731 = vadd.s32 %v591, 16
        %v732 = vadd.s32 %v598, 16
        %v733 = vadd.s32 %v605, 16
        %v734 = vsel %vm670, %v702, %v388
        %v735 = vsel %vm671, %v703, %v395
        %v736 = vsel %vm672, %v704, %v402
        %v737 = vsel %vm673, %v705, %v409
        %v738 = vsel %vm674, %v706, %v416
        %v739 = vsel %vm675, %v707, %v423
        %v740 = vsel %vm676, %v708, %v430
        %v741 = vsel %vm677, %v709, %v437
        %v742 = vsel %vm678, %v710, %v444
        %v743 = vsel %vm679, %v711, %v451
        %v744 = vsel %vm680, %v712, %v458
        %v745 = vsel %vm681, %v713, %v465
        %v746 = vsel %vm682, %v714, %v472
        %v747 = vsel %vm683, %v715, %v479
        %v748 = vsel %vm684, %v716, %v486
        %v749 = vsel %vm685, %v717, %v493
        %v750 = vsel %vm686, %v718, %v500
        %v751 = vsel %vm687, %v719, %v507
        %v752 = vsel %vm688, %v720, %v514
        %v753 = vsel %vm689, %v721, %v521
        %v754 = vsel %vm690, %v722, %v528
        %v755 = vsel %vm691, %v723, %v535
        %v756 = vsel %vm692, %v724, %v542
        %v757 = vsel %vm693, %v725, %v549
        %v758 = vsel %vm694, %v726, %v556
        %v759 = vsel %vm695, %v727, %v563
        %v760 = vsel %vm696, %v728, %v570
        %v761 = vsel %vm697, %v729, %v577
        %v762 = vsel %vm698, %v730, %v584
        %v763 = vsel %vm699, %v731, %v591
        %v764 = vsel %vm700, %v732, %v598
        %v765 = vsel %vm701, %v733, %v605
        %vm766 = vcmp.ne.s32.totalorder %v734, 0
        %vm767 = vcmp.ne.s32.totalorder %v735, 0
        %vm768 = vcmp.ne.s32.totalorder %v736, 0
        %vm769 = vcmp.ne.s32.totalorder %v737, 0
        %vm770 = vcmp.ne.s32.totalorder %v738, 0
        %vm771 = vcmp.ne.s32.totalorder %v739, 0
        %vm772 = vcmp.ne.s32.totalorder %v740, 0
        %vm773 = vcmp.ne.s32.totalorder %v741, 0
        %vm774 = vcmp.ne.s32.totalorder %v742, 0
        %vm775 = vcmp.ne.s32.totalorder %v743, 0
        %vm776 = vcmp.ne.s32.totalorder %v744, 0
        %vm777 = vcmp.ne.s32.totalorder %v745, 0
        %vm778 = vcmp.ne.s32.totalorder %v746, 0
        %vm779 = vcmp.ne.s32.totalorder %v747, 0
        %vm780 = vcmp.ne.s32.totalorder %v748, 0
        %vm781 = vcmp.ne.s32.totalorder %v749, 0
        %vm782 = vcmp.ne.s32.totalorder %v750, 0
        %vm783 = vcmp.ne.s32.totalorder %v751, 0
        %vm784 = vcmp.ne.s32.totalorder %v752, 0
        %vm785 = vcmp.ne.s32.totalorder %v753, 0
        %vm786 = vcmp.ne.s32.totalorder %v754, 0
        %vm787 = vcmp.ne.s32.totalorder %v755, 0
        %vm788 = vcmp.ne.s32.totalorder %v756, 0
        %vm789 = vcmp.ne.s32.totalorder %v757, 0
        %vm790 = vcmp.ne.s32.totalorder %v758, 0
        %vm791 = vcmp.ne.s32.totalorder %v759, 0
        %vm792 = vcmp.ne.s32.totalorder %v760, 0
        %vm793 = vcmp.ne.s32.totalorder %v761, 0
        %vm794 = vcmp.ne.s32.totalorder %v762, 0
        %vm795 = vcmp.ne.s32.totalorder %v763, 0
        %vm796 = vcmp.ne.s32.totalorder %v764, 0
        %vm797 = vcmp.ne.s32.totalorder %v765, 0
        %vm798 = vcmp.ne.s32.totalorder %v734, 15
        %vm799 = vcmp.ne.s32.totalorder %v735, 15
        %vm800 = vcmp.ne.s32.totalorder %v736, 15
        %vm801 = vcmp.ne.s32.totalorder %v737, 15
        %vm802 = vcmp.ne.s32.totalorder %v738, 15
        %vm803 = vcmp.ne.s32.totalorder %v739, 15
        %vm804 = vcmp.ne.s32.totalorder %v740, 15
        %vm805 = vcmp.ne.s32.totalorder %v741, 15
        %vm806 = vcmp.ne.s32.totalorder %v742, 15
        %vm807 = vcmp.ne.s32.totalorder %v743, 15
        %vm808 = vcmp.ne.s32.totalorder %v744, 15
        %vm809 = vcmp.ne.s32.totalorder %v745, 15
        %vm810 = vcmp.ne.s32.totalorder %v746, 15
        %vm811 = vcmp.ne.s32.totalorder %v747, 15
        %vm812 = vcmp.ne.s32.totalorder %v748, 15
        %vm813 = vcmp.ne.s32.totalorder %v749, 15
        %vm814 = vcmp.ne.s32.totalorder %v750, 15
        %vm815 = vcmp.ne.s32.totalorder %v751, 15
        %vm816 = vcmp.ne.s32.totalorder %v752, 15
        %vm817 = vcmp.ne.s32.totalorder %v753, 15
        %vm818 = vcmp.ne.s32.totalorder %v754, 15
        %vm819 = vcmp.ne.s32.totalorder %v755, 15
        %vm820 = vcmp.ne.s32.totalorder %v756, 15
        %vm821 = vcmp.ne.s32.totalorder %v757, 15
        %vm822 = vcmp.ne.s32.totalorder %v758, 15
        %vm823 = vcmp.ne.s32.totalorder %v759, 15
        %vm824 = vcmp.ne.s32.totalorder %v760, 15
        %vm825 = vcmp.ne.s32.totalorder %v761, 15
        %vm826 = vcmp.ne.s32.totalorder %v762, 15
        %vm827 = vcmp.ne.s32.totalorder %v763, 15
        %vm828 = vcmp.ne.s32.totalorder %v764, 15
        %vm829 = vcmp.ne.s32.totalorder %v765, 15
        %vm830 = vcmask 257024
        %831 = vst.msk [vmem:[#allocation2] sm:$0xf] %vm830, 0
        %832 = vst.msk [vmem:[#allocation2 + $0x4] sm:$0xf] %vm830, 0
        %833 = vst.msk [vmem:[#allocation2 + $0x88] sm:$0xf] %vm830, 0
        %834 = vst.msk [vmem:[#allocation2 + $0x8c] sm:$0xf] %vm830, 0
        %v835 = vld [vmem:[%s347] sm:$0xf]
        %v836 = vld [vmem:[%s347 + $0x4] sm:$0xf]
        %v837 = vld [vmem:[%s347 + $0x8] sm:$0xf]
        %v838 = vld [vmem:[%s347 + $0xc] sm:$0xf]
        %v839 = vld [vmem:[%s347 + $0x10] sm:$0xf]
        %v840 = vld [vmem:[%s347 + $0x14] sm:$0xf]
        %v841 = vld [vmem:[%s347 + $0x18] sm:$0xf]
        %v842 = vld [vmem:[%s347 + $0x1c] sm:$0xf]
        %v843 = vld [vmem:[%s347 + $0x20] sm:$0xf]
        %v844 = vld [vmem:[%s347 + $0x24] sm:$0xf]
        %v845 = vld [vmem:[%s347 + $0x28] sm:$0xf]
        %v846 = vld [vmem:[%s347 + $0x2c] sm:$0xf]
        %v847 = vld [vmem:[%s347 + $0x30] sm:$0xf]
        %v848 = vld [vmem:[%s347 + $0x34] sm:$0xf]
        %v849 = vld [vmem:[%s347 + $0x38] sm:$0xf]
        %v850 = vld [vmem:[%s347 + $0x3c] sm:$0xf]
        %v851 = vld [vmem:[%s347 + $0x40] sm:$0xf]
        %v852 = vld [vmem:[%s347 + $0x44] sm:$0xf]
        %v853 = vld [vmem:[%s347 + $0x48] sm:$0xf]
        %v854 = vld [vmem:[%s347 + $0x4c] sm:$0xf]
        %v855 = vld [vmem:[%s347 + $0x50] sm:$0xf]
        %v856 = vld [vmem:[%s347 + $0x54] sm:$0xf]
        %v857 = vld [vmem:[%s347 + $0x58] sm:$0xf]
        %v858 = vld [vmem:[%s347 + $0x5c] sm:$0xf]
        %v859 = vld [vmem:[%s347 + $0x60] sm:$0xf]
        %v860 = vld [vmem:[%s347 + $0x64] sm:$0xf]
        %v861 = vld [vmem:[%s347 + $0x68] sm:$0xf]
        %v862 = vld [vmem:[%s347 + $0x6c] sm:$0xf]
        %v863 = vld [vmem:[%s347 + $0x70] sm:$0xf]
        %v864 = vld [vmem:[%s347 + $0x74] sm:$0xf]
        %v865 = vld [vmem:[%s347 + $0x78] sm:$0xf]
        %v866 = vld [vmem:[%s347 + $0x7c] sm:$0xf]
        %867 = vst.msk [vmem:[#allocation2 + $0x8] sm:$0xf] %vm830, %v835
        %868 = vst.msk [vmem:[#allocation2 + $0xc] sm:$0xf] %vm830, %v836
        %869 = vst.msk [vmem:[#allocation2 + $0x10] sm:$0xf] %vm830, %v837
        %870 = vst.msk [vmem:[#allocation2 + $0x14] sm:$0xf] %vm830, %v838
        %871 = vst.msk [vmem:[#allocation2 + $0x18] sm:$0xf] %vm830, %v839
        %872 = vst.msk [vmem:[#allocation2 + $0x1c] sm:$0xf] %vm830, %v840
        %873 = vst.msk [vmem:[#allocation2 + $0x20] sm:$0xf] %vm830, %v841
        %874 = vst.msk [vmem:[#allocation2 + $0x24] sm:$0xf] %vm830, %v842
        %875 = vst.msk [vmem:[#allocation2 + $0x28] sm:$0xf] %vm830, %v843
        %876 = vst.msk [vmem:[#allocation2 + $0x2c] sm:$0xf] %vm830, %v844
        %877 = vst.msk [vmem:[#allocation2 + $0x30] sm:$0xf] %vm830, %v845
        %878 = vst.msk [vmem:[#allocation2 + $0x34] sm:$0xf] %vm830, %v846
        %879 = vst.msk [vmem:[#allocation2 + $0x38] sm:$0xf] %vm830, %v847
        %880 = vst.msk [vmem:[#allocation2 + $0x3c] sm:$0xf] %vm830, %v848
        %881 = vst.msk [vmem:[#allocation2 + $0x40] sm:$0xf] %vm830, %v849
        %882 = vst.msk [vmem:[#allocation2 + $0x44] sm:$0xf] %vm830, %v850
        %883 = vst.msk [vmem:[#allocation2 + $0x48] sm:$0xf] %vm830, %v851
        %884 = vst.msk [vmem:[#allocation2 + $0x4c] sm:$0xf] %vm830, %v852
        %885 = vst.msk [vmem:[#allocation2 + $0x50] sm:$0xf] %vm830, %v853
        %886 = vst.msk [vmem:[#allocation2 + $0x54] sm:$0xf] %vm830, %v854
        %887 = vst.msk [vmem:[#allocation2 + $0x58] sm:$0xf] %vm830, %v855
        %888 = vst.msk [vmem:[#allocation2 + $0x5c] sm:$0xf] %vm830, %v856
        %889 = vst.msk [vmem:[#allocation2 + $0x60] sm:$0xf] %vm830, %v857
        %890 = vst.msk [vmem:[#allocation2 + $0x64] sm:$0xf] %vm830, %v858
        %891 = vst.msk [vmem:[#allocation2 + $0x68] sm:$0xf] %vm830, %v859
        %892 = vst.msk [vmem:[#allocation2 + $0x6c] sm:$0xf] %vm830, %v860
        %893 = vst.msk [vmem:[#allocation2 + $0x70] sm:$0xf] %vm830, %v861
        %894 = vst.msk [vmem:[#allocation2 + $0x74] sm:$0xf] %vm830, %v862
        %895 = vst.msk [vmem:[#allocation2 + $0x78] sm:$0xf] %vm830, %v863
        %896 = vst.msk [vmem:[#allocation2 + $0x7c] sm:$0xf] %vm830, %v864
        %897 = vst.msk [vmem:[#allocation2 + $0x80] sm:$0xf] %vm830, %v865
        %898 = vst.msk [vmem:[#allocation2 + $0x84] sm:$0xf] %vm830, %v866
        %v899 = vld [vmem:[%s7] sm:$0xff]
        %v900 = vld [vmem:[%s7 + $0x8] sm:$0xff]
        %v901 = vld [vmem:[%s7 + $0x10] sm:$0xff]
        %v902 = vld [vmem:[%s7 + $0x18] sm:$0xff]
        %v903 = vld [vmem:[%s8] sm:$0xff]
        %v904 = vld [vmem:[%s8 + $0x8] sm:$0xff]
        loop: start=0, step=1, limit=3
        $region61: #{tpu_custom_call.1} parent=55 // loop_pre_header
          _
        $region62: #{tpu_custom_call.1} parent=55 // loop_header
          %s906 = sphi 0, %s910
          %p907 = scmp.ge.s32.totalorder %s906, 3
        $region63: #{tpu_custom_call.1} parent=55 // loop_header_branch
          %909 = sbr.rel (%p907) target = $region67
        $region64: #{tpu_custom_call.1} parent=55 // loop_body
          %v911 = vld [vmem:[#allocation2] sm:$0xf]
          %v912 = vld [vmem:[#allocation2 + $0x4] sm:$0xf]
          %v913 = vld [vmem:[#allocation2 + $0x8] sm:$0xf]
          %v914 = vld [vmem:[#allocation2 + $0xc] sm:$0xf]
          %v915 = vld [vmem:[#allocation2 + $0x10] sm:$0xf]
          %v916 = vld [vmem:[#allocation2 + $0x14] sm:$0xf]
          %v917 = vld [vmem:[#allocation2 + $0x18] sm:$0xf]
          %v918 = vld [vmem:[#allocation2 + $0x1c] sm:$0xf]
          %v919 = vld [vmem:[#allocation2 + $0x20] sm:$0xf]
          %v920 = vld [vmem:[#allocation2 + $0x24] sm:$0xf]
          %v921 = vld [vmem:[#allocation2 + $0x28] sm:$0xf]
          %v922 = vld [vmem:[#allocation2 + $0x2c] sm:$0xf]
          %v923 = vld [vmem:[#allocation2 + $0x30] sm:$0xf]
          %v924 = vld [vmem:[#allocation2 + $0x34] sm:$0xf]
          %v925 = vld [vmem:[#allocation2 + $0x38] sm:$0xf]
          %v926 = vld [vmem:[#allocation2 + $0x3c] sm:$0xf]
          %v927 = vld [vmem:[#allocation2 + $0x40] sm:$0xf]
          %v928 = vld [vmem:[#allocation2 + $0x44] sm:$0xf]
          %v929 = vld [vmem:[#allocation2 + $0x48] sm:$0xf]
          %v930 = vld [vmem:[#allocation2 + $0x4c] sm:$0xf]
          %v931 = vld [vmem:[#allocation2 + $0x50] sm:$0xf]
          %v932 = vld [vmem:[#allocation2 + $0x54] sm:$0xf]
          %v933 = vld [vmem:[#allocation2 + $0x58] sm:$0xf]
          %v934 = vld [vmem:[#allocation2 + $0x5c] sm:$0xf]
          %v935 = vld [vmem:[#allocation2 + $0x60] sm:$0xf]
          %v936 = vld [vmem:[#allocation2 + $0x64] sm:$0xf]
          %v937 = vld [vmem:[#allocation2 + $0x68] sm:$0xf]
          %v938 = vld [vmem:[#allocation2 + $0x6c] sm:$0xf]
          %v939 = vld [vmem:[#allocation2 + $0x70] sm:$0xf]
          %v940 = vld [vmem:[#allocation2 + $0x74] sm:$0xf]
          %v941 = vld [vmem:[#allocation2 + $0x78] sm:$0xf]
          %v942 = vld [vmem:[#allocation2 + $0x7c] sm:$0xf]
          %s943 = smul.u32 %s906, 9
          %s944 = smul.u32 %s943, 4
          %s945 = smul.addr %s944, 4
          %s946 = scalar_lea.vmem [#allocation3], %s945
          %v947 = vld [vmem:[%s946] sm:$0xf]
          %v948 = vld [vmem:[%s946 + $0x4] sm:$0xf]
          %v949 = vld [vmem:[%s946 + $0x8] sm:$0xf]
          %v950 = vld [vmem:[%s946 + $0xc] sm:$0xf]
          %v951 = vld [vmem:[#allocation2 + $0x80] sm:$0xf]
          %v952 = vld [vmem:[#allocation2 + $0x84] sm:$0xf]
          %s953 = sadd.s32 %s943, 3
          %s954 = smul.u32 %s953, 4
          %s955 = smul.addr %s954, 4
          %s956 = scalar_lea.vmem [#allocation3], %s955
          %v957 = vld [vmem:[%s956] sm:$0xf]
          %v958 = vld [vmem:[%s956 + $0x4] sm:$0xf]
          %v959 = vld [vmem:[%s956 + $0x8] sm:$0xf]
          %v960 = vld [vmem:[%s956 + $0xc] sm:$0xf]
          %v993 = vunpack.c.l.b16 %v913
          %v994 = vunpack.c.l.b16 %v914
          %v995 = vunpack.c.l.b16 %v915
          %v996 = vunpack.c.l.b16 %v916
          %v997 = vunpack.c.l.b16 %v917
          %v998 = vunpack.c.l.b16 %v918
          %v999 = vunpack.c.l.b16 %v919
          %v1000 = vunpack.c.l.b16 %v920
          %v1001 = vunpack.c.l.b16 %v921
          %v1002 = vunpack.c.l.b16 %v922
          %v1003 = vunpack.c.l.b16 %v923
          %v1004 = vunpack.c.l.b16 %v924
          %v1005 = vunpack.c.l.b16 %v925
          %v1006 = vunpack.c.l.b16 %v926
          %v1007 = vunpack.c.l.b16 %v927
          %v1008 = vunpack.c.l.b16 %v928
          %v1009 = vunpack.c.l.b16 %v929
          %v1010 = vunpack.c.l.b16 %v930
          %v1011 = vunpack.c.l.b16 %v931
          %v1012 = vunpack.c.l.b16 %v932
          %v1013 = vunpack.c.l.b16 %v933
          %v1014 = vunpack.c.l.b16 %v934
          %v1015 = vunpack.c.l.b16 %v935
          %v1016 = vunpack.c.l.b16 %v936
          %v1017 = vunpack.c.l.b16 %v937
          %v1018 = vunpack.c.l.b16 %v938
          %v1019 = vunpack.c.l.b16 %v939
          %v1020 = vunpack.c.l.b16 %v940
          %v1021 = vunpack.c.l.b16 %v941
          %v1022 = vunpack.c.l.b16 %v942
          %v1023 = vunpack.c.l.b16 %v951
          %v1024 = vunpack.c.l.b16 %v952
          %v1025 = vpack.c.b16 %v994, %v993
          %v1026 = vpack.c.b16 %v996, %v995
          %v1027 = vpack.c.b16 %v998, %v997
          %v1028 = vpack.c.b16 %v1000, %v999
          %v1029 = vpack.c.b16 %v1002, %v1001
          %v1030 = vpack.c.b16 %v1004, %v1003
          %v1031 = vpack.c.b16 %v1006, %v1005
          %v1032 = vpack.c.b16 %v1008, %v1007
          %v1033 = vpack.c.b16 %v1010, %v1009
          %v1034 = vpack.c.b16 %v1012, %v1011
          %v1035 = vpack.c.b16 %v1014, %v1013
          %v1036 = vpack.c.b16 %v1016, %v1015
          %v1037 = vpack.c.b16 %v1018, %v1017
          %v1038 = vpack.c.b16 %v1020, %v1019
          %v1039 = vpack.c.b16 %v1022, %v1021
          %v1040 = vpack.c.b16 %v1024, %v1023
          %v1045 = vunpack.c.l.b16 %v957
          %v1046 = vunpack.c.l.b16 %v958
          %v1047 = vunpack.c.l.b16 %v959
          %v1048 = vunpack.c.l.b16 %v960
          %v1049 = vpack.c.b16 %v1046, %v1045
          %v1050 = vpack.c.b16 %v1048, %v1047
          %vm1053 = vcmask 261120
          %v1055 = vsel %vm1053, %v1025, 0
          %v1058 = vsel %vm1053, %v1026, 0
          %v1061 = vsel %vm1053, %v1027, 0
          %v1064 = vsel %vm1053, %v1028, 0
          %v1067 = vsel %vm1053, %v1029, 0
          %v1070 = vsel %vm1053, %v1030, 0
          %v1073 = vsel %vm1053, %v1031, 0
          %v1076 = vsel %vm1053, %v1032, 0
          %v1079 = vsel %vm1053, %v1033, 0
          %v1082 = vsel %vm1053, %v1034, 0
          %v1085 = vsel %vm1053, %v1035, 0
          %v1088 = vsel %vm1053, %v1036, 0
          %v1091 = vsel %vm1053, %v1037, 0
          %v1094 = vsel %vm1053, %v1038, 0
          %v1097 = vsel %vm1053, %v1039, 0
          %v1100 = vsel %vm1053, %v1040, 0
          %1102 = vmatpush.bf16.msra.mxu0 0
          %1103 = vmatpush.bf16.msra.mxu0 0
          %1104 = vmatpush.bf16.msra.mxu0 0
          %1105 = vmatpush.bf16.msra.mxu0 0
          %1106 = vmatpush.bf16.msra.mxu0 0
          %1107 = vmatpush.bf16.msra.mxu0 0
          %1108 = vmatpush.bf16.msra.mxu0 %v1050
          %1109 = vmatpush.bf16.msra.mxu0 %v1049
          %1110 = vmatmul.bf16.gmra.mxu0 %v1055
          %v1111 = vpop.f32.mrf.mxu0
          %v1112 = vadd.f32 0.0, %v1111
          %v1113 = vpop.f32.mrf.mxu0
          %v1114 = vadd.f32 0.0, %v1113
          %1115 = vmatmul.bf16.gmra.mxu0 %v1058
          %v1116 = vpop.f32.mrf.mxu0
          %v1117 = vadd.f32 0.0, %v1116
          %v1118 = vpop.f32.mrf.mxu0
          %v1119 = vadd.f32 0.0, %v1118
          %1120 = vmatmul.bf16.gmra.mxu0 %v1061
          %v1121 = vpop.f32.mrf.mxu0
          %v1122 = vadd.f32 0.0, %v1121
          %v1123 = vpop.f32.mrf.mxu0
          %v1124 = vadd.f32 0.0, %v1123
          %1125 = vmatmul.bf16.gmra.mxu0 %v1064
          %v1126 = vpop.f32.mrf.mxu0
          %v1127 = vadd.f32 0.0, %v1126
          %v1128 = vpop.f32.mrf.mxu0
          %v1129 = vadd.f32 0.0, %v1128
          %1130 = vmatmul.bf16.gmra.mxu0 %v1067
          %v1131 = vpop.f32.mrf.mxu0
          %v1132 = vadd.f32 0.0, %v1131
          %v1133 = vpop.f32.mrf.mxu0
          %v1134 = vadd.f32 0.0, %v1133
          %1135 = vmatmul.bf16.gmra.mxu0 %v1070
          %v1136 = vpop.f32.mrf.mxu0
          %v1137 = vadd.f32 0.0, %v1136
          %v1138 = vpop.f32.mrf.mxu0
          %v1139 = vadd.f32 0.0, %v1138
          %1140 = vmatmul.bf16.gmra.mxu0 %v1073
          %v1141 = vpop.f32.mrf.mxu0
          %v1142 = vadd.f32 0.0, %v1141
          %v1143 = vpop.f32.mrf.mxu0
          %v1144 = vadd.f32 0.0, %v1143
          %1145 = vmatmul.bf16.gmra.mxu0 %v1076
          %v1146 = vpop.f32.mrf.mxu0
          %v1147 = vadd.f32 0.0, %v1146
          %v1148 = vpop.f32.mrf.mxu0
          %v1149 = vadd.f32 0.0, %v1148
          %1150 = vmatmul.bf16.gmra.mxu0 %v1079
          %v1151 = vpop.f32.mrf.mxu0
          %v1152 = vadd.f32 0.0, %v1151
          %v1153 = vpop.f32.mrf.mxu0
          %v1154 = vadd.f32 0.0, %v1153
          %1155 = vmatmul.bf16.gmra.mxu0 %v1082
          %v1156 = vpop.f32.mrf.mxu0
          %v1157 = vadd.f32 0.0, %v1156
          %v1158 = vpop.f32.mrf.mxu0
          %v1159 = vadd.f32 0.0, %v1158
          %1160 = vmatmul.bf16.gmra.mxu0 %v1085
          %v1161 = vpop.f32.mrf.mxu0
          %v1162 = vadd.f32 0.0, %v1161
          %v1163 = vpop.f32.mrf.mxu0
          %v1164 = vadd.f32 0.0, %v1163
          %1165 = vmatmul.bf16.gmra.mxu0 %v1088
          %v1166 = vpop.f32.mrf.mxu0
          %v1167 = vadd.f32 0.0, %v1166
          %v1168 = vpop.f32.mrf.mxu0
          %v1169 = vadd.f32 0.0, %v1168
          %1170 = vmatmul.bf16.gmra.mxu0 %v1091
          %v1171 = vpop.f32.mrf.mxu0
          %v1172 = vadd.f32 0.0, %v1171
          %v1173 = vpop.f32.mrf.mxu0
          %v1174 = vadd.f32 0.0, %v1173
          %1175 = vmatmul.bf16.gmra.mxu0 %v1094
          %v1176 = vpop.f32.mrf.mxu0
          %v1177 = vadd.f32 0.0, %v1176
          %v1178 = vpop.f32.mrf.mxu0
          %v1179 = vadd.f32 0.0, %v1178
          %1180 = vmatmul.bf16.gmra.mxu0 %v1097
          %v1181 = vpop.f32.mrf.mxu0
          %v1182 = vadd.f32 0.0, %v1181
          %v1183 = vpop.f32.mrf.mxu0
          %v1184 = vadd.f32 0.0, %v1183
          %1185 = vmatmul.bf16.gmra.mxu0 %v1100
          %v1186 = vpop.f32.mrf.mxu0
          %v1187 = vadd.f32 0.0, %v1186
          %v1188 = vpop.f32.mrf.mxu0
          %v1189 = vadd.f32 0.0, %v1188
          %1190 = vdwg.mxu0
          %v1193 = vunpack.c.l.b16 %v911
          %v1194 = vunpack.c.l.b16 %v912
          %v1195 = vpack.c.b16 %v1194, %v1193
          %v1200 = vunpack.c.l.b16 %v947
          %v1201 = vunpack.c.l.b16 %v948
          %v1202 = vunpack.c.l.b16 %v949
          %v1203 = vunpack.c.l.b16 %v950
          %v1204 = vpack.c.b16 %v1201, %v1200
          %v1205 = vpack.c.b16 %v1203, %v1202
          %v1209 = vsel %vm1053, %v1195, 0
          %1211 = vmatpush.bf16.msra.mxu0 0
          %1212 = vmatpush.bf16.msra.mxu0 0
          %1213 = vmatpush.bf16.msra.mxu0 0
          %1214 = vmatpush.bf16.msra.mxu0 0
          %1215 = vmatpush.bf16.msra.mxu0 0
          %1216 = vmatpush.bf16.msra.mxu0 0
          %1217 = vmatpush.bf16.msra.mxu0 %v1205
          %1218 = vmatpush.bf16.msra.mxu0 %v1204
          %1219 = vmatmul.bf16.gmra.mxu0 %v1209
          %v1220 = vpop.f32.mrf.mxu0
          %v1221 = vadd.f32 %v1112, %v1220
          %v1222 = vpop.f32.mrf.mxu0
          %v1223 = vadd.f32 %v1114, %v1222
          %1224 = vmatmul.bf16.gmra.mxu0 %v1055
          %v1225 = vpop.f32.mrf.mxu0
          %v1226 = vadd.f32 %v1117, %v1225
          %v1227 = vpop.f32.mrf.mxu0
          %v1228 = vadd.f32 %v1119, %v1227
          %1229 = vmatmul.bf16.gmra.mxu0 %v1058
          %v1230 = vpop.f32.mrf.mxu0
          %v1231 = vadd.f32 %v1122, %v1230
          %v1232 = vpop.f32.mrf.mxu0
          %v1233 = vadd.f32 %v1124, %v1232
          %1234 = vmatmul.bf16.gmra.mxu0 %v1061
          %v1235 = vpop.f32.mrf.mxu0
          %v1236 = vadd.f32 %v1127, %v1235
          %v1237 = vpop.f32.mrf.mxu0
          %v1238 = vadd.f32 %v1129, %v1237
          %1239 = vmatmul.bf16.gmra.mxu0 %v1064
          %v1240 = vpop.f32.mrf.mxu0
          %v1241 = vadd.f32 %v1132, %v1240
          %v1242 = vpop.f32.mrf.mxu0
          %v1243 = vadd.f32 %v1134, %v1242
          %1244 = vmatmul.bf16.gmra.mxu0 %v1067
          %v1245 = vpop.f32.mrf.mxu0
          %v1246 = vadd.f32 %v1137, %v1245
          %v1247 = vpop.f32.mrf.mxu0
          %v1248 = vadd.f32 %v1139, %v1247
          %1249 = vmatmul.bf16.gmra.mxu0 %v1070
          %v1250 = vpop.f32.mrf.mxu0
          %v1251 = vadd.f32 %v1142, %v1250
          %v1252 = vpop.f32.mrf.mxu0
          %v1253 = vadd.f32 %v1144, %v1252
          %1254 = vmatmul.bf16.gmra.mxu0 %v1073
          %v1255 = vpop.f32.mrf.mxu0
          %v1256 = vadd.f32 %v1147, %v1255
          %v1257 = vpop.f32.mrf.mxu0
          %v1258 = vadd.f32 %v1149, %v1257
          %1259 = vmatmul.bf16.gmra.mxu0 %v1076
          %v1260 = vpop.f32.mrf.mxu0
          %v1261 = vadd.f32 %v1152, %v1260
          %v1262 = vpop.f32.mrf.mxu0
          %v1263 = vadd.f32 %v1154, %v1262
          %1264 = vmatmul.bf16.gmra.mxu0 %v1079
          %v1265 = vpop.f32.mrf.mxu0
          %v1266 = vadd.f32 %v1157, %v1265
          %v1267 = vpop.f32.mrf.mxu0
          %v1268 = vadd.f32 %v1159, %v1267
          %1269 = vmatmul.bf16.gmra.mxu0 %v1082
          %v1270 = vpop.f32.mrf.mxu0
          %v1271 = vadd.f32 %v1162, %v1270
          %v1272 = vpop.f32.mrf.mxu0
          %v1273 = vadd.f32 %v1164, %v1272
          %1274 = vmatmul.bf16.gmra.mxu0 %v1085
          %v1275 = vpop.f32.mrf.mxu0
          %v1276 = vadd.f32 %v1167, %v1275
          %v1277 = vpop.f32.mrf.mxu0
          %v1278 = vadd.f32 %v1169, %v1277
          %1279 = vmatmul.bf16.gmra.mxu0 %v1088
          %v1280 = vpop.f32.mrf.mxu0
          %v1281 = vadd.f32 %v1172, %v1280
          %v1282 = vpop.f32.mrf.mxu0
          %v1283 = vadd.f32 %v1174, %v1282
          %1284 = vmatmul.bf16.gmra.mxu0 %v1091
          %v1285 = vpop.f32.mrf.mxu0
          %v1286 = vadd.f32 %v1177, %v1285
          %v1287 = vpop.f32.mrf.mxu0
          %v1288 = vadd.f32 %v1179, %v1287
          %1289 = vmatmul.bf16.gmra.mxu0 %v1094
          %v1290 = vpop.f32.mrf.mxu0
          %v1291 = vadd.f32 %v1182, %v1290
          %v1292 = vpop.f32.mrf.mxu0
          %v1293 = vadd.f32 %v1184, %v1292
          %1294 = vmatmul.bf16.gmra.mxu0 %v1097
          %v1295 = vpop.f32.mrf.mxu0
          %v1296 = vadd.f32 %v1187, %v1295
          %v1297 = vpop.f32.mrf.mxu0
          %v1298 = vadd.f32 %v1189, %v1297
          %1299 = vdwg.mxu0
          %v1300 = vld [vmem:[#allocation2 + $0x10] sm:$0xf]
          %v1301 = vld [vmem:[#allocation2 + $0x14] sm:$0xf]
          %v1302 = vld [vmem:[#allocation2 + $0x18] sm:$0xf]
          %v1303 = vld [vmem:[#allocation2 + $0x1c] sm:$0xf]
          %v1304 = vld [vmem:[#allocation2 + $0x20] sm:$0xf]
          %v1305 = vld [vmem:[#allocation2 + $0x24] sm:$0xf]
          %v1306 = vld [vmem:[#allocation2 + $0x28] sm:$0xf]
          %v1307 = vld [vmem:[#allocation2 + $0x2c] sm:$0xf]
          %v1308 = vld [vmem:[#allocation2 + $0x30] sm:$0xf]
          %v1309 = vld [vmem:[#allocation2 + $0x34] sm:$0xf]
          %v1310 = vld [vmem:[#allocation2 + $0x38] sm:$0xf]
          %v1311 = vld [vmem:[#allocation2 + $0x3c] sm:$0xf]
          %v1312 = vld [vmem:[#allocation2 + $0x40] sm:$0xf]
          %v1313 = vld [vmem:[#allocation2 + $0x44] sm:$0xf]
          %v1314 = vld [vmem:[#allocation2 + $0x48] sm:$0xf]
          %v1315 = vld [vmem:[#allocation2 + $0x4c] sm:$0xf]
          %v1316 = vld [vmem:[#allocation2 + $0x50] sm:$0xf]
          %v1317 = vld [vmem:[#allocation2 + $0x54] sm:$0xf]
          %v1318 = vld [vmem:[#allocation2 + $0x58] sm:$0xf]
          %v1319 = vld [vmem:[#allocation2 + $0x5c] sm:$0xf]
          %v1320 = vld [vmem:[#allocation2 + $0x60] sm:$0xf]
          %v1321 = vld [vmem:[#allocation2 + $0x64] sm:$0xf]
          %v1322 = vld [vmem:[#allocation2 + $0x68] sm:$0xf]
          %v1323 = vld [vmem:[#allocation2 + $0x6c] sm:$0xf]
          %v1324 = vld [vmem:[#allocation2 + $0x70] sm:$0xf]
          %v1325 = vld [vmem:[#allocation2 + $0x74] sm:$0xf]
          %v1326 = vld [vmem:[#allocation2 + $0x78] sm:$0xf]
          %v1327 = vld [vmem:[#allocation2 + $0x7c] sm:$0xf]
          %v1328 = vld [vmem:[#allocation2 + $0x80] sm:$0xf]
          %v1329 = vld [vmem:[#allocation2 + $0x84] sm:$0xf]
          %v1330 = vld [vmem:[#allocation2 + $0x88] sm:$0xf]
          %v1331 = vld [vmem:[#allocation2 + $0x8c] sm:$0xf]
          %s1332 = sadd.s32 %s943, 6
          %s1333 = smul.u32 %s1332, 4
          %s1334 = smul.addr %s1333, 4
          %s1335 = scalar_lea.vmem [#allocation3], %s1334
          %v1336 = vld [vmem:[%s1335] sm:$0xf]
          %v1337 = vld [vmem:[%s1335 + $0x4] sm:$0xf]
          %v1338 = vld [vmem:[%s1335 + $0x8] sm:$0xf]
          %v1339 = vld [vmem:[%s1335 + $0xc] sm:$0xf]
          %v1372 = vunpack.c.l.b16 %v1300
          %v1373 = vunpack.c.l.b16 %v1301
          %v1374 = vunpack.c.l.b16 %v1302
          %v1375 = vunpack.c.l.b16 %v1303
          %v1376 = vunpack.c.l.b16 %v1304
          %v1377 = vunpack.c.l.b16 %v1305
          %v1378 = vunpack.c.l.b16 %v1306
          %v1379 = vunpack.c.l.b16 %v1307
          %v1380 = vunpack.c.l.b16 %v1308
          %v1381 = vunpack.c.l.b16 %v1309
          %v1382 = vunpack.c.l.b16 %v1310
          %v1383 = vunpack.c.l.b16 %v1311
          %v1384 = vunpack.c.l.b16 %v1312
          %v1385 = vunpack.c.l.b16 %v1313
          %v1386 = vunpack.c.l.b16 %v1314
          %v1387 = vunpack.c.l.b16 %v1315
          %v1388 = vunpack.c.l.b16 %v1316
          %v1389 = vunpack.c.l.b16 %v1317
          %v1390 = vunpack.c.l.b16 %v1318
          %v1391 = vunpack.c.l.b16 %v1319
          %v1392 = vunpack.c.l.b16 %v1320
          %v1393 = vunpack.c.l.b16 %v1321
          %v1394 = vunpack.c.l.b16 %v1322
          %v1395 = vunpack.c.l.b16 %v1323
          %v1396 = vunpack.c.l.b16 %v1324
          %v1397 = vunpack.c.l.b16 %v1325
          %v1398 = vunpack.c.l.b16 %v1326
          %v1399 = vunpack.c.l.b16 %v1327
          %v1400 = vunpack.c.l.b16 %v1328
          %v1401 = vunpack.c.l.b16 %v1329
          %v1402 = vunpack.c.l.b16 %v1330
          %v1403 = vunpack.c.l.b16 %v1331
          %v1404 = vpack.c.b16 %v1373, %v1372
          %v1405 = vpack.c.b16 %v1375, %v1374
          %v1406 = vpack.c.b16 %v1377, %v1376
          %v1407 = vpack.c.b16 %v1379, %v1378
          %v1408 = vpack.c.b16 %v1381, %v1380
          %v1409 = vpack.c.b16 %v1383, %v1382
          %v1410 = vpack.c.b16 %v1385, %v1384
          %v1411 = vpack.c.b16 %v1387, %v1386
          %v1412 = vpack.c.b16 %v1389, %v1388
          %v1413 = vpack.c.b16 %v1391, %v1390
          %v1414 = vpack.c.b16 %v1393, %v1392
          %v1415 = vpack.c.b16 %v1395, %v1394
          %v1416 = vpack.c.b16 %v1397, %v1396
          %v1417 = vpack.c.b16 %v1399, %v1398
          %v1418 = vpack.c.b16 %v1401, %v1400
          %v1419 = vpack.c.b16 %v1403, %v1402
          %v1424 = vunpack.c.l.b16 %v1336
          %v1425 = vunpack.c.l.b16 %v1337
          %v1426 = vunpack.c.l.b16 %v1338
          %v1427 = vunpack.c.l.b16 %v1339
          %v1428 = vpack.c.b16 %v1425, %v1424
          %v1429 = vpack.c.b16 %v1427, %v1426
          %v1433 = vsel %vm1053, %v1404, 0
          %v1436 = vsel %vm1053, %v1405, 0
          %v1439 = vsel %vm1053, %v1406, 0
          %v1442 = vsel %vm1053, %v1407, 0
          %v1445 = vsel %vm1053, %v1408, 0
          %v1448 = vsel %vm1053, %v1409, 0
          %v1451 = vsel %vm1053, %v1410, 0
          %v1454 = vsel %vm1053, %v1411, 0
          %v1457 = vsel %vm1053, %v1412, 0
          %v1460 = vsel %vm1053, %v1413, 0
          %v1463 = vsel %vm1053, %v1414, 0
          %v1466 = vsel %vm1053, %v1415, 0
          %v1469 = vsel %vm1053, %v1416, 0
          %v1472 = vsel %vm1053, %v1417, 0
          %v1475 = vsel %vm1053, %v1418, 0
          %v1478 = vsel %vm1053, %v1419, 0
          %1480 = vmatpush.bf16.msra.mxu0 0
          %1481 = vmatpush.bf16.msra.mxu0 0
          %1482 = vmatpush.bf16.msra.mxu0 0
          %1483 = vmatpush.bf16.msra.mxu0 0
          %1484 = vmatpush.bf16.msra.mxu0 0
          %1485 = vmatpush.bf16.msra.mxu0 0
          %1486 = vmatpush.bf16.msra.mxu0 %v1429
          %1487 = vmatpush.bf16.msra.mxu0 %v1428
          %1488 = vmatmul.bf16.gmra.mxu0 %v1433
          %v1489 = vpop.f32.mrf.mxu0
          %v1490 = vadd.f32 0.0, %v1489
          %v1491 = vpop.f32.mrf.mxu0
          %v1492 = vadd.f32 0.0, %v1491
          %1493 = vmatmul.bf16.gmra.mxu0 %v1436
          %v1494 = vpop.f32.mrf.mxu0
          %v1495 = vadd.f32 0.0, %v1494
          %v1496 = vpop.f32.mrf.mxu0
          %v1497 = vadd.f32 0.0, %v1496
          %1498 = vmatmul.bf16.gmra.mxu0 %v1439
          %v1499 = vpop.f32.mrf.mxu0
          %v1500 = vadd.f32 0.0, %v1499
          %v1501 = vpop.f32.mrf.mxu0
          %v1502 = vadd.f32 0.0, %v1501
          %1503 = vmatmul.bf16.gmra.mxu0 %v1442
          %v1504 = vpop.f32.mrf.mxu0
          %v1505 = vadd.f32 0.0, %v1504
          %v1506 = vpop.f32.mrf.mxu0
          %v1507 = vadd.f32 0.0, %v1506
          %1508 = vmatmul.bf16.gmra.mxu0 %v1445
          %v1509 = vpop.f32.mrf.mxu0
          %v1510 = vadd.f32 0.0, %v1509
          %v1511 = vpop.f32.mrf.mxu0
          %v1512 = vadd.f32 0.0, %v1511
          %1513 = vmatmul.bf16.gmra.mxu0 %v1448
          %v1514 = vpop.f32.mrf.mxu0
          %v1515 = vadd.f32 0.0, %v1514
          %v1516 = vpop.f32.mrf.mxu0
          %v1517 = vadd.f32 0.0, %v1516
          %1518 = vmatmul.bf16.gmra.mxu0 %v1451
          %v1519 = vpop.f32.mrf.mxu0
          %v1520 = vadd.f32 0.0, %v1519
          %v1521 = vpop.f32.mrf.mxu0
          %v1522 = vadd.f32 0.0, %v1521
          %1523 = vmatmul.bf16.gmra.mxu0 %v1454
          %v1524 = vpop.f32.mrf.mxu0
          %v1525 = vadd.f32 0.0, %v1524
          %v1526 = vpop.f32.mrf.mxu0
          %v1527 = vadd.f32 0.0, %v1526
          %1528 = vmatmul.bf16.gmra.mxu0 %v1457
          %v1529 = vpop.f32.mrf.mxu0
          %v1530 = vadd.f32 0.0, %v1529
          %v1531 = vpop.f32.mrf.mxu0
          %v1532 = vadd.f32 0.0, %v1531
          %1533 = vmatmul.bf16.gmra.mxu0 %v1460
          %v1534 = vpop.f32.mrf.mxu0
          %v1535 = vadd.f32 0.0, %v1534
          %v1536 = vpop.f32.mrf.mxu0
          %v1537 = vadd.f32 0.0, %v1536
          %1538 = vmatmul.bf16.gmra.mxu0 %v1463
          %v1539 = vpop.f32.mrf.mxu0
          %v1540 = vadd.f32 0.0, %v1539
          %v1541 = vpop.f32.mrf.mxu0
          %v1542 = vadd.f32 0.0, %v1541
          %1543 = vmatmul.bf16.gmra.mxu0 %v1466
          %v1544 = vpop.f32.mrf.mxu0
          %v1545 = vadd.f32 0.0, %v1544
          %v1546 = vpop.f32.mrf.mxu0
          %v1547 = vadd.f32 0.0, %v1546
          %1548 = vmatmul.bf16.gmra.mxu0 %v1469
          %v1549 = vpop.f32.mrf.mxu0
          %v1550 = vadd.f32 0.0, %v1549
          %v1551 = vpop.f32.mrf.mxu0
          %v1552 = vadd.f32 0.0, %v1551
          %1553 = vmatmul.bf16.gmra.mxu0 %v1472
          %v1554 = vpop.f32.mrf.mxu0
          %v1555 = vadd.f32 0.0, %v1554
          %v1556 = vpop.f32.mrf.mxu0
          %v1557 = vadd.f32 0.0, %v1556
          %1558 = vmatmul.bf16.gmra.mxu0 %v1475
          %v1559 = vpop.f32.mrf.mxu0
          %v1560 = vadd.f32 0.0, %v1559
          %v1561 = vpop.f32.mrf.mxu0
          %v1562 = vadd.f32 0.0, %v1561
          %1563 = vmatmul.bf16.gmra.mxu0 %v1478
          %v1564 = vpop.f32.mrf.mxu0
          %v1565 = vadd.f32 0.0, %v1564
          %v1566 = vpop.f32.mrf.mxu0
          %v1567 = vadd.f32 0.0, %v1566
          %1568 = vdwg.mxu0
          %v1569 = vadd.f32 %v1221, %v1490
          %v1570 = vadd.f32 %v1223, %v1492
          %v1571 = vadd.f32 %v1226, %v1495
          %v1572 = vadd.f32 %v1228, %v1497
          %v1573 = vadd.f32 %v1231, %v1500
          %v1574 = vadd.f32 %v1233, %v1502
          %v1575 = vadd.f32 %v1236, %v1505
          %v1576 = vadd.f32 %v1238, %v1507
          %v1577 = vadd.f32 %v1241, %v1510
          %v1578 = vadd.f32 %v1243, %v1512
          %v1579 = vadd.f32 %v1246, %v1515
          %v1580 = vadd.f32 %v1248, %v1517
          %v1581 = vadd.f32 %v1251, %v1520
          %v1582 = vadd.f32 %v1253, %v1522
          %v1583 = vadd.f32 %v1256, %v1525
          %v1584 = vadd.f32 %v1258, %v1527
          %v1585 = vadd.f32 %v1261, %v1530
          %v1586 = vadd.f32 %v1263, %v1532
          %v1587 = vadd.f32 %v1266, %v1535
          %v1588 = vadd.f32 %v1268, %v1537
          %v1589 = vadd.f32 %v1271, %v1540
          %v1590 = vadd.f32 %v1273, %v1542
          %v1591 = vadd.f32 %v1276, %v1545
          %v1592 = vadd.f32 %v1278, %v1547
          %v1593 = vadd.f32 %v1281, %v1550
          %v1594 = vadd.f32 %v1283, %v1552
          %v1595 = vadd.f32 %v1286, %v1555
          %v1596 = vadd.f32 %v1288, %v1557
          %v1597 = vadd.f32 %v1291, %v1560
          %v1598 = vadd.f32 %v1293, %v1562
          %v1599 = vadd.f32 %v1296, %v1565
          %v1600 = vadd.f32 %v1298, %v1567
          %v1601 = vrot.slane %v1569, 7
          %v1602 = vrot.slane %v1570, 7
          %v1603 = vrot.slane %v1571, 7
          %v1604 = vrot.slane %v1572, 7
          %v1605 = vrot.slane %v1573, 7
          %v1606 = vrot.slane %v1574, 7
          %v1607 = vrot.slane %v1575, 7
          %v1608 = vrot.slane %v1576, 7
          %v1609 = vrot.slane %v1577, 7
          %v1610 = vrot.slane %v1578, 7
          %v1611 = vrot.slane %v1579, 7
          %v1612 = vrot.slane %v1580, 7
          %v1613 = vrot.slane %v1581, 7
          %v1614 = vrot.slane %v1582, 7
          %v1615 = vrot.slane %v1583, 7
          %v1616 = vrot.slane %v1584, 7
          %v1617 = vrot.slane %v1585, 7
          %v1618 = vrot.slane %v1586, 7
          %v1619 = vrot.slane %v1587, 7
          %v1620 = vrot.slane %v1588, 7
          %v1621 = vrot.slane %v1589, 7
          %v1622 = vrot.slane %v1590, 7
          %v1623 = vrot.slane %v1591, 7
          %v1624 = vrot.slane %v1592, 7
          %v1625 = vrot.slane %v1593, 7
          %v1626 = vrot.slane %v1594, 7
          %v1627 = vrot.slane %v1595, 7
          %v1628 = vrot.slane %v1596, 7
          %v1629 = vrot.slane %v1597, 7
          %v1630 = vrot.slane %v1598, 7
          %v1631 = vrot.slane %v1599, 7
          %v1632 = vrot.slane %v1600, 7
          %vm1633 = vcmp.lt.s32.totalorder %v350, 1
          %v1634 = vsel %vm1633, %v1631, %v1632
          %v1635 = vsel %vm1633, %v1630, %v1631
          %v1636 = vsel %vm1633, %v1629, %v1630
          %v1637 = vsel %vm1633, %v1628, %v1629
          %v1638 = vsel %vm1633, %v1627, %v1628
          %v1639 = vsel %vm1633, %v1626, %v1627
          %v1640 = vsel %vm1633, %v1625, %v1626
          %v1641 = vsel %vm1633, %v1624, %v1625
          %v1642 = vsel %vm1633, %v1623, %v1624
          %v1643 = vsel %vm1633, %v1622, %v1623
          %v1644 = vsel %vm1633, %v1621, %v1622
          %v1645 = vsel %vm1633, %v1620, %v1621
          %v1646 = vsel %vm1633, %v1619, %v1620
          %v1647 = vsel %vm1633, %v1618, %v1619
          %v1648 = vsel %vm1633, %v1617, %v1618
          %v1649 = vsel %vm1633, %v1616, %v1617
          %v1650 = vsel %vm1633, %v1615, %v1616
          %v1651 = vsel %vm1633, %v1614, %v1615
          %v1652 = vsel %vm1633, %v1613, %v1614
          %v1653 = vsel %vm1633, %v1612, %v1613
          %v1654 = vsel %vm1633, %v1611, %v1612
          %v1655 = vsel %vm1633, %v1610, %v1611
          %v1656 = vsel %vm1633, %v1609, %v1610
          %v1657 = vsel %vm1633, %v1608, %v1609
          %v1658 = vsel %vm1633, %v1607, %v1608
          %v1659 = vsel %vm1633, %v1606, %v1607
          %v1660 = vsel %vm1633, %v1605, %v1606
          %v1661 = vsel %vm1633, %v1604, %v1605
          %v1662 = vsel %vm1633, %v1603, %v1604
          %v1663 = vsel %vm1633, %v1602, %v1603
          %v1664 = vsel %vm1633, %v1601, %v1602
          %v1665 = vsel %vm1633, %v1632, %v1601
          %v1666 = vsel %vm766, 1, 0
          %v1667 = vsel %vm767, 1, 0
          %v1668 = vsel %vm768, 1, 0
          %v1669 = vsel %vm769, 1, 0
          %v1670 = vsel %vm770, 1, 0
          %v1671 = vsel %vm771, 1, 0
          %v1672 = vsel %vm772, 1, 0
          %v1673 = vsel %vm773, 1, 0
          %v1674 = vsel %vm774, 1, 0
          %v1675 = vsel %vm775, 1, 0
          %v1676 = vsel %vm776, 1, 0
          %v1677 = vsel %vm777, 1, 0
          %v1678 = vsel %vm778, 1, 0
          %v1679 = vsel %vm779, 1, 0
          %v1680 = vsel %vm780, 1, 0
          %v1681 = vsel %vm781, 1, 0
          %v1682 = vsel %vm782, 1, 0
          %v1683 = vsel %vm783, 1, 0
          %v1684 = vsel %vm784, 1, 0
          %v1685 = vsel %vm785, 1, 0
          %v1686 = vsel %vm786, 1, 0
          %v1687 = vsel %vm787, 1, 0
          %v1688 = vsel %vm788, 1, 0
          %v1689 = vsel %vm789, 1, 0
          %v1690 = vsel %vm790, 1, 0
          %v1691 = vsel %vm791, 1, 0
          %v1692 = vsel %vm792, 1, 0
          %v1693 = vsel %vm793, 1, 0
          %v1694 = vsel %vm794, 1, 0
          %v1695 = vsel %vm795, 1, 0
          %v1696 = vsel %vm796, 1, 0
          %v1697 = vsel %vm797, 1, 0
          %vm1698 = vcmp.eq.s32.totalorder %v1666, 1
          %vm1699 = vcmp.eq.s32.totalorder %v1667, 1
          %vm1700 = vcmp.eq.s32.totalorder %v1668, 1
          %vm1701 = vcmp.eq.s32.totalorder %v1669, 1
          %vm1702 = vcmp.eq.s32.totalorder %v1670, 1
          %vm1703 = vcmp.eq.s32.totalorder %v1671, 1
          %vm1704 = vcmp.eq.s32.totalorder %v1672, 1
          %vm1705 = vcmp.eq.s32.totalorder %v1673, 1
          %vm1706 = vcmp.eq.s32.totalorder %v1674, 1
          %vm1707 = vcmp.eq.s32.totalorder %v1675, 1
          %vm1708 = vcmp.eq.s32.totalorder %v1676, 1
          %vm1709 = vcmp.eq.s32.totalorder %v1677, 1
          %vm1710 = vcmp.eq.s32.totalorder %v1678, 1
          %vm1711 = vcmp.eq.s32.totalorder %v1679, 1
          %vm1712 = vcmp.eq.s32.totalorder %v1680, 1
          %vm1713 = vcmp.eq.s32.totalorder %v1681, 1
          %vm1714 = vcmp.eq.s32.totalorder %v1682, 1
          %vm1715 = vcmp.eq.s32.totalorder %v1683, 1
          %vm1716 = vcmp.eq.s32.totalorder %v1684, 1
          %vm1717 = vcmp.eq.s32.totalorder %v1685, 1
          %vm1718 = vcmp.eq.s32.totalorder %v1686, 1
          %vm1719 = vcmp.eq.s32.totalorder %v1687, 1
          %vm1720 = vcmp.eq.s32.totalorder %v1688, 1
          %vm1721 = vcmp.eq.s32.totalorder %v1689, 1
          %vm1722 = vcmp.eq.s32.totalorder %v1690, 1
          %vm1723 = vcmp.eq.s32.totalorder %v1691, 1
          %vm1724 = vcmp.eq.s32.totalorder %v1692, 1
          %vm1725 = vcmp.eq.s32.totalorder %v1693, 1
          %vm1726 = vcmp.eq.s32.totalorder %v1694, 1
          %vm1727 = vcmp.eq.s32.totalorder %v1695, 1
          %vm1728 = vcmp.eq.s32.totalorder %v1696, 1
          %vm1729 = vcmp.eq.s32.totalorder %v1697, 1
          %v1730 = vsel %vm1698, %v1665, 0.0
          %v1731 = vsel %vm1699, %v1664, 0.0
          %v1732 = vsel %vm1700, %v1663, 0.0
          %v1733 = vsel %vm1701, %v1662, 0.0
          %v1734 = vsel %vm1702, %v1661, 0.0
          %v1735 = vsel %vm1703, %v1660, 0.0
          %v1736 = vsel %vm1704, %v1659, 0.0
          %v1737 = vsel %vm1705, %v1658, 0.0
          %v1738 = vsel %vm1706, %v1657, 0.0
          %v1739 = vsel %vm1707, %v1656, 0.0
          %v1740 = vsel %vm1708, %v1655, 0.0
          %v1741 = vsel %vm1709, %v1654, 0.0
          %v1742 = vsel %vm1710, %v1653, 0.0
          %v1743 = vsel %vm1711, %v1652, 0.0
          %v1744 = vsel %vm1712, %v1651, 0.0
          %v1745 = vsel %vm1713, %v1650, 0.0
          %v1746 = vsel %vm1714, %v1649, 0.0
          %v1747 = vsel %vm1715, %v1648, 0.0
          %v1748 = vsel %vm1716, %v1647, 0.0
          %v1749 = vsel %vm1717, %v1646, 0.0
          %v1750 = vsel %vm1718, %v1645, 0.0
          %v1751 = vsel %vm1719, %v1644, 0.0
          %v1752 = vsel %vm1720, %v1643, 0.0
          %v1753 = vsel %vm1721, %v1642, 0.0
          %v1754 = vsel %vm1722, %v1641, 0.0
          %v1755 = vsel %vm1723, %v1640, 0.0
          %v1756 = vsel %vm1724, %v1639, 0.0
          %v1757 = vsel %vm1725, %v1638, 0.0
          %v1758 = vsel %vm1726, %v1637, 0.0
          %v1759 = vsel %vm1727, %v1636, 0.0
          %v1760 = vsel %vm1728, %v1635, 0.0
          %v1761 = vsel %vm1729, %v1634, 0.0
          %v1762 = vadd.f32 %v1730, 0.0
          %v1763 = vadd.f32 %v1731, 0.0
          %v1764 = vadd.f32 %v1732, 0.0
          %v1765 = vadd.f32 %v1733, 0.0
          %v1766 = vadd.f32 %v1734, 0.0
          %v1767 = vadd.f32 %v1735, 0.0
          %v1768 = vadd.f32 %v1736, 0.0
          %v1769 = vadd.f32 %v1737, 0.0
          %v1770 = vadd.f32 %v1738, 0.0
          %v1771 = vadd.f32 %v1739, 0.0
          %v1772 = vadd.f32 %v1740, 0.0
          %v1773 = vadd.f32 %v1741, 0.0
          %v1774 = vadd.f32 %v1742, 0.0
          %v1775 = vadd.f32 %v1743, 0.0
          %v1776 = vadd.f32 %v1744, 0.0
          %v1777 = vadd.f32 %v1745, 0.0
          %v1778 = vadd.f32 %v1746, 0.0
          %v1779 = vadd.f32 %v1747, 0.0
          %v1780 = vadd.f32 %v1748, 0.0
          %v1781 = vadd.f32 %v1749, 0.0
          %v1782 = vadd.f32 %v1750, 0.0
          %v1783 = vadd.f32 %v1751, 0.0
          %v1784 = vadd.f32 %v1752, 0.0
          %v1785 = vadd.f32 %v1753, 0.0
          %v1786 = vadd.f32 %v1754, 0.0
          %v1787 = vadd.f32 %v1755, 0.0
          %v1788 = vadd.f32 %v1756, 0.0
          %v1789 = vadd.f32 %v1757, 0.0
          %v1790 = vadd.f32 %v1758, 0.0
          %v1791 = vadd.f32 %v1759, 0.0
          %v1792 = vadd.f32 %v1760, 0.0
          %v1793 = vadd.f32 %v1761, 0.0
          %s1794 = sadd.s32 %s943, 1
          %s1795 = smul.u32 %s1794, 4
          %s1796 = smul.addr %s1795, 4
          %s1797 = scalar_lea.vmem [#allocation3], %s1796
          %v1798 = vld [vmem:[%s1797] sm:$0xf]
          %v1799 = vld [vmem:[%s1797 + $0x4] sm:$0xf]
          %v1800 = vld [vmem:[%s1797 + $0x8] sm:$0xf]
          %v1801 = vld [vmem:[%s1797 + $0xc] sm:$0xf]
          %s1802 = sadd.s32 %s943, 4
          %s1803 = smul.u32 %s1802, 4
          %s1804 = smul.addr %s1803, 4
          %s1805 = scalar_lea.vmem [#allocation3], %s1804
          %v1806 = vld [vmem:[%s1805] sm:$0xf]
          %v1807 = vld [vmem:[%s1805 + $0x4] sm:$0xf]
          %v1808 = vld [vmem:[%s1805 + $0x8] sm:$0xf]
          %v1809 = vld [vmem:[%s1805 + $0xc] sm:$0xf]
          %v1814 = vunpack.c.l.b16 %v1806
          %v1815 = vunpack.c.l.b16 %v1807
          %v1816 = vunpack.c.l.b16 %v1808
          %v1817 = vunpack.c.l.b16 %v1809
          %v1818 = vpack.c.b16 %v1815, %v1814
          %v1819 = vpack.c.b16 %v1817, %v1816
          %1822 = vmatpush.bf16.msra.mxu0 0
          %1823 = vmatpush.bf16.msra.mxu0 0
          %1824 = vmatpush.bf16.msra.mxu0 0
          %1825 = vmatpush.bf16.msra.mxu0 0
          %1826 = vmatpush.bf16.msra.mxu0 0
          %1827 = vmatpush.bf16.msra.mxu0 0
          %1828 = vmatpush.bf16.msra.mxu0 %v1819
          %1829 = vmatpush.bf16.msra.mxu0 %v1818
          %1830 = vmatmul.bf16.gmra.mxu0 %v1055
          %v1831 = vpop.f32.mrf.mxu0
          %v1832 = vadd.f32 0.0, %v1831
          %v1833 = vpop.f32.mrf.mxu0
          %v1834 = vadd.f32 0.0, %v1833
          %1835 = vmatmul.bf16.gmra.mxu0 %v1058
          %v1836 = vpop.f32.mrf.mxu0
          %v1837 = vadd.f32 0.0, %v1836
          %v1838 = vpop.f32.mrf.mxu0
          %v1839 = vadd.f32 0.0, %v1838
          %1840 = vmatmul.bf16.gmra.mxu0 %v1061
          %v1841 = vpop.f32.mrf.mxu0
          %v1842 = vadd.f32 0.0, %v1841
          %v1843 = vpop.f32.mrf.mxu0
          %v1844 = vadd.f32 0.0, %v1843
          %1845 = vmatmul.bf16.gmra.mxu0 %v1064
          %v1846 = vpop.f32.mrf.mxu0
          %v1847 = vadd.f32 0.0, %v1846
          %v1848 = vpop.f32.mrf.mxu0
          %v1849 = vadd.f32 0.0, %v1848
          %1850 = vmatmul.bf16.gmra.mxu0 %v1067
          %v1851 = vpop.f32.mrf.mxu0
          %v1852 = vadd.f32 0.0, %v1851
          %v1853 = vpop.f32.mrf.mxu0
          %v1854 = vadd.f32 0.0, %v1853
          %1855 = vmatmul.bf16.gmra.mxu0 %v1070
          %v1856 = vpop.f32.mrf.mxu0
          %v1857 = vadd.f32 0.0, %v1856
          %v1858 = vpop.f32.mrf.mxu0
          %v1859 = vadd.f32 0.0, %v1858
          %1860 = vmatmul.bf16.gmra.mxu0 %v1073
          %v1861 = vpop.f32.mrf.mxu0
          %v1862 = vadd.f32 0.0, %v1861
          %v1863 = vpop.f32.mrf.mxu0
          %v1864 = vadd.f32 0.0, %v1863
          %1865 = vmatmul.bf16.gmra.mxu0 %v1076
          %v1866 = vpop.f32.mrf.mxu0
          %v1867 = vadd.f32 0.0, %v1866
          %v1868 = vpop.f32.mrf.mxu0
          %v1869 = vadd.f32 0.0, %v1868
          %1870 = vmatmul.bf16.gmra.mxu0 %v1079
          %v1871 = vpop.f32.mrf.mxu0
          %v1872 = vadd.f32 0.0, %v1871
          %v1873 = vpop.f32.mrf.mxu0
          %v1874 = vadd.f32 0.0, %v1873
          %1875 = vmatmul.bf16.gmra.mxu0 %v1082
          %v1876 = vpop.f32.mrf.mxu0
          %v1877 = vadd.f32 0.0, %v1876
          %v1878 = vpop.f32.mrf.mxu0
          %v1879 = vadd.f32 0.0, %v1878
          %1880 = vmatmul.bf16.gmra.mxu0 %v1085
          %v1881 = vpop.f32.mrf.mxu0
          %v1882 = vadd.f32 0.0, %v1881
          %v1883 = vpop.f32.mrf.mxu0
          %v1884 = vadd.f32 0.0, %v1883
          %1885 = vmatmul.bf16.gmra.mxu0 %v1088
          %v1886 = vpop.f32.mrf.mxu0
          %v1887 = vadd.f32 0.0, %v1886
          %v1888 = vpop.f32.mrf.mxu0
          %v1889 = vadd.f32 0.0, %v1888
          %1890 = vmatmul.bf16.gmra.mxu0 %v1091
          %v1891 = vpop.f32.mrf.mxu0
          %v1892 = vadd.f32 0.0, %v1891
          %v1893 = vpop.f32.mrf.mxu0
          %v1894 = vadd.f32 0.0, %v1893
          %1895 = vmatmul.bf16.gmra.mxu0 %v1094
          %v1896 = vpop.f32.mrf.mxu0
          %v1897 = vadd.f32 0.0, %v1896
          %v1898 = vpop.f32.mrf.mxu0
          %v1899 = vadd.f32 0.0, %v1898
          %1900 = vmatmul.bf16.gmra.mxu0 %v1097
          %v1901 = vpop.f32.mrf.mxu0
          %v1902 = vadd.f32 0.0, %v1901
          %v1903 = vpop.f32.mrf.mxu0
          %v1904 = vadd.f32 0.0, %v1903
          %1905 = vmatmul.bf16.gmra.mxu0 %v1100
          %v1906 = vpop.f32.mrf.mxu0
          %v1907 = vadd.f32 0.0, %v1906
          %v1908 = vpop.f32.mrf.mxu0
          %v1909 = vadd.f32 0.0, %v1908
          %1910 = vdwg.mxu0
          %v1915 = vunpack.c.l.b16 %v1798
          %v1916 = vunpack.c.l.b16 %v1799
          %v1917 = vunpack.c.l.b16 %v1800
          %v1918 = vunpack.c.l.b16 %v1801
          %v1919 = vpack.c.b16 %v1916, %v1915
          %v1920 = vpack.c.b16 %v1918, %v1917
          %1923 = vmatpush.bf16.msra.mxu0 0
          %1924 = vmatpush.bf16.msra.mxu0 0
          %1925 = vmatpush.bf16.msra.mxu0 0
          %1926 = vmatpush.bf16.msra.mxu0 0
          %1927 = vmatpush.bf16.msra.mxu0 0
          %1928 = vmatpush.bf16.msra.mxu0 0
          %1929 = vmatpush.bf16.msra.mxu0 %v1920
          %1930 = vmatpush.bf16.msra.mxu0 %v1919
          %1931 = vmatmul.bf16.gmra.mxu0 %v1209
          %v1932 = vpop.f32.mrf.mxu0
          %v1933 = vadd.f32 %v1832, %v1932
          %v1934 = vpop.f32.mrf.mxu0
          %v1935 = vadd.f32 %v1834, %v1934
          %1936 = vmatmul.bf16.gmra.mxu0 %v1055
          %v1937 = vpop.f32.mrf.mxu0
          %v1938 = vadd.f32 %v1837, %v1937
          %v1939 = vpop.f32.mrf.mxu0
          %v1940 = vadd.f32 %v1839, %v1939
          %1941 = vmatmul.bf16.gmra.mxu0 %v1058
          %v1942 = vpop.f32.mrf.mxu0
          %v1943 = vadd.f32 %v1842, %v1942
          %v1944 = vpop.f32.mrf.mxu0
          %v1945 = vadd.f32 %v1844, %v1944
          %1946 = vmatmul.bf16.gmra.mxu0 %v1061
          %v1947 = vpop.f32.mrf.mxu0
          %v1948 = vadd.f32 %v1847, %v1947
          %v1949 = vpop.f32.mrf.mxu0
          %v1950 = vadd.f32 %v1849, %v1949
          %1951 = vmatmul.bf16.gmra.mxu0 %v1064
          %v1952 = vpop.f32.mrf.mxu0
          %v1953 = vadd.f32 %v1852, %v1952
          %v1954 = vpop.f32.mrf.mxu0
          %v1955 = vadd.f32 %v1854, %v1954
          %1956 = vmatmul.bf16.gmra.mxu0 %v1067
          %v1957 = vpop.f32.mrf.mxu0
          %v1958 = vadd.f32 %v1857, %v1957
          %v1959 = vpop.f32.mrf.mxu0
          %v1960 = vadd.f32 %v1859, %v1959
          %1961 = vmatmul.bf16.gmra.mxu0 %v1070
          %v1962 = vpop.f32.mrf.mxu0
          %v1963 = vadd.f32 %v1862, %v1962
          %v1964 = vpop.f32.mrf.mxu0
          %v1965 = vadd.f32 %v1864, %v1964
          %1966 = vmatmul.bf16.gmra.mxu0 %v1073
          %v1967 = vpop.f32.mrf.mxu0
          %v1968 = vadd.f32 %v1867, %v1967
          %v1969 = vpop.f32.mrf.mxu0
          %v1970 = vadd.f32 %v1869, %v1969
          %1971 = vmatmul.bf16.gmra.mxu0 %v1076
          %v1972 = vpop.f32.mrf.mxu0
          %v1973 = vadd.f32 %v1872, %v1972
          %v1974 = vpop.f32.mrf.mxu0
          %v1975 = vadd.f32 %v1874, %v1974
          %1976 = vmatmul.bf16.gmra.mxu0 %v1079
          %v1977 = vpop.f32.mrf.mxu0
          %v1978 = vadd.f32 %v1877, %v1977
          %v1979 = vpop.f32.mrf.mxu0
          %v1980 = vadd.f32 %v1879, %v1979
          %1981 = vmatmul.bf16.gmra.mxu0 %v1082
          %v1982 = vpop.f32.mrf.mxu0
          %v1983 = vadd.f32 %v1882, %v1982
          %v1984 = vpop.f32.mrf.mxu0
          %v1985 = vadd.f32 %v1884, %v1984
          %1986 = vmatmul.bf16.gmra.mxu0 %v1085
          %v1987 = vpop.f32.mrf.mxu0
          %v1988 = vadd.f32 %v1887, %v1987
          %v1989 = vpop.f32.mrf.mxu0
          %v1990 = vadd.f32 %v1889, %v1989
          %1991 = vmatmul.bf16.gmra.mxu0 %v1088
          %v1992 = vpop.f32.mrf.mxu0
          %v1993 = vadd.f32 %v1892, %v1992
          %v1994 = vpop.f32.mrf.mxu0
          %v1995 = vadd.f32 %v1894, %v1994
          %1996 = vmatmul.bf16.gmra.mxu0 %v1091
          %v1997 = vpop.f32.mrf.mxu0
          %v1998 = vadd.f32 %v1897, %v1997
          %v1999 = vpop.f32.mrf.mxu0
          %v2000 = vadd.f32 %v1899, %v1999
          %2001 = vmatmul.bf16.gmra.mxu0 %v1094
          %v2002 = vpop.f32.mrf.mxu0
          %v2003 = vadd.f32 %v1902, %v2002
          %v2004 = vpop.f32.mrf.mxu0
          %v2005 = vadd.f32 %v1904, %v2004
          %2006 = vmatmul.bf16.gmra.mxu0 %v1097
          %v2007 = vpop.f32.mrf.mxu0
          %v2008 = vadd.f32 %v1907, %v2007
          %v2009 = vpop.f32.mrf.mxu0
          %v2010 = vadd.f32 %v1909, %v2009
          %2011 = vdwg.mxu0
          %s2012 = sadd.s32 %s943, 7
          %s2013 = smul.u32 %s2012, 4
          %s2014 = smul.addr %s2013, 4
          %s2015 = scalar_lea.vmem [#allocation3], %s2014
          %v2016 = vld [vmem:[%s2015] sm:$0xf]
          %v2017 = vld [vmem:[%s2015 + $0x4] sm:$0xf]
          %v2018 = vld [vmem:[%s2015 + $0x8] sm:$0xf]
          %v2019 = vld [vmem:[%s2015 + $0xc] sm:$0xf]
          %v2024 = vunpack.c.l.b16 %v2016
          %v2025 = vunpack.c.l.b16 %v2017
          %v2026 = vunpack.c.l.b16 %v2018
          %v2027 = vunpack.c.l.b16 %v2019
          %v2028 = vpack.c.b16 %v2025, %v2024
          %v2029 = vpack.c.b16 %v2027, %v2026
          %2032 = vmatpush.bf16.msra.mxu0 0
          %2033 = vmatpush.bf16.msra.mxu0 0
          %2034 = vmatpush.bf16.msra.mxu0 0
          %2035 = vmatpush.bf16.msra.mxu0 0
          %2036 = vmatpush.bf16.msra.mxu0 0
          %2037 = vmatpush.bf16.msra.mxu0 0
          %2038 = vmatpush.bf16.msra.mxu0 %v2029
          %2039 = vmatpush.bf16.msra.mxu0 %v2028
          %2040 = vmatmul.bf16.gmra.mxu0 %v1433
          %v2041 = vpop.f32.mrf.mxu0
          %v2042 = vadd.f32 0.0, %v2041
          %v2043 = vpop.f32.mrf.mxu0
          %v2044 = vadd.f32 0.0, %v2043
          %2045 = vmatmul.bf16.gmra.mxu0 %v1436
          %v2046 = vpop.f32.mrf.mxu0
          %v2047 = vadd.f32 0.0, %v2046
          %v2048 = vpop.f32.mrf.mxu0
          %v2049 = vadd.f32 0.0, %v2048
          %2050 = vmatmul.bf16.gmra.mxu0 %v1439
          %v2051 = vpop.f32.mrf.mxu0
          %v2052 = vadd.f32 0.0, %v2051
          %v2053 = vpop.f32.mrf.mxu0
          %v2054 = vadd.f32 0.0, %v2053
          %2055 = vmatmul.bf16.gmra.mxu0 %v1442
          %v2056 = vpop.f32.mrf.mxu0
          %v2057 = vadd.f32 0.0, %v2056
          %v2058 = vpop.f32.mrf.mxu0
          %v2059 = vadd.f32 0.0, %v2058
          %2060 = vmatmul.bf16.gmra.mxu0 %v1445
          %v2061 = vpop.f32.mrf.mxu0
          %v2062 = vadd.f32 0.0, %v2061
          %v2063 = vpop.f32.mrf.mxu0
          %v2064 = vadd.f32 0.0, %v2063
          %2065 = vmatmul.bf16.gmra.mxu0 %v1448
          %v2066 = vpop.f32.mrf.mxu0
          %v2067 = vadd.f32 0.0, %v2066
          %v2068 = vpop.f32.mrf.mxu0
          %v2069 = vadd.f32 0.0, %v2068
          %2070 = vmatmul.bf16.gmra.mxu0 %v1451
          %v2071 = vpop.f32.mrf.mxu0
          %v2072 = vadd.f32 0.0, %v2071
          %v2073 = vpop.f32.mrf.mxu0
          %v2074 = vadd.f32 0.0, %v2073
          %2075 = vmatmul.bf16.gmra.mxu0 %v1454
          %v2076 = vpop.f32.mrf.mxu0
          %v2077 = vadd.f32 0.0, %v2076
          %v2078 = vpop.f32.mrf.mxu0
          %v2079 = vadd.f32 0.0, %v2078
          %2080 = vmatmul.bf16.gmra.mxu0 %v1457
          %v2081 = vpop.f32.mrf.mxu0
          %v2082 = vadd.f32 0.0, %v2081
          %v2083 = vpop.f32.mrf.mxu0
          %v2084 = vadd.f32 0.0, %v2083
          %2085 = vmatmul.bf16.gmra.mxu0 %v1460
          %v2086 = vpop.f32.mrf.mxu0
          %v2087 = vadd.f32 0.0, %v2086
          %v2088 = vpop.f32.mrf.mxu0
          %v2089 = vadd.f32 0.0, %v2088
          %2090 = vmatmul.bf16.gmra.mxu0 %v1463
          %v2091 = vpop.f32.mrf.mxu0
          %v2092 = vadd.f32 0.0, %v2091
          %v2093 = vpop.f32.mrf.mxu0
          %v2094 = vadd.f32 0.0, %v2093
          %2095 = vmatmul.bf16.gmra.mxu0 %v1466
          %v2096 = vpop.f32.mrf.mxu0
          %v2097 = vadd.f32 0.0, %v2096
          %v2098 = vpop.f32.mrf.mxu0
          %v2099 = vadd.f32 0.0, %v2098
          %2100 = vmatmul.bf16.gmra.mxu0 %v1469
          %v2101 = vpop.f32.mrf.mxu0
          %v2102 = vadd.f32 0.0, %v2101
          %v2103 = vpop.f32.mrf.mxu0
          %v2104 = vadd.f32 0.0, %v2103
          %2105 = vmatmul.bf16.gmra.mxu0 %v1472
          %v2106 = vpop.f32.mrf.mxu0
          %v2107 = vadd.f32 0.0, %v2106
          %v2108 = vpop.f32.mrf.mxu0
          %v2109 = vadd.f32 0.0, %v2108
          %2110 = vmatmul.bf16.gmra.mxu0 %v1475
          %v2111 = vpop.f32.mrf.mxu0
          %v2112 = vadd.f32 0.0, %v2111
          %v2113 = vpop.f32.mrf.mxu0
          %v2114 = vadd.f32 0.0, %v2113
          %2115 = vmatmul.bf16.gmra.mxu0 %v1478
          %v2116 = vpop.f32.mrf.mxu0
          %v2117 = vadd.f32 0.0, %v2116
          %v2118 = vpop.f32.mrf.mxu0
          %v2119 = vadd.f32 0.0, %v2118
          %2120 = vdwg.mxu0
          %v2121 = vadd.f32 %v1933, %v2042
          %v2122 = vadd.f32 %v1935, %v2044
          %v2123 = vadd.f32 %v1938, %v2047
          %v2124 = vadd.f32 %v1940, %v2049
          %v2125 = vadd.f32 %v1943, %v2052
          %v2126 = vadd.f32 %v1945, %v2054
          %v2127 = vadd.f32 %v1948, %v2057
          %v2128 = vadd.f32 %v1950, %v2059
          %v2129 = vadd.f32 %v1953, %v2062
          %v2130 = vadd.f32 %v1955, %v2064
          %v2131 = vadd.f32 %v1958, %v2067
          %v2132 = vadd.f32 %v1960, %v2069
          %v2133 = vadd.f32 %v1963, %v2072
          %v2134 = vadd.f32 %v1965, %v2074
          %v2135 = vadd.f32 %v1968, %v2077
          %v2136 = vadd.f32 %v1970, %v2079
          %v2137 = vadd.f32 %v1973, %v2082
          %v2138 = vadd.f32 %v1975, %v2084
          %v2139 = vadd.f32 %v1978, %v2087
          %v2140 = vadd.f32 %v1980, %v2089
          %v2141 = vadd.f32 %v1983, %v2092
          %v2142 = vadd.f32 %v1985, %v2094
          %v2143 = vadd.f32 %v1988, %v2097
          %v2144 = vadd.f32 %v1990, %v2099
          %v2145 = vadd.f32 %v1993, %v2102
          %v2146 = vadd.f32 %v1995, %v2104
          %v2147 = vadd.f32 %v1998, %v2107
          %v2148 = vadd.f32 %v2000, %v2109
          %v2149 = vadd.f32 %v2003, %v2112
          %v2150 = vadd.f32 %v2005, %v2114
          %v2151 = vadd.f32 %v2008, %v2117
          %v2152 = vadd.f32 %v2010, %v2119
          %v2153 = vadd.f32 %v1762, %v2121
          %v2154 = vadd.f32 %v1763, %v2122
          %v2155 = vadd.f32 %v1764, %v2123
          %v2156 = vadd.f32 %v1765, %v2124
          %v2157 = vadd.f32 %v1766, %v2125
          %v2158 = vadd.f32 %v1767, %v2126
          %v2159 = vadd.f32 %v1768, %v2127
          %v2160 = vadd.f32 %v1769, %v2128
          %v2161 = vadd.f32 %v1770, %v2129
          %v2162 = vadd.f32 %v1771, %v2130
          %v2163 = vadd.f32 %v1772, %v2131
          %v2164 = vadd.f32 %v1773, %v2132
          %v2165 = vadd.f32 %v1774, %v2133
          %v2166 = vadd.f32 %v1775, %v2134
          %v2167 = vadd.f32 %v1776, %v2135
          %v2168 = vadd.f32 %v1777, %v2136
          %v2169 = vadd.f32 %v1778, %v2137
          %v2170 = vadd.f32 %v1779, %v2138
          %v2171 = vadd.f32 %v1780, %v2139
          %v2172 = vadd.f32 %v1781, %v2140
          %v2173 = vadd.f32 %v1782, %v2141
          %v2174 = vadd.f32 %v1783, %v2142
          %v2175 = vadd.f32 %v1784, %v2143
          %v2176 = vadd.f32 %v1785, %v2144
          %v2177 = vadd.f32 %v1786, %v2145
          %v2178 = vadd.f32 %v1787, %v2146
          %v2179 = vadd.f32 %v1788, %v2147
          %v2180 = vadd.f32 %v1789, %v2148
          %v2181 = vadd.f32 %v1790, %v2149
          %v2182 = vadd.f32 %v1791, %v2150
          %v2183 = vadd.f32 %v1792, %v2151
          %v2184 = vadd.f32 %v1793, %v2152
          %s2185 = sadd.s32 %s943, 2
          %s2186 = smul.u32 %s2185, 4
          %s2187 = smul.addr %s2186, 4
          %s2188 = scalar_lea.vmem [#allocation3], %s2187
          %v2189 = vld [vmem:[%s2188] sm:$0xf]
          %v2190 = vld [vmem:[%s2188 + $0x4] sm:$0xf]
          %v2191 = vld [vmem:[%s2188 + $0x8] sm:$0xf]
          %v2192 = vld [vmem:[%s2188 + $0xc] sm:$0xf]
          %s2193 = sadd.s32 %s943, 5
          %s2194 = smul.u32 %s2193, 4
          %s2195 = smul.addr %s2194, 4
          %s2196 = scalar_lea.vmem [#allocation3], %s2195
          %v2197 = vld [vmem:[%s2196] sm:$0xf]
          %v2198 = vld [vmem:[%s2196 + $0x4] sm:$0xf]
          %v2199 = vld [vmem:[%s2196 + $0x8] sm:$0xf]
          %v2200 = vld [vmem:[%s2196 + $0xc] sm:$0xf]
          %v2205 = vunpack.c.l.b16 %v2197
          %v2206 = vunpack.c.l.b16 %v2198
          %v2207 = vunpack.c.l.b16 %v2199
          %v2208 = vunpack.c.l.b16 %v2200
          %v2209 = vpack.c.b16 %v2206, %v2205
          %v2210 = vpack.c.b16 %v2208, %v2207
          %2213 = vmatpush.bf16.msra.mxu0 0
          %2214 = vmatpush.bf16.msra.mxu0 0
          %2215 = vmatpush.bf16.msra.mxu0 0
          %2216 = vmatpush.bf16.msra.mxu0 0
          %2217 = vmatpush.bf16.msra.mxu0 0
          %2218 = vmatpush.bf16.msra.mxu0 0
          %2219 = vmatpush.bf16.msra.mxu0 %v2210
          %2220 = vmatpush.bf16.msra.mxu0 %v2209
          %2221 = vmatmul.bf16.gmra.mxu0 %v1055
          %v2222 = vpop.f32.mrf.mxu0
          %v2223 = vadd.f32 0.0, %v2222
          %v2224 = vpop.f32.mrf.mxu0
          %v2225 = vadd.f32 0.0, %v2224
          %2226 = vmatmul.bf16.gmra.mxu0 %v1058
          %v2227 = vpop.f32.mrf.mxu0
          %v2228 = vadd.f32 0.0, %v2227
          %v2229 = vpop.f32.mrf.mxu0
          %v2230 = vadd.f32 0.0, %v2229
          %2231 = vmatmul.bf16.gmra.mxu0 %v1061
          %v2232 = vpop.f32.mrf.mxu0
          %v2233 = vadd.f32 0.0, %v2232
          %v2234 = vpop.f32.mrf.mxu0
          %v2235 = vadd.f32 0.0, %v2234
          %2236 = vmatmul.bf16.gmra.mxu0 %v1064
          %v2237 = vpop.f32.mrf.mxu0
          %v2238 = vadd.f32 0.0, %v2237
          %v2239 = vpop.f32.mrf.mxu0
          %v2240 = vadd.f32 0.0, %v2239
          %2241 = vmatmul.bf16.gmra.mxu0 %v1067
          %v2242 = vpop.f32.mrf.mxu0
          %v2243 = vadd.f32 0.0, %v2242
          %v2244 = vpop.f32.mrf.mxu0
          %v2245 = vadd.f32 0.0, %v2244
          %2246 = vmatmul.bf16.gmra.mxu0 %v1070
          %v2247 = vpop.f32.mrf.mxu0
          %v2248 = vadd.f32 0.0, %v2247
          %v2249 = vpop.f32.mrf.mxu0
          %v2250 = vadd.f32 0.0, %v2249
          %2251 = vmatmul.bf16.gmra.mxu0 %v1073
          %v2252 = vpop.f32.mrf.mxu0
          %v2253 = vadd.f32 0.0, %v2252
          %v2254 = vpop.f32.mrf.mxu0
          %v2255 = vadd.f32 0.0, %v2254
          %2256 = vmatmul.bf16.gmra.mxu0 %v1076
          %v2257 = vpop.f32.mrf.mxu0
          %v2258 = vadd.f32 0.0, %v2257
          %v2259 = vpop.f32.mrf.mxu0
          %v2260 = vadd.f32 0.0, %v2259
          %2261 = vmatmul.bf16.gmra.mxu0 %v1079
          %v2262 = vpop.f32.mrf.mxu0
          %v2263 = vadd.f32 0.0, %v2262
          %v2264 = vpop.f32.mrf.mxu0
          %v2265 = vadd.f32 0.0, %v2264
          %2266 = vmatmul.bf16.gmra.mxu0 %v1082
          %v2267 = vpop.f32.mrf.mxu0
          %v2268 = vadd.f32 0.0, %v2267
          %v2269 = vpop.f32.mrf.mxu0
          %v2270 = vadd.f32 0.0, %v2269
          %2271 = vmatmul.bf16.gmra.mxu0 %v1085
          %v2272 = vpop.f32.mrf.mxu0
          %v2273 = vadd.f32 0.0, %v2272
          %v2274 = vpop.f32.mrf.mxu0
          %v2275 = vadd.f32 0.0, %v2274
          %2276 = vmatmul.bf16.gmra.mxu0 %v1088
          %v2277 = vpop.f32.mrf.mxu0
          %v2278 = vadd.f32 0.0, %v2277
          %v2279 = vpop.f32.mrf.mxu0
          %v2280 = vadd.f32 0.0, %v2279
          %2281 = vmatmul.bf16.gmra.mxu0 %v1091
          %v2282 = vpop.f32.mrf.mxu0
          %v2283 = vadd.f32 0.0, %v2282
          %v2284 = vpop.f32.mrf.mxu0
          %v2285 = vadd.f32 0.0, %v2284
          %2286 = vmatmul.bf16.gmra.mxu0 %v1094
          %v2287 = vpop.f32.mrf.mxu0
          %v2288 = vadd.f32 0.0, %v2287
          %v2289 = vpop.f32.mrf.mxu0
          %v2290 = vadd.f32 0.0, %v2289
          %2291 = vmatmul.bf16.gmra.mxu0 %v1097
          %v2292 = vpop.f32.mrf.mxu0
          %v2293 = vadd.f32 0.0, %v2292
          %v2294 = vpop.f32.mrf.mxu0
          %v2295 = vadd.f32 0.0, %v2294
          %2296 = vmatmul.bf16.gmra.mxu0 %v1100
          %v2297 = vpop.f32.mrf.mxu0
          %v2298 = vadd.f32 0.0, %v2297
          %v2299 = vpop.f32.mrf.mxu0
          %v2300 = vadd.f32 0.0, %v2299
          %2301 = vdwg.mxu0
          %v2306 = vunpack.c.l.b16 %v2189
          %v2307 = vunpack.c.l.b16 %v2190
          %v2308 = vunpack.c.l.b16 %v2191
          %v2309 = vunpack.c.l.b16 %v2192
          %v2310 = vpack.c.b16 %v2307, %v2306
          %v2311 = vpack.c.b16 %v2309, %v2308
          %2314 = vmatpush.bf16.msra.mxu0 0
          %2315 = vmatpush.bf16.msra.mxu0 0
          %2316 = vmatpush.bf16.msra.mxu0 0
          %2317 = vmatpush.bf16.msra.mxu0 0
          %2318 = vmatpush.bf16.msra.mxu0 0
          %2319 = vmatpush.bf16.msra.mxu0 0
          %2320 = vmatpush.bf16.msra.mxu0 %v2311
          %2321 = vmatpush.bf16.msra.mxu0 %v2310
          %2322 = vmatmul.bf16.gmra.mxu0 %v1209
          %v2323 = vpop.f32.mrf.mxu0
          %v2324 = vadd.f32 %v2223, %v2323
          %v2325 = vpop.f32.mrf.mxu0
          %v2326 = vadd.f32 %v2225, %v2325
          %2327 = vmatmul.bf16.gmra.mxu0 %v1055
          %v2328 = vpop.f32.mrf.mxu0
          %v2329 = vadd.f32 %v2228, %v2328
          %v2330 = vpop.f32.mrf.mxu0
          %v2331 = vadd.f32 %v2230, %v2330
          %2332 = vmatmul.bf16.gmra.mxu0 %v1058
          %v2333 = vpop.f32.mrf.mxu0
          %v2334 = vadd.f32 %v2233, %v2333
          %v2335 = vpop.f32.mrf.mxu0
          %v2336 = vadd.f32 %v2235, %v2335
          %2337 = vmatmul.bf16.gmra.mxu0 %v1061
          %v2338 = vpop.f32.mrf.mxu0
          %v2339 = vadd.f32 %v2238, %v2338
          %v2340 = vpop.f32.mrf.mxu0
          %v2341 = vadd.f32 %v2240, %v2340
          %2342 = vmatmul.bf16.gmra.mxu0 %v1064
          %v2343 = vpop.f32.mrf.mxu0
          %v2344 = vadd.f32 %v2243, %v2343
          %v2345 = vpop.f32.mrf.mxu0
          %v2346 = vadd.f32 %v2245, %v2345
          %2347 = vmatmul.bf16.gmra.mxu0 %v1067
          %v2348 = vpop.f32.mrf.mxu0
          %v2349 = vadd.f32 %v2248, %v2348
          %v2350 = vpop.f32.mrf.mxu0
          %v2351 = vadd.f32 %v2250, %v2350
          %2352 = vmatmul.bf16.gmra.mxu0 %v1070
          %v2353 = vpop.f32.mrf.mxu0
          %v2354 = vadd.f32 %v2253, %v2353
          %v2355 = vpop.f32.mrf.mxu0
          %v2356 = vadd.f32 %v2255, %v2355
          %2357 = vmatmul.bf16.gmra.mxu0 %v1073
          %v2358 = vpop.f32.mrf.mxu0
          %v2359 = vadd.f32 %v2258, %v2358
          %v2360 = vpop.f32.mrf.mxu0
          %v2361 = vadd.f32 %v2260, %v2360
          %2362 = vmatmul.bf16.gmra.mxu0 %v1076
          %v2363 = vpop.f32.mrf.mxu0
          %v2364 = vadd.f32 %v2263, %v2363
          %v2365 = vpop.f32.mrf.mxu0
          %v2366 = vadd.f32 %v2265, %v2365
          %2367 = vmatmul.bf16.gmra.mxu0 %v1079
          %v2368 = vpop.f32.mrf.mxu0
          %v2369 = vadd.f32 %v2268, %v2368
          %v2370 = vpop.f32.mrf.mxu0
          %v2371 = vadd.f32 %v2270, %v2370
          %2372 = vmatmul.bf16.gmra.mxu0 %v1082
          %v2373 = vpop.f32.mrf.mxu0
          %v2374 = vadd.f32 %v2273, %v2373
          %v2375 = vpop.f32.mrf.mxu0
          %v2376 = vadd.f32 %v2275, %v2375
          %2377 = vmatmul.bf16.gmra.mxu0 %v1085
          %v2378 = vpop.f32.mrf.mxu0
          %v2379 = vadd.f32 %v2278, %v2378
          %v2380 = vpop.f32.mrf.mxu0
          %v2381 = vadd.f32 %v2280, %v2380
          %2382 = vmatmul.bf16.gmra.mxu0 %v1088
          %v2383 = vpop.f32.mrf.mxu0
          %v2384 = vadd.f32 %v2283, %v2383
          %v2385 = vpop.f32.mrf.mxu0
          %v2386 = vadd.f32 %v2285, %v2385
          %2387 = vmatmul.bf16.gmra.mxu0 %v1091
          %v2388 = vpop.f32.mrf.mxu0
          %v2389 = vadd.f32 %v2288, %v2388
          %v2390 = vpop.f32.mrf.mxu0
          %v2391 = vadd.f32 %v2290, %v2390
          %2392 = vmatmul.bf16.gmra.mxu0 %v1094
          %v2393 = vpop.f32.mrf.mxu0
          %v2394 = vadd.f32 %v2293, %v2393
          %v2395 = vpop.f32.mrf.mxu0
          %v2396 = vadd.f32 %v2295, %v2395
          %2397 = vmatmul.bf16.gmra.mxu0 %v1097
          %v2398 = vpop.f32.mrf.mxu0
          %v2399 = vadd.f32 %v2298, %v2398
          %v2400 = vpop.f32.mrf.mxu0
          %v2401 = vadd.f32 %v2300, %v2400
          %2402 = vdwg.mxu0
          %s2403 = sadd.s32 %s943, 8
          %s2404 = smul.u32 %s2403, 4
          %s2405 = smul.addr %s2404, 4
          %s2406 = scalar_lea.vmem [#allocation3], %s2405
          %v2407 = vld [vmem:[%s2406] sm:$0xf]
          %v2408 = vld [vmem:[%s2406 + $0x4] sm:$0xf]
          %v2409 = vld [vmem:[%s2406 + $0x8] sm:$0xf]
          %v2410 = vld [vmem:[%s2406 + $0xc] sm:$0xf]
          %v2415 = vunpack.c.l.b16 %v2407
          %v2416 = vunpack.c.l.b16 %v2408
          %v2417 = vunpack.c.l.b16 %v2409
          %v2418 = vunpack.c.l.b16 %v2410
          %v2419 = vpack.c.b16 %v2416, %v2415
          %v2420 = vpack.c.b16 %v2418, %v2417
          %2423 = vmatpush.bf16.msra.mxu0 0
          %2424 = vmatpush.bf16.msra.mxu0 0
          %2425 = vmatpush.bf16.msra.mxu0 0
          %2426 = vmatpush.bf16.msra.mxu0 0
          %2427 = vmatpush.bf16.msra.mxu0 0
          %2428 = vmatpush.bf16.msra.mxu0 0
          %2429 = vmatpush.bf16.msra.mxu0 %v2420
          %2430 = vmatpush.bf16.msra.mxu0 %v2419
          %2431 = vmatmul.bf16.gmra.mxu0 %v1433
          %v2432 = vpop.f32.mrf.mxu0
          %v2433 = vadd.f32 0.0, %v2432
          %v2434 = vpop.f32.mrf.mxu0
          %v2435 = vadd.f32 0.0, %v2434
          %2436 = vmatmul.bf16.gmra.mxu0 %v1436
          %v2437 = vpop.f32.mrf.mxu0
          %v2438 = vadd.f32 0.0, %v2437
          %v2439 = vpop.f32.mrf.mxu0
          %v2440 = vadd.f32 0.0, %v2439
          %2441 = vmatmul.bf16.gmra.mxu0 %v1439
          %v2442 = vpop.f32.mrf.mxu0
          %v2443 = vadd.f32 0.0, %v2442
          %v2444 = vpop.f32.mrf.mxu0
          %v2445 = vadd.f32 0.0, %v2444
          %2446 = vmatmul.bf16.gmra.mxu0 %v1442
          %v2447 = vpop.f32.mrf.mxu0
          %v2448 = vadd.f32 0.0, %v2447
          %v2449 = vpop.f32.mrf.mxu0
          %v2450 = vadd.f32 0.0, %v2449
          %2451 = vmatmul.bf16.gmra.mxu0 %v1445
          %v2452 = vpop.f32.mrf.mxu0
          %v2453 = vadd.f32 0.0, %v2452
          %v2454 = vpop.f32.mrf.mxu0
          %v2455 = vadd.f32 0.0, %v2454
          %2456 = vmatmul.bf16.gmra.mxu0 %v1448
          %v2457 = vpop.f32.mrf.mxu0
          %v2458 = vadd.f32 0.0, %v2457
          %v2459 = vpop.f32.mrf.mxu0
          %v2460 = vadd.f32 0.0, %v2459
          %2461 = vmatmul.bf16.gmra.mxu0 %v1451
          %v2462 = vpop.f32.mrf.mxu0
          %v2463 = vadd.f32 0.0, %v2462
          %v2464 = vpop.f32.mrf.mxu0
          %v2465 = vadd.f32 0.0, %v2464
          %2466 = vmatmul.bf16.gmra.mxu0 %v1454
          %v2467 = vpop.f32.mrf.mxu0
          %v2468 = vadd.f32 0.0, %v2467
          %v2469 = vpop.f32.mrf.mxu0
          %v2470 = vadd.f32 0.0, %v2469
          %2471 = vmatmul.bf16.gmra.mxu0 %v1457
          %v2472 = vpop.f32.mrf.mxu0
          %v2473 = vadd.f32 0.0, %v2472
          %v2474 = vpop.f32.mrf.mxu0
          %v2475 = vadd.f32 0.0, %v2474
          %2476 = vmatmul.bf16.gmra.mxu0 %v1460
          %v2477 = vpop.f32.mrf.mxu0
          %v2478 = vadd.f32 0.0, %v2477
          %v2479 = vpop.f32.mrf.mxu0
          %v2480 = vadd.f32 0.0, %v2479
          %2481 = vmatmul.bf16.gmra.mxu0 %v1463
          %v2482 = vpop.f32.mrf.mxu0
          %v2483 = vadd.f32 0.0, %v2482
          %v2484 = vpop.f32.mrf.mxu0
          %v2485 = vadd.f32 0.0, %v2484
          %2486 = vmatmul.bf16.gmra.mxu0 %v1466
          %v2487 = vpop.f32.mrf.mxu0
          %v2488 = vadd.f32 0.0, %v2487
          %v2489 = vpop.f32.mrf.mxu0
          %v2490 = vadd.f32 0.0, %v2489
          %2491 = vmatmul.bf16.gmra.mxu0 %v1469
          %v2492 = vpop.f32.mrf.mxu0
          %v2493 = vadd.f32 0.0, %v2492
          %v2494 = vpop.f32.mrf.mxu0
          %v2495 = vadd.f32 0.0, %v2494
          %2496 = vmatmul.bf16.gmra.mxu0 %v1472
          %v2497 = vpop.f32.mrf.mxu0
          %v2498 = vadd.f32 0.0, %v2497
          %v2499 = vpop.f32.mrf.mxu0
          %v2500 = vadd.f32 0.0, %v2499
          %2501 = vmatmul.bf16.gmra.mxu0 %v1475
          %v2502 = vpop.f32.mrf.mxu0
          %v2503 = vadd.f32 0.0, %v2502
          %v2504 = vpop.f32.mrf.mxu0
          %v2505 = vadd.f32 0.0, %v2504
          %2506 = vmatmul.bf16.gmra.mxu0 %v1478
          %v2507 = vpop.f32.mrf.mxu0
          %v2508 = vadd.f32 0.0, %v2507
          %v2509 = vpop.f32.mrf.mxu0
          %v2510 = vadd.f32 0.0, %v2509
          %2511 = vdwg.mxu0
          %v2512 = vadd.f32 %v2324, %v2433
          %v2513 = vadd.f32 %v2326, %v2435
          %v2514 = vadd.f32 %v2329, %v2438
          %v2515 = vadd.f32 %v2331, %v2440
          %v2516 = vadd.f32 %v2334, %v2443
          %v2517 = vadd.f32 %v2336, %v2445
          %v2518 = vadd.f32 %v2339, %v2448
          %v2519 = vadd.f32 %v2341, %v2450
          %v2520 = vadd.f32 %v2344, %v2453
          %v2521 = vadd.f32 %v2346, %v2455
          %v2522 = vadd.f32 %v2349, %v2458
          %v2523 = vadd.f32 %v2351, %v2460
          %v2524 = vadd.f32 %v2354, %v2463
          %v2525 = vadd.f32 %v2356, %v2465
          %v2526 = vadd.f32 %v2359, %v2468
          %v2527 = vadd.f32 %v2361, %v2470
          %v2528 = vadd.f32 %v2364, %v2473
          %v2529 = vadd.f32 %v2366, %v2475
          %v2530 = vadd.f32 %v2369, %v2478
          %v2531 = vadd.f32 %v2371, %v2480
          %v2532 = vadd.f32 %v2374, %v2483
          %v2533 = vadd.f32 %v2376, %v2485
          %v2534 = vadd.f32 %v2379, %v2488
          %v2535 = vadd.f32 %v2381, %v2490
          %v2536 = vadd.f32 %v2384, %v2493
          %v2537 = vadd.f32 %v2386, %v2495
          %v2538 = vadd.f32 %v2389, %v2498
          %v2539 = vadd.f32 %v2391, %v2500
          %v2540 = vadd.f32 %v2394, %v2503
          %v2541 = vadd.f32 %v2396, %v2505
          %v2542 = vadd.f32 %v2399, %v2508
          %v2543 = vadd.f32 %v2401, %v2510
          %v2544 = vrot.slane %v2512, 1
          %v2545 = vrot.slane %v2513, 1
          %v2546 = vrot.slane %v2514, 1
          %v2547 = vrot.slane %v2515, 1
          %v2548 = vrot.slane %v2516, 1
          %v2549 = vrot.slane %v2517, 1
          %v2550 = vrot.slane %v2518, 1
          %v2551 = vrot.slane %v2519, 1
          %v2552 = vrot.slane %v2520, 1
          %v2553 = vrot.slane %v2521, 1
          %v2554 = vrot.slane %v2522, 1
          %v2555 = vrot.slane %v2523, 1
          %v2556 = vrot.slane %v2524, 1
          %v2557 = vrot.slane %v2525, 1
          %v2558 = vrot.slane %v2526, 1
          %v2559 = vrot.slane %v2527, 1
          %v2560 = vrot.slane %v2528, 1
          %v2561 = vrot.slane %v2529, 1
          %v2562 = vrot.slane %v2530, 1
          %v2563 = vrot.slane %v2531, 1
          %v2564 = vrot.slane %v2532, 1
          %v2565 = vrot.slane %v2533, 1
          %v2566 = vrot.slane %v2534, 1
          %v2567 = vrot.slane %v2535, 1
          %v2568 = vrot.slane %v2536, 1
          %v2569 = vrot.slane %v2537, 1
          %v2570 = vrot.slane %v2538, 1
          %v2571 = vrot.slane %v2539, 1
          %v2572 = vrot.slane %v2540, 1
          %v2573 = vrot.slane %v2541, 1
          %v2574 = vrot.slane %v2542, 1
          %v2575 = vrot.slane %v2543, 1
          %vm2576 = vcmp.lt.s32.totalorder %v350, 7
          %v2577 = vsel %vm2576, %v2574, %v2575
          %v2578 = vsel %vm2576, %v2573, %v2574
          %v2579 = vsel %vm2576, %v2572, %v2573
          %v2580 = vsel %vm2576, %v2571, %v2572
          %v2581 = vsel %vm2576, %v2570, %v2571
          %v2582 = vsel %vm2576, %v2569, %v2570
          %v2583 = vsel %vm2576, %v2568, %v2569
          %v2584 = vsel %vm2576, %v2567, %v2568
          %v2585 = vsel %vm2576, %v2566, %v2567
          %v2586 = vsel %vm2576, %v2565, %v2566
          %v2587 = vsel %vm2576, %v2564, %v2565
          %v2588 = vsel %vm2576, %v2563, %v2564
          %v2589 = vsel %vm2576, %v2562, %v2563
          %v2590 = vsel %vm2576, %v2561, %v2562
          %v2591 = vsel %vm2576, %v2560, %v2561
          %v2592 = vsel %vm2576, %v2559, %v2560
          %v2593 = vsel %vm2576, %v2558, %v2559
          %v2594 = vsel %vm2576, %v2557, %v2558
          %v2595 = vsel %vm2576, %v2556, %v2557
          %v2596 = vsel %vm2576, %v2555, %v2556
          %v2597 = vsel %vm2576, %v2554, %v2555
          %v2598 = vsel %vm2576, %v2553, %v2554
          %v2599 = vsel %vm2576, %v2552, %v2553
          %v2600 = vsel %vm2576, %v2551, %v2552
          %v2601 = vsel %vm2576, %v2550, %v2551
          %v2602 = vsel %vm2576, %v2549, %v2550
          %v2603 = vsel %vm2576, %v2548, %v2549
          %v2604 = vsel %vm2576, %v2547, %v2548
          %v2605 = vsel %vm2576, %v2546, %v2547
          %v2606 = vsel %vm2576, %v2545, %v2546
          %v2607 = vsel %vm2576, %v2544, %v2545
          %v2608 = vsel %vm2576, %v2575, %v2544
          %v2609 = vsel %vm798, 1, 0
          %v2610 = vsel %vm799, 1, 0
          %v2611 = vsel %vm800, 1, 0
          %v2612 = vsel %vm801, 1, 0
          %v2613 = vsel %vm802, 1, 0
          %v2614 = vsel %vm803, 1, 0
          %v2615 = vsel %vm804, 1, 0
          %v2616 = vsel %vm805, 1, 0
          %v2617 = vsel %vm806, 1, 0
          %v2618 = vsel %vm807, 1, 0
          %v2619 = vsel %vm808, 1, 0
          %v2620 = vsel %vm809, 1, 0
          %v2621 = vsel %vm810, 1, 0
          %v2622 = vsel %vm811, 1, 0
          %v2623 = vsel %vm812, 1, 0
          %v2624 = vsel %vm813, 1, 0
          %v2625 = vsel %vm814, 1, 0
          %v2626 = vsel %vm815, 1, 0
          %v2627 = vsel %vm816, 1, 0
          %v2628 = vsel %vm817, 1, 0
          %v2629 = vsel %vm818, 1, 0
          %v2630 = vsel %vm819, 1, 0
          %v2631 = vsel %vm820, 1, 0
          %v2632 = vsel %vm821, 1, 0
          %v2633 = vsel %vm822, 1, 0
          %v2634 = vsel %vm823, 1, 0
          %v2635 = vsel %vm824, 1, 0
          %v2636 = vsel %vm825, 1, 0
          %v2637 = vsel %vm826, 1, 0
          %v2638 = vsel %vm827, 1, 0
          %v2639 = vsel %vm828, 1, 0
          %v2640 = vsel %vm829, 1, 0
          %vm2641 = vcmp.eq.s32.totalorder %v2609, 1
          %vm2642 = vcmp.eq.s32.totalorder %v2610, 1
          %vm2643 = vcmp.eq.s32.totalorder %v2611, 1
          %vm2644 = vcmp.eq.s32.totalorder %v2612, 1
          %vm2645 = vcmp.eq.s32.totalorder %v2613, 1
          %vm2646 = vcmp.eq.s32.totalorder %v2614, 1
          %vm2647 = vcmp.eq.s32.totalorder %v2615, 1
          %vm2648 = vcmp.eq.s32.totalorder %v2616, 1
          %vm2649 = vcmp.eq.s32.totalorder %v2617, 1
          %vm2650 = vcmp.eq.s32.totalorder %v2618, 1
          %vm2651 = vcmp.eq.s32.totalorder %v2619, 1
          %vm2652 = vcmp.eq.s32.totalorder %v2620, 1
          %vm2653 = vcmp.eq.s32.totalorder %v2621, 1
          %vm2654 = vcmp.eq.s32.totalorder %v2622, 1
          %vm2655 = vcmp.eq.s32.totalorder %v2623, 1
          %vm2656 = vcmp.eq.s32.totalorder %v2624, 1
          %vm2657 = vcmp.eq.s32.totalorder %v2625, 1
          %vm2658 = vcmp.eq.s32.totalorder %v2626, 1
          %vm2659 = vcmp.eq.s32.totalorder %v2627, 1
          %vm2660 = vcmp.eq.s32.totalorder %v2628, 1
          %vm2661 = vcmp.eq.s32.totalorder %v2629, 1
          %vm2662 = vcmp.eq.s32.totalorder %v2630, 1
          %vm2663 = vcmp.eq.s32.totalorder %v2631, 1
          %vm2664 = vcmp.eq.s32.totalorder %v2632, 1
          %vm2665 = vcmp.eq.s32.totalorder %v2633, 1
          %vm2666 = vcmp.eq.s32.totalorder %v2634, 1
          %vm2667 = vcmp.eq.s32.totalorder %v2635, 1
          %vm2668 = vcmp.eq.s32.totalorder %v2636, 1
          %vm2669 = vcmp.eq.s32.totalorder %v2637, 1
          %vm2670 = vcmp.eq.s32.totalorder %v2638, 1
          %vm2671 = vcmp.eq.s32.totalorder %v2639, 1
          %vm2672 = vcmp.eq.s32.totalorder %v2640, 1
          %v2673 = vsel %vm2641, %v2607, 0.0
          %v2674 = vsel %vm2642, %v2606, 0.0
          %v2675 = vsel %vm2643, %v2605, 0.0
          %v2676 = vsel %vm2644, %v2604, 0.0
          %v2677 = vsel %vm2645, %v2603, 0.0
          %v2678 = vsel %vm2646, %v2602, 0.0
          %v2679 = vsel %vm2647, %v2601, 0.0
          %v2680 = vsel %vm2648, %v2600, 0.0
          %v2681 = vsel %vm2649, %v2599, 0.0
          %v2682 = vsel %vm2650, %v2598, 0.0
          %v2683 = vsel %vm2651, %v2597, 0.0
          %v2684 = vsel %vm2652, %v2596, 0.0
          %v2685 = vsel %vm2653, %v2595, 0.0
          %v2686 = vsel %vm2654, %v2594, 0.0
          %v2687 = vsel %vm2655, %v2593, 0.0
          %v2688 = vsel %vm2656, %v2592, 0.0
          %v2689 = vsel %vm2657, %v2591, 0.0
          %v2690 = vsel %vm2658, %v2590, 0.0
          %v2691 = vsel %vm2659, %v2589, 0.0
          %v2692 = vsel %vm2660, %v2588, 0.0
          %v2693 = vsel %vm2661, %v2587, 0.0
          %v2694 = vsel %vm2662, %v2586, 0.0
          %v2695 = vsel %vm2663, %v2585, 0.0
          %v2696 = vsel %vm2664, %v2584, 0.0
          %v2697 = vsel %vm2665, %v2583, 0.0
          %v2698 = vsel %vm2666, %v2582, 0.0
          %v2699 = vsel %vm2667, %v2581, 0.0
          %v2700 = vsel %vm2668, %v2580, 0.0
          %v2701 = vsel %vm2669, %v2579, 0.0
          %v2702 = vsel %vm2670, %v2578, 0.0
          %v2703 = vsel %vm2671, %v2577, 0.0
          %v2704 = vsel %vm2672, %v2608, 0.0
          %v2705 = vadd.f32 %v2153, %v2673
          %v2706 = vadd.f32 %v2154, %v2674
          %v2707 = vadd.f32 %v2155, %v2675
          %v2708 = vadd.f32 %v2156, %v2676
          %v2709 = vadd.f32 %v2157, %v2677
          %v2710 = vadd.f32 %v2158, %v2678
          %v2711 = vadd.f32 %v2159, %v2679
          %v2712 = vadd.f32 %v2160, %v2680
          %v2713 = vadd.f32 %v2161, %v2681
          %v2714 = vadd.f32 %v2162, %v2682
          %v2715 = vadd.f32 %v2163, %v2683
          %v2716 = vadd.f32 %v2164, %v2684
          %v2717 = vadd.f32 %v2165, %v2685
          %v2718 = vadd.f32 %v2166, %v2686
          %v2719 = vadd.f32 %v2167, %v2687
          %v2720 = vadd.f32 %v2168, %v2688
          %v2721 = vadd.f32 %v2169, %v2689
          %v2722 = vadd.f32 %v2170, %v2690
          %v2723 = vadd.f32 %v2171, %v2691
          %v2724 = vadd.f32 %v2172, %v2692
          %v2725 = vadd.f32 %v2173, %v2693
          %v2726 = vadd.f32 %v2174, %v2694
          %v2727 = vadd.f32 %v2175, %v2695
          %v2728 = vadd.f32 %v2176, %v2696
          %v2729 = vadd.f32 %v2177, %v2697
          %v2730 = vadd.f32 %v2178, %v2698
          %v2731 = vadd.f32 %v2179, %v2699
          %v2732 = vadd.f32 %v2180, %v2700
          %v2733 = vadd.f32 %v2181, %v2701
          %v2734 = vadd.f32 %v2182, %v2702
          %v2735 = vadd.f32 %v2183, %v2703
          %v2736 = vadd.f32 %v2184, %v2704
          %s2737 = scalar_lea.vmem %s2, %s906
          %v2738 = vld [vmem:[%s2737] sm:$0x1]
          %v2740 = vperm.slane %v2738, 0
          %v2742 = vadd.f32 %v2705, %v2740
          %v2743 = vadd.f32 %v2706, %v2740
          %v2744 = vadd.f32 %v2707, %v2740
          %v2745 = vadd.f32 %v2708, %v2740
          %v2746 = vadd.f32 %v2709, %v2740
          %v2747 = vadd.f32 %v2710, %v2740
          %v2748 = vadd.f32 %v2711, %v2740
          %v2749 = vadd.f32 %v2712, %v2740
          %v2750 = vadd.f32 %v2713, %v2740
          %v2751 = vadd.f32 %v2714, %v2740
          %v2752 = vadd.f32 %v2715, %v2740
          %v2753 = vadd.f32 %v2716, %v2740
          %v2754 = vadd.f32 %v2717, %v2740
          %v2755 = vadd.f32 %v2718, %v2740
          %v2756 = vadd.f32 %v2719, %v2740
          %v2757 = vadd.f32 %v2720, %v2740
          %v2758 = vadd.f32 %v2721, %v2740
          %v2759 = vadd.f32 %v2722, %v2740
          %v2760 = vadd.f32 %v2723, %v2740
          %v2761 = vadd.f32 %v2724, %v2740
          %v2762 = vadd.f32 %v2725, %v2740
          %v2763 = vadd.f32 %v2726, %v2740
          %v2764 = vadd.f32 %v2727, %v2740
          %v2765 = vadd.f32 %v2728, %v2740
          %v2766 = vadd.f32 %v2729, %v2740
          %v2767 = vadd.f32 %v2730, %v2740
          %v2768 = vadd.f32 %v2731, %v2740
          %v2769 = vadd.f32 %v2732, %v2740
          %v2770 = vadd.f32 %v2733, %v2740
          %v2771 = vadd.f32 %v2734, %v2740
          %v2772 = vadd.f32 %v2735, %v2740
          %v2773 = vadd.f32 %v2736, %v2740
          %v2774 = vsel %vm1053, %v2742, 0.0
          %v2775 = vsel %vm1053, %v2743, 0.0
          %v2776 = vadd.f32 %v2774, %v2775
          %v2777 = vsel %vm1053, %v2744, 0.0
          %v2778 = vadd.f32 %v2776, %v2777
          %v2779 = vsel %vm1053, %v2745, 0.0
          %v2780 = vadd.f32 %v2778, %v2779
          %v2781 = vsel %vm1053, %v2746, 0.0
          %v2782 = vadd.f32 %v2780, %v2781
          %v2783 = vsel %vm1053, %v2747, 0.0
          %v2784 = vadd.f32 %v2782, %v2783
          %v2785 = vsel %vm1053, %v2748, 0.0
          %v2786 = vadd.f32 %v2784, %v2785
          %v2787 = vsel %vm1053, %v2749, 0.0
          %v2788 = vadd.f32 %v2786, %v2787
          %v2789 = vsel %vm1053, %v2750, 0.0
          %v2790 = vadd.f32 %v2788, %v2789
          %v2791 = vsel %vm1053, %v2751, 0.0
          %v2792 = vadd.f32 %v2790, %v2791
          %v2793 = vsel %vm1053, %v2752, 0.0
          %v2794 = vadd.f32 %v2792, %v2793
          %v2795 = vsel %vm1053, %v2753, 0.0
          %v2796 = vadd.f32 %v2794, %v2795
          %v2797 = vsel %vm1053, %v2754, 0.0
          %v2798 = vadd.f32 %v2796, %v2797
          %v2799 = vsel %vm1053, %v2755, 0.0
          %v2800 = vadd.f32 %v2798, %v2799
          %v2801 = vsel %vm1053, %v2756, 0.0
          %v2802 = vadd.f32 %v2800, %v2801
          %v2803 = vsel %vm1053, %v2757, 0.0
          %v2804 = vadd.f32 %v2802, %v2803
          %v2805 = vsel %vm1053, %v2758, 0.0
          %v2806 = vadd.f32 %v2804, %v2805
          %v2807 = vsel %vm1053, %v2759, 0.0
          %v2808 = vadd.f32 %v2806, %v2807
          %v2809 = vsel %vm1053, %v2760, 0.0
          %v2810 = vadd.f32 %v2808, %v2809
          %v2811 = vsel %vm1053, %v2761, 0.0
          %v2812 = vadd.f32 %v2810, %v2811
          %v2813 = vsel %vm1053, %v2762, 0.0
          %v2814 = vadd.f32 %v2812, %v2813
          %v2815 = vsel %vm1053, %v2763, 0.0
          %v2816 = vadd.f32 %v2814, %v2815
          %v2817 = vsel %vm1053, %v2764, 0.0
          %v2818 = vadd.f32 %v2816, %v2817
          %v2819 = vsel %vm1053, %v2765, 0.0
          %v2820 = vadd.f32 %v2818, %v2819
          %v2821 = vsel %vm1053, %v2766, 0.0
          %v2822 = vadd.f32 %v2820, %v2821
          %v2823 = vsel %vm1053, %v2767, 0.0
          %v2824 = vadd.f32 %v2822, %v2823
          %v2825 = vsel %vm1053, %v2768, 0.0
          %v2826 = vadd.f32 %v2824, %v2825
          %v2827 = vsel %vm1053, %v2769, 0.0
          %v2828 = vadd.f32 %v2826, %v2827
          %v2829 = vsel %vm1053, %v2770, 0.0
          %v2830 = vadd.f32 %v2828, %v2829
          %v2831 = vsel %vm1053, %v2771, 0.0
          %v2832 = vadd.f32 %v2830, %v2831
          %v2833 = vsel %vm1053, %v2772, 0.0
          %v2834 = vadd.f32 %v2832, %v2833
          %v2835 = vsel %vm1053, %v2773, 0.0
          %v2836 = vadd.f32 %v2834, %v2835
          %v2837 = vrot.slane %v2836, 4
          %v2838 = vadd.f32 %v2836, %v2837
          %v2839 = vrot.slane %v2838, 2
          %v2840 = vadd.f32 %v2838, %v2839
          %v2841 = vrot.slane %v2840, 1
          %v2842 = vadd.f32 %v2840, %v2841
          %v2843 = vmul.f32 %v2742, %v2742
          %v2844 = vmul.f32 %v2743, %v2743
          %v2845 = vmul.f32 %v2744, %v2744
          %v2846 = vmul.f32 %v2745, %v2745
          %v2847 = vmul.f32 %v2746, %v2746
          %v2848 = vmul.f32 %v2747, %v2747
          %v2849 = vmul.f32 %v2748, %v2748
          %v2850 = vmul.f32 %v2749, %v2749
          %v2851 = vmul.f32 %v2750, %v2750
          %v2852 = vmul.f32 %v2751, %v2751
          %v2853 = vmul.f32 %v2752, %v2752
          %v2854 = vmul.f32 %v2753, %v2753
          %v2855 = vmul.f32 %v2754, %v2754
          %v2856 = vmul.f32 %v2755, %v2755
          %v2857 = vmul.f32 %v2756, %v2756
          %v2858 = vmul.f32 %v2757, %v2757
          %v2859 = vmul.f32 %v2758, %v2758
          %v2860 = vmul.f32 %v2759, %v2759
          %v2861 = vmul.f32 %v2760, %v2760
          %v2862 = vmul.f32 %v2761, %v2761
          %v2863 = vmul.f32 %v2762, %v2762
          %v2864 = vmul.f32 %v2763, %v2763
          %v2865 = vmul.f32 %v2764, %v2764
          %v2866 = vmul.f32 %v2765, %v2765
          %v2867 = vmul.f32 %v2766, %v2766
          %v2868 = vmul.f32 %v2767, %v2767
          %v2869 = vmul.f32 %v2768, %v2768
          %v2870 = vmul.f32 %v2769, %v2769
          %v2871 = vmul.f32 %v2770, %v2770
          %v2872 = vmul.f32 %v2771, %v2771
          %v2873 = vmul.f32 %v2772, %v2772
          %v2874 = vmul.f32 %v2773, %v2773
          %v2875 = vsel %vm1053, %v2843, 0.0
          %v2876 = vsel %vm1053, %v2844, 0.0
          %v2877 = vadd.f32 %v2875, %v2876
          %v2878 = vsel %vm1053, %v2845, 0.0
          %v2879 = vadd.f32 %v2877, %v2878
          %v2880 = vsel %vm1053, %v2846, 0.0
          %v2881 = vadd.f32 %v2879, %v2880
          %v2882 = vsel %vm1053, %v2847, 0.0
          %v2883 = vadd.f32 %v2881, %v2882
          %v2884 = vsel %vm1053, %v2848, 0.0
          %v2885 = vadd.f32 %v2883, %v2884
          %v2886 = vsel %vm1053, %v2849, 0.0
          %v2887 = vadd.f32 %v2885, %v2886
          %v2888 = vsel %vm1053, %v2850, 0.0
          %v2889 = vadd.f32 %v2887, %v2888
          %v2890 = vsel %vm1053, %v2851, 0.0
          %v2891 = vadd.f32 %v2889, %v2890
          %v2892 = vsel %vm1053, %v2852, 0.0
          %v2893 = vadd.f32 %v2891, %v2892
          %v2894 = vsel %vm1053, %v2853, 0.0
          %v2895 = vadd.f32 %v2893, %v2894
          %v2896 = vsel %vm1053, %v2854, 0.0
          %v2897 = vadd.f32 %v2895, %v2896
          %v2898 = vsel %vm1053, %v2855, 0.0
          %v2899 = vadd.f32 %v2897, %v2898
          %v2900 = vsel %vm1053, %v2856, 0.0
          %v2901 = vadd.f32 %v2899, %v2900
          %v2902 = vsel %vm1053, %v2857, 0.0
          %v2903 = vadd.f32 %v2901, %v2902
          %v2904 = vsel %vm1053, %v2858, 0.0
          %v2905 = vadd.f32 %v2903, %v2904
          %v2906 = vsel %vm1053, %v2859, 0.0
          %v2907 = vadd.f32 %v2905, %v2906
          %v2908 = vsel %vm1053, %v2860, 0.0
          %v2909 = vadd.f32 %v2907, %v2908
          %v2910 = vsel %vm1053, %v2861, 0.0
          %v2911 = vadd.f32 %v2909, %v2910
          %v2912 = vsel %vm1053, %v2862, 0.0
          %v2913 = vadd.f32 %v2911, %v2912
          %v2914 = vsel %vm1053, %v2863, 0.0
          %v2915 = vadd.f32 %v2913, %v2914
          %v2916 = vsel %vm1053, %v2864, 0.0
          %v2917 = vadd.f32 %v2915, %v2916
          %v2918 = vsel %vm1053, %v2865, 0.0
          %v2919 = vadd.f32 %v2917, %v2918
          %v2920 = vsel %vm1053, %v2866, 0.0
          %v2921 = vadd.f32 %v2919, %v2920
          %v2922 = vsel %vm1053, %v2867, 0.0
          %v2923 = vadd.f32 %v2921, %v2922
          %v2924 = vsel %vm1053, %v2868, 0.0
          %v2925 = vadd.f32 %v2923, %v2924
          %v2926 = vsel %vm1053, %v2869, 0.0
          %v2927 = vadd.f32 %v2925, %v2926
          %v2928 = vsel %vm1053, %v2870, 0.0
          %v2929 = vadd.f32 %v2927, %v2928
          %v2930 = vsel %vm1053, %v2871, 0.0
          %v2931 = vadd.f32 %v2929, %v2930
          %v2932 = vsel %vm1053, %v2872, 0.0
          %v2933 = vadd.f32 %v2931, %v2932
          %v2934 = vsel %vm1053, %v2873, 0.0
          %v2935 = vadd.f32 %v2933, %v2934
          %v2936 = vsel %vm1053, %v2874, 0.0
          %v2937 = vadd.f32 %v2935, %v2936
          %v2938 = vrot.slane %v2937, 4
          %v2939 = vadd.f32 %v2937, %v2938
          %v2940 = vrot.slane %v2939, 2
          %v2941 = vadd.f32 %v2939, %v2940
          %v2942 = vrot.slane %v2941, 1
          %v2943 = vadd.f32 %v2941, %v2942
          %vm2944 = vcmask 1040384
          %v2945 = vsel %vm2944, %v2842, %v2943
          %v2947 = vsel %vm1053, %v2945, 0
          %2949 = vmatpush.msra.mxu0 0.0
          %2950 = vmatpush.msra.mxu0 0.0
          %2951 = vmatpush.msra.mxu0 0.0
          %2952 = vmatpush.msra.mxu0 0.0
          %2953 = vmatpush.msra.mxu0 0.0
          %2954 = vmatpush.msra.mxu0 0.0
          %2955 = vmatpush.msra.mxu0 0.0
          %2956 = vmatpush.msra.mxu0 0.0
          %2957 = vmatpush.msra.mxu0 0.0
          %2958 = vmatpush.msra.mxu0 0.0
          %2959 = vmatpush.msra.mxu0 0.0
          %2960 = vmatpush.msra.mxu0 0.0
          %2961 = vmatpush.msra.mxu0 %v902
          %2962 = vmatpush.msra.mxu0 %v901
          %2963 = vmatpush.msra.mxu0 %v900
          %2964 = vmatpush.msra.mxu0 %v899
          %2965 = vmatmul.f32.gmra.mxu0 %v2947
          %v2966 = vpop.f32.mrf.mxu0
          %v2967 = vadd.f32 0.0, %v2966
          %2968 = vdwg.mxu0
          %v2969 = vmul.f32 %v2967, 0.001953125
          %v2970 = vmul.f32 %v2969, %v2969
          %v2972 = vrot.slane %v2970, 7
          %v2974 = vsub.f32 %v2969, %v2972
          %v2975 = vadd.f32 %v2974, 1e-05
          %v2976 = vrsqrt.pop %v2975
          %v2977 = vmul.f32 %v2976, %v2975
          %v2978 = vmul.f32 %v2977, %v2976
          %v2979 = vmul.f32 0.5, %v2978
          %v2980 = vsub.f32 1.5, %v2979
          %v2981 = vmul.f32 %v2976, %v2980
          %vm2982 = vweird.f32 %v2975
          %vm2983 = vweird.f32 %v2976
          %vm2984 = vmor %vm2982, %vm2983
          %v2985 = vsel %vm2984, %v2976, %v2981
          %v2986 = vsel %vm2944, %v2969, %v2985
          %vm2987 = vcmask 130048
          %v2989 = vsel %vm2987, %v2986, 0
          %2991 = vmatpush.msra.mxu0 0.0
          %2992 = vmatpush.msra.mxu0 0.0
          %2993 = vmatpush.msra.mxu0 0.0
          %2994 = vmatpush.msra.mxu0 0.0
          %2995 = vmatpush.msra.mxu0 0.0
          %2996 = vmatpush.msra.mxu0 0.0
          %2997 = vmatpush.msra.mxu0 0.0
          %2998 = vmatpush.msra.mxu0 0.0
          %2999 = vmatpush.msra.mxu0 0.0
          %3000 = vmatpush.msra.mxu0 0.0
          %3001 = vmatpush.msra.mxu0 0.0
          %3002 = vmatpush.msra.mxu0 0.0
          %3003 = vmatpush.msra.mxu0 0.0
          %3004 = vmatpush.msra.mxu0 0.0
          %3005 = vmatpush.msra.mxu0 %v904
          %3006 = vmatpush.msra.mxu0 %v903
          %3007 = vmatmul.f32.gmra.mxu0 %v2989
          %v3008 = vpop.f32.mrf.mxu0
          %v3009 = vadd.f32 0.0, %v3008
          %3010 = vdwg.mxu0
          %s3011 = scalar_lea.vmem %s3, %s906
          %v3012 = vld [vmem:[%s3011] sm:$0x1]
          %v3014 = vperm.slane %v3012, 0
          %v3016 = vmul.f32 %v3009, %v3014
          %s3017 = scalar_lea.vmem %s4, %s906
          %v3018 = vld [vmem:[%s3017] sm:$0x1]
          %v3020 = vrot.slane %v3016, 1
          %v3022 = vmul.f32 %v3009, %v3020
          %v3023 = vsub.f32 %v3018, %v3022
          %v3024 = vperm.slane %v3016, 1
          %v3025 = vmul.f32 %v2742, %v3024
          %v3026 = vmul.f32 %v2743, %v3024
          %v3027 = vmul.f32 %v2744, %v3024
          %v3028 = vmul.f32 %v2745, %v3024
          %v3029 = vmul.f32 %v2746, %v3024
          %v3030 = vmul.f32 %v2747, %v3024
          %v3031 = vmul.f32 %v2748, %v3024
          %v3032 = vmul.f32 %v2749, %v3024
          %v3033 = vmul.f32 %v2750, %v3024
          %v3034 = vmul.f32 %v2751, %v3024
          %v3035 = vmul.f32 %v2752, %v3024
          %v3036 = vmul.f32 %v2753, %v3024
          %v3037 = vmul.f32 %v2754, %v3024
          %v3038 = vmul.f32 %v2755, %v3024
          %v3039 = vmul.f32 %v2756, %v3024
          %v3040 = vmul.f32 %v2757, %v3024
          %v3041 = vmul.f32 %v2758, %v3024
          %v3042 = vmul.f32 %v2759, %v3024
          %v3043 = vmul.f32 %v2760, %v3024
          %v3044 = vmul.f32 %v2761, %v3024
          %v3045 = vmul.f32 %v2762, %v3024
          %v3046 = vmul.f32 %v2763, %v3024
          %v3047 = vmul.f32 %v2764, %v3024
          %v3048 = vmul.f32 %v2765, %v3024
          %v3049 = vmul.f32 %v2766, %v3024
          %v3050 = vmul.f32 %v2767, %v3024
          %v3051 = vmul.f32 %v2768, %v3024
          %v3052 = vmul.f32 %v2769, %v3024
          %v3053 = vmul.f32 %v2770, %v3024
          %v3054 = vmul.f32 %v2771, %v3024
          %v3055 = vmul.f32 %v2772, %v3024
          %v3056 = vmul.f32 %v2773, %v3024
          %v3058 = vperm.slane %v3023, 0
          %v3060 = vadd.f32 %v3025, %v3058
          %v3061 = vadd.f32 %v3026, %v3058
          %v3062 = vadd.f32 %v3027, %v3058
          %v3063 = vadd.f32 %v3028, %v3058
          %v3064 = vadd.f32 %v3029, %v3058
          %v3065 = vadd.f32 %v3030, %v3058
          %v3066 = vadd.f32 %v3031, %v3058
          %v3067 = vadd.f32 %v3032, %v3058
          %v3068 = vadd.f32 %v3033, %v3058
          %v3069 = vadd.f32 %v3034, %v3058
          %v3070 = vadd.f32 %v3035, %v3058
          %v3071 = vadd.f32 %v3036, %v3058
          %v3072 = vadd.f32 %v3037, %v3058
          %v3073 = vadd.f32 %v3038, %v3058
          %v3074 = vadd.f32 %v3039, %v3058
          %v3075 = vadd.f32 %v3040, %v3058
          %v3076 = vadd.f32 %v3041, %v3058
          %v3077 = vadd.f32 %v3042, %v3058
          %v3078 = vadd.f32 %v3043, %v3058
          %v3079 = vadd.f32 %v3044, %v3058
          %v3080 = vadd.f32 %v3045, %v3058
          %v3081 = vadd.f32 %v3046, %v3058
          %v3082 = vadd.f32 %v3047, %v3058
          %v3083 = vadd.f32 %v3048, %v3058
          %v3084 = vadd.f32 %v3049, %v3058
          %v3085 = vadd.f32 %v3050, %v3058
          %v3086 = vadd.f32 %v3051, %v3058
          %v3087 = vadd.f32 %v3052, %v3058
          %v3088 = vadd.f32 %v3053, %v3058
          %v3089 = vadd.f32 %v3054, %v3058
          %v3090 = vadd.f32 %v3055, %v3058
          %v3091 = vadd.f32 %v3056, %v3058
          %v3092 = vmax.f32 %v3060, 0.0
          %v3093 = vmax.f32 %v3061, 0.0
          %v3094 = vmax.f32 %v3062, 0.0
          %v3095 = vmax.f32 %v3063, 0.0
          %v3096 = vmax.f32 %v3064, 0.0
          %v3097 = vmax.f32 %v3065, 0.0
          %v3098 = vmax.f32 %v3066, 0.0
          %v3099 = vmax.f32 %v3067, 0.0
          %v3100 = vmax.f32 %v3068, 0.0
          %v3101 = vmax.f32 %v3069, 0.0
          %v3102 = vmax.f32 %v3070, 0.0
          %v3103 = vmax.f32 %v3071, 0.0
          %v3104 = vmax.f32 %v3072, 0.0
          %v3105 = vmax.f32 %v3073, 0.0
          %v3106 = vmax.f32 %v3074, 0.0
          %v3107 = vmax.f32 %v3075, 0.0
          %v3108 = vmax.f32 %v3076, 0.0
          %v3109 = vmax.f32 %v3077, 0.0
          %v3110 = vmax.f32 %v3078, 0.0
          %v3111 = vmax.f32 %v3079, 0.0
          %v3112 = vmax.f32 %v3080, 0.0
          %v3113 = vmax.f32 %v3081, 0.0
          %v3114 = vmax.f32 %v3082, 0.0
          %v3115 = vmax.f32 %v3083, 0.0
          %v3116 = vmax.f32 %v3084, 0.0
          %v3117 = vmax.f32 %v3085, 0.0
          %v3118 = vmax.f32 %v3086, 0.0
          %v3119 = vmax.f32 %v3087, 0.0
          %v3120 = vmax.f32 %v3088, 0.0
          %v3121 = vmax.f32 %v3089, 0.0
          %v3122 = vmax.f32 %v3090, 0.0
          %v3123 = vmax.f32 %v3091, 0.0
          %v3124 = vpack.c.bf16 %v3092, %v3092
          %v3125 = vpack.c.bf16 %v3093, %v3093
          %v3126 = vpack.c.bf16 %v3094, %v3094
          %v3127 = vpack.c.bf16 %v3095, %v3095
          %v3128 = vpack.c.bf16 %v3096, %v3096
          %v3129 = vpack.c.bf16 %v3097, %v3097
          %v3130 = vpack.c.bf16 %v3098, %v3098
          %v3131 = vpack.c.bf16 %v3099, %v3099
          %v3132 = vpack.c.bf16 %v3100, %v3100
          %v3133 = vpack.c.bf16 %v3101, %v3101
          %v3134 = vpack.c.bf16 %v3102, %v3102
          %v3135 = vpack.c.bf16 %v3103, %v3103
          %v3136 = vpack.c.bf16 %v3104, %v3104
          %v3137 = vpack.c.bf16 %v3105, %v3105
          %v3138 = vpack.c.bf16 %v3106, %v3106
          %v3139 = vpack.c.bf16 %v3107, %v3107
          %v3140 = vpack.c.bf16 %v3108, %v3108
          %v3141 = vpack.c.bf16 %v3109, %v3109
          %v3142 = vpack.c.bf16 %v3110, %v3110
          %v3143 = vpack.c.bf16 %v3111, %v3111
          %v3144 = vpack.c.bf16 %v3112, %v3112
          %v3145 = vpack.c.bf16 %v3113, %v3113
          %v3146 = vpack.c.bf16 %v3114, %v3114
          %v3147 = vpack.c.bf16 %v3115, %v3115
          %v3148 = vpack.c.bf16 %v3116, %v3116
          %v3149 = vpack.c.bf16 %v3117, %v3117
          %v3150 = vpack.c.bf16 %v3118, %v3118
          %v3151 = vpack.c.bf16 %v3119, %v3119
          %v3152 = vpack.c.bf16 %v3120, %v3120
          %v3153 = vpack.c.bf16 %v3121, %v3121
          %v3154 = vpack.c.bf16 %v3122, %v3122
          %v3155 = vpack.c.bf16 %v3123, %v3123
          %3156 = vst.msk [vmem:[#allocation2 + $0x8] sm:$0xf] %vm830, %v3124
          %3157 = vst.msk [vmem:[#allocation2 + $0xc] sm:$0xf] %vm830, %v3125
          %3158 = vst.msk [vmem:[#allocation2 + $0x10] sm:$0xf] %vm830, %v3126
          %3159 = vst.msk [vmem:[#allocation2 + $0x14] sm:$0xf] %vm830, %v3127
          %3160 = vst.msk [vmem:[#allocation2 + $0x18] sm:$0xf] %vm830, %v3128
          %3161 = vst.msk [vmem:[#allocation2 + $0x1c] sm:$0xf] %vm830, %v3129
          %3162 = vst.msk [vmem:[#allocation2 + $0x20] sm:$0xf] %vm830, %v3130
          %3163 = vst.msk [vmem:[#allocation2 + $0x24] sm:$0xf] %vm830, %v3131
          %3164 = vst.msk [vmem:[#allocation2 + $0x28] sm:$0xf] %vm830, %v3132
          %3165 = vst.msk [vmem:[#allocation2 + $0x2c] sm:$0xf] %vm830, %v3133
          %3166 = vst.msk [vmem:[#allocation2 + $0x30] sm:$0xf] %vm830, %v3134
          %3167 = vst.msk [vmem:[#allocation2 + $0x34] sm:$0xf] %vm830, %v3135
          %3168 = vst.msk [vmem:[#allocation2 + $0x38] sm:$0xf] %vm830, %v3136
          %3169 = vst.msk [vmem:[#allocation2 + $0x3c] sm:$0xf] %vm830, %v3137
          %3170 = vst.msk [vmem:[#allocation2 + $0x40] sm:$0xf] %vm830, %v3138
          %3171 = vst.msk [vmem:[#allocation2 + $0x44] sm:$0xf] %vm830, %v3139
          %3172 = vst.msk [vmem:[#allocation2 + $0x48] sm:$0xf] %vm830, %v3140
          %3173 = vst.msk [vmem:[#allocation2 + $0x4c] sm:$0xf] %vm830, %v3141
          %3174 = vst.msk [vmem:[#allocation2 + $0x50] sm:$0xf] %vm830, %v3142
          %3175 = vst.msk [vmem:[#allocation2 + $0x54] sm:$0xf] %vm830, %v3143
          %3176 = vst.msk [vmem:[#allocation2 + $0x58] sm:$0xf] %vm830, %v3144
          %3177 = vst.msk [vmem:[#allocation2 + $0x5c] sm:$0xf] %vm830, %v3145
          %3178 = vst.msk [vmem:[#allocation2 + $0x60] sm:$0xf] %vm830, %v3146
          %3179 = vst.msk [vmem:[#allocation2 + $0x64] sm:$0xf] %vm830, %v3147
          %3180 = vst.msk [vmem:[#allocation2 + $0x68] sm:$0xf] %vm830, %v3148
          %3181 = vst.msk [vmem:[#allocation2 + $0x6c] sm:$0xf] %vm830, %v3149
          %3182 = vst.msk [vmem:[#allocation2 + $0x70] sm:$0xf] %vm830, %v3150
          %3183 = vst.msk [vmem:[#allocation2 + $0x74] sm:$0xf] %vm830, %v3151
          %3184 = vst.msk [vmem:[#allocation2 + $0x78] sm:$0xf] %vm830, %v3152
          %3185 = vst.msk [vmem:[#allocation2 + $0x7c] sm:$0xf] %vm830, %v3153
          %3186 = vst.msk [vmem:[#allocation2 + $0x80] sm:$0xf] %vm830, %v3154
          %3187 = vst.msk [vmem:[#allocation2 + $0x84] sm:$0xf] %vm830, %v3155
        $region65: #{tpu_custom_call.1} parent=55 // loop_footer
          %s910 = sadd.s32 1, %s906
        $region66: #{tpu_custom_call.1} parent=55 // loop_footer_branch
          %905 = sbr.rel target = $region62
        $region67: #{tpu_custom_call.1} parent=55 // loop_exit
          _
        %v3188 = vld [vmem:[#allocation2] sm:$0xf]
        %v3189 = vld [vmem:[#allocation2 + $0x4] sm:$0xf]
        %v3190 = vld [vmem:[#allocation2 + $0x8] sm:$0xf]
        %v3191 = vld [vmem:[#allocation2 + $0xc] sm:$0xf]
        %v3192 = vld [vmem:[#allocation2 + $0x10] sm:$0xf]
        %v3193 = vld [vmem:[#allocation2 + $0x14] sm:$0xf]
        %v3194 = vld [vmem:[#allocation2 + $0x18] sm:$0xf]
        %v3195 = vld [vmem:[#allocation2 + $0x1c] sm:$0xf]
        %v3196 = vld [vmem:[#allocation2 + $0x20] sm:$0xf]
        %v3197 = vld [vmem:[#allocation2 + $0x24] sm:$0xf]
        %v3198 = vld [vmem:[#allocation2 + $0x28] sm:$0xf]
        %v3199 = vld [vmem:[#allocation2 + $0x2c] sm:$0xf]
        %v3200 = vld [vmem:[#allocation2 + $0x30] sm:$0xf]
        %v3201 = vld [vmem:[#allocation2 + $0x34] sm:$0xf]
        %v3202 = vld [vmem:[#allocation2 + $0x38] sm:$0xf]
        %v3203 = vld [vmem:[#allocation2 + $0x3c] sm:$0xf]
        %v3204 = vld [vmem:[#allocation2 + $0x40] sm:$0xf]
        %v3205 = vld [vmem:[#allocation2 + $0x44] sm:$0xf]
        %v3206 = vld [vmem:[#allocation2 + $0x48] sm:$0xf]
        %v3207 = vld [vmem:[#allocation2 + $0x4c] sm:$0xf]
        %v3208 = vld [vmem:[#allocation2 + $0x50] sm:$0xf]
        %v3209 = vld [vmem:[#allocation2 + $0x54] sm:$0xf]
        %v3210 = vld [vmem:[#allocation2 + $0x58] sm:$0xf]
        %v3211 = vld [vmem:[#allocation2 + $0x5c] sm:$0xf]
        %v3212 = vld [vmem:[#allocation2 + $0x60] sm:$0xf]
        %v3213 = vld [vmem:[#allocation2 + $0x64] sm:$0xf]
        %v3214 = vld [vmem:[#allocation2 + $0x68] sm:$0xf]
        %v3215 = vld [vmem:[#allocation2 + $0x6c] sm:$0xf]
        %v3216 = vld [vmem:[#allocation2 + $0x70] sm:$0xf]
        %v3217 = vld [vmem:[#allocation2 + $0x74] sm:$0xf]
        %v3218 = vld [vmem:[#allocation2 + $0x78] sm:$0xf]
        %v3219 = vld [vmem:[#allocation2 + $0x7c] sm:$0xf]
        %v3220 = vld [vmem:[%s5] sm:$0xf]
        %v3221 = vld [vmem:[%s5 + $0x4] sm:$0xf]
        %v3222 = vld [vmem:[%s5 + $0x8] sm:$0xf]
        %v3223 = vld [vmem:[%s5 + $0xc] sm:$0xf]
        %v3224 = vld [vmem:[#allocation2 + $0x80] sm:$0xf]
        %v3225 = vld [vmem:[#allocation2 + $0x84] sm:$0xf]
        %s3226 = scalar_lea.vmem %s5, 48
        %v3227 = vld [vmem:[%s3226] sm:$0xf]
        %v3228 = vld [vmem:[%s3226 + $0x4] sm:$0xf]
        %v3229 = vld [vmem:[%s3226 + $0x8] sm:$0xf]
        %v3230 = vld [vmem:[%s3226 + $0xc] sm:$0xf]
        %v3263 = vunpack.c.l.b16 %v3190
        %v3264 = vunpack.c.l.b16 %v3191
        %v3265 = vunpack.c.l.b16 %v3192
        %v3266 = vunpack.c.l.b16 %v3193
        %v3267 = vunpack.c.l.b16 %v3194
        %v3268 = vunpack.c.l.b16 %v3195
        %v3269 = vunpack.c.l.b16 %v3196
        %v3270 = vunpack.c.l.b16 %v3197
        %v3271 = vunpack.c.l.b16 %v3198
        %v3272 = vunpack.c.l.b16 %v3199
        %v3273 = vunpack.c.l.b16 %v3200
        %v3274 = vunpack.c.l.b16 %v3201
        %v3275 = vunpack.c.l.b16 %v3202
        %v3276 = vunpack.c.l.b16 %v3203
        %v3277 = vunpack.c.l.b16 %v3204
        %v3278 = vunpack.c.l.b16 %v3205
        %v3279 = vunpack.c.l.b16 %v3206
        %v3280 = vunpack.c.l.b16 %v3207
        %v3281 = vunpack.c.l.b16 %v3208
        %v3282 = vunpack.c.l.b16 %v3209
        %v3283 = vunpack.c.l.b16 %v3210
        %v3284 = vunpack.c.l.b16 %v3211
        %v3285 = vunpack.c.l.b16 %v3212
        %v3286 = vunpack.c.l.b16 %v3213
        %v3287 = vunpack.c.l.b16 %v3214
        %v3288 = vunpack.c.l.b16 %v3215
        %v3289 = vunpack.c.l.b16 %v3216
        %v3290 = vunpack.c.l.b16 %v3217
        %v3291 = vunpack.c.l.b16 %v3218
        %v3292 = vunpack.c.l.b16 %v3219
        %v3293 = vunpack.c.l.b16 %v3224
        %v3294 = vunpack.c.l.b16 %v3225
        %v3295 = vpack.c.b16 %v3264, %v3263
        %v3296 = vpack.c.b16 %v3266, %v3265
        %v3297 = vpack.c.b16 %v3268, %v3267
        %v3298 = vpack.c.b16 %v3270, %v3269
        %v3299 = vpack.c.b16 %v3272, %v3271
        %v3300 = vpack.c.b16 %v3274, %v3273
        %v3301 = vpack.c.b16 %v3276, %v3275
        %v3302 = vpack.c.b16 %v3278, %v3277
        %v3303 = vpack.c.b16 %v3280, %v3279
        %v3304 = vpack.c.b16 %v3282, %v3281
        %v3305 = vpack.c.b16 %v3284, %v3283
        %v3306 = vpack.c.b16 %v3286, %v3285
        %v3307 = vpack.c.b16 %v3288, %v3287
        %v3308 = vpack.c.b16 %v3290, %v3289
        %v3309 = vpack.c.b16 %v3292, %v3291
        %v3310 = vpack.c.b16 %v3294, %v3293
        %v3315 = vunpack.c.l.b16 %v3227
        %v3316 = vunpack.c.l.b16 %v3228
        %v3317 = vunpack.c.l.b16 %v3229
        %v3318 = vunpack.c.l.b16 %v3230
        %v3319 = vpack.c.b16 %v3316, %v3315
        %v3320 = vpack.c.b16 %v3318, %v3317
        %vm3323 = vcmask 261120
        %v3325 = vsel %vm3323, %v3295, 0
        %v3328 = vsel %vm3323, %v3296, 0
        %v3331 = vsel %vm3323, %v3297, 0
        %v3334 = vsel %vm3323, %v3298, 0
        %v3337 = vsel %vm3323, %v3299, 0
        %v3340 = vsel %vm3323, %v3300, 0
        %v3343 = vsel %vm3323, %v3301, 0
        %v3346 = vsel %vm3323, %v3302, 0
        %v3349 = vsel %vm3323, %v3303, 0
        %v3352 = vsel %vm3323, %v3304, 0
        %v3355 = vsel %vm3323, %v3305, 0
        %v3358 = vsel %vm3323, %v3306, 0
        %v3361 = vsel %vm3323, %v3307, 0
        %v3364 = vsel %vm3323, %v3308, 0
        %v3367 = vsel %vm3323, %v3309, 0
        %v3370 = vsel %vm3323, %v3310, 0
        %3372 = vmatpush.bf16.msra.mxu0 0
        %3373 = vmatpush.bf16.msra.mxu0 0
        %3374 = vmatpush.bf16.msra.mxu0 0
        %3375 = vmatpush.bf16.msra.mxu0 0
        %3376 = vmatpush.bf16.msra.mxu0 0
        %3377 = vmatpush.bf16.msra.mxu0 0
        %3378 = vmatpush.bf16.msra.mxu0 %v3320
        %3379 = vmatpush.bf16.msra.mxu0 %v3319
        %3380 = vmatmul.bf16.gmra.mxu0 %v3325
        %v3381 = vpop.f32.mrf.mxu0
        %v3382 = vadd.f32 0.0, %v3381
        %v3383 = vpop.f32.mrf.mxu0
        %v3384 = vadd.f32 0.0, %v3383
        %3385 = vmatmul.bf16.gmra.mxu0 %v3328
        %v3386 = vpop.f32.mrf.mxu0
        %v3387 = vadd.f32 0.0, %v3386
        %v3388 = vpop.f32.mrf.mxu0
        %v3389 = vadd.f32 0.0, %v3388
        %3390 = vmatmul.bf16.gmra.mxu0 %v3331
        %v3391 = vpop.f32.mrf.mxu0
        %v3392 = vadd.f32 0.0, %v3391
        %v3393 = vpop.f32.mrf.mxu0
        %v3394 = vadd.f32 0.0, %v3393
        %3395 = vmatmul.bf16.gmra.mxu0 %v3334
        %v3396 = vpop.f32.mrf.mxu0
        %v3397 = vadd.f32 0.0, %v3396
        %v3398 = vpop.f32.mrf.mxu0
        %v3399 = vadd.f32 0.0, %v3398
        %3400 = vmatmul.bf16.gmra.mxu0 %v3337
        %v3401 = vpop.f32.mrf.mxu0
        %v3402 = vadd.f32 0.0, %v3401
        %v3403 = vpop.f32.mrf.mxu0
        %v3404 = vadd.f32 0.0, %v3403
        %3405 = vmatmul.bf16.gmra.mxu0 %v3340
        %v3406 = vpop.f32.mrf.mxu0
        %v3407 = vadd.f32 0.0, %v3406
        %v3408 = vpop.f32.mrf.mxu0
        %v3409 = vadd.f32 0.0, %v3408
        %3410 = vmatmul.bf16.gmra.mxu0 %v3343
        %v3411 = vpop.f32.mrf.mxu0
        %v3412 = vadd.f32 0.0, %v3411
        %v3413 = vpop.f32.mrf.mxu0
        %v3414 = vadd.f32 0.0, %v3413
        %3415 = vmatmul.bf16.gmra.mxu0 %v3346
        %v3416 = vpop.f32.mrf.mxu0
        %v3417 = vadd.f32 0.0, %v3416
        %v3418 = vpop.f32.mrf.mxu0
        %v3419 = vadd.f32 0.0, %v3418
        %3420 = vmatmul.bf16.gmra.mxu0 %v3349
        %v3421 = vpop.f32.mrf.mxu0
        %v3422 = vadd.f32 0.0, %v3421
        %v3423 = vpop.f32.mrf.mxu0
        %v3424 = vadd.f32 0.0, %v3423
        %3425 = vmatmul.bf16.gmra.mxu0 %v3352
        %v3426 = vpop.f32.mrf.mxu0
        %v3427 = vadd.f32 0.0, %v3426
        %v3428 = vpop.f32.mrf.mxu0
        %v3429 = vadd.f32 0.0, %v3428
        %3430 = vmatmul.bf16.gmra.mxu0 %v3355
        %v3431 = vpop.f32.mrf.mxu0
        %v3432 = vadd.f32 0.0, %v3431
        %v3433 = vpop.f32.mrf.mxu0
        %v3434 = vadd.f32 0.0, %v3433
        %3435 = vmatmul.bf16.gmra.mxu0 %v3358
        %v3436 = vpop.f32.mrf.mxu0
        %v3437 = vadd.f32 0.0, %v3436
        %v3438 = vpop.f32.mrf.mxu0
        %v3439 = vadd.f32 0.0, %v3438
        %3440 = vmatmul.bf16.gmra.mxu0 %v3361
        %v3441 = vpop.f32.mrf.mxu0
        %v3442 = vadd.f32 0.0, %v3441
        %v3443 = vpop.f32.mrf.mxu0
        %v3444 = vadd.f32 0.0, %v3443
        %3445 = vmatmul.bf16.gmra.mxu0 %v3364
        %v3446 = vpop.f32.mrf.mxu0
        %v3447 = vadd.f32 0.0, %v3446
        %v3448 = vpop.f32.mrf.mxu0
        %v3449 = vadd.f32 0.0, %v3448
        %3450 = vmatmul.bf16.gmra.mxu0 %v3367
        %v3451 = vpop.f32.mrf.mxu0
        %v3452 = vadd.f32 0.0, %v3451
        %v3453 = vpop.f32.mrf.mxu0
        %v3454 = vadd.f32 0.0, %v3453
        %3455 = vmatmul.bf16.gmra.mxu0 %v3370
        %v3456 = vpop.f32.mrf.mxu0
        %v3457 = vadd.f32 0.0, %v3456
        %v3458 = vpop.f32.mrf.mxu0
        %v3459 = vadd.f32 0.0, %v3458
        %3460 = vdwg.mxu0
        %v3463 = vunpack.c.l.b16 %v3188
        %v3464 = vunpack.c.l.b16 %v3189
        %v3465 = vpack.c.b16 %v3464, %v3463
        %v3470 = vunpack.c.l.b16 %v3220
        %v3471 = vunpack.c.l.b16 %v3221
        %v3472 = vunpack.c.l.b16 %v3222
        %v3473 = vunpack.c.l.b16 %v3223
        %v3474 = vpack.c.b16 %v3471, %v3470
        %v3475 = vpack.c.b16 %v3473, %v3472
        %v3479 = vsel %vm3323, %v3465, 0
        %3481 = vmatpush.bf16.msra.mxu0 0
        %3482 = vmatpush.bf16.msra.mxu0 0
        %3483 = vmatpush.bf16.msra.mxu0 0
        %3484 = vmatpush.bf16.msra.mxu0 0
        %3485 = vmatpush.bf16.msra.mxu0 0
        %3486 = vmatpush.bf16.msra.mxu0 0
        %3487 = vmatpush.bf16.msra.mxu0 %v3475
        %3488 = vmatpush.bf16.msra.mxu0 %v3474
        %3489 = vmatmul.bf16.gmra.mxu0 %v3479
        %v3490 = vpop.f32.mrf.mxu0
        %v3491 = vadd.f32 %v3382, %v3490
        %v3492 = vpop.f32.mrf.mxu0
        %v3493 = vadd.f32 %v3384, %v3492
        %3494 = vmatmul.bf16.gmra.mxu0 %v3325
        %v3495 = vpop.f32.mrf.mxu0
        %v3496 = vadd.f32 %v3387, %v3495
        %v3497 = vpop.f32.mrf.mxu0
        %v3498 = vadd.f32 %v3389, %v3497
        %3499 = vmatmul.bf16.gmra.mxu0 %v3328
        %v3500 = vpop.f32.mrf.mxu0
        %v3501 = vadd.f32 %v3392, %v3500
        %v3502 = vpop.f32.mrf.mxu0
        %v3503 = vadd.f32 %v3394, %v3502
        %3504 = vmatmul.bf16.gmra.mxu0 %v3331
        %v3505 = vpop.f32.mrf.mxu0
        %v3506 = vadd.f32 %v3397, %v3505
        %v3507 = vpop.f32.mrf.mxu0
        %v3508 = vadd.f32 %v3399, %v3507
        %3509 = vmatmul.bf16.gmra.mxu0 %v3334
        %v3510 = vpop.f32.mrf.mxu0
        %v3511 = vadd.f32 %v3402, %v3510
        %v3512 = vpop.f32.mrf.mxu0
        %v3513 = vadd.f32 %v3404, %v3512
        %3514 = vmatmul.bf16.gmra.mxu0 %v3337
        %v3515 = vpop.f32.mrf.mxu0
        %v3516 = vadd.f32 %v3407, %v3515
        %v3517 = vpop.f32.mrf.mxu0
        %v3518 = vadd.f32 %v3409, %v3517
        %3519 = vmatmul.bf16.gmra.mxu0 %v3340
        %v3520 = vpop.f32.mrf.mxu0
        %v3521 = vadd.f32 %v3412, %v3520
        %v3522 = vpop.f32.mrf.mxu0
        %v3523 = vadd.f32 %v3414, %v3522
        %3524 = vmatmul.bf16.gmra.mxu0 %v3343
        %v3525 = vpop.f32.mrf.mxu0
        %v3526 = vadd.f32 %v3417, %v3525
        %v3527 = vpop.f32.mrf.mxu0
        %v3528 = vadd.f32 %v3419, %v3527
        %3529 = vmatmul.bf16.gmra.mxu0 %v3346
        %v3530 = vpop.f32.mrf.mxu0
        %v3531 = vadd.f32 %v3422, %v3530
        %v3532 = vpop.f32.mrf.mxu0
        %v3533 = vadd.f32 %v3424, %v3532
        %3534 = vmatmul.bf16.gmra.mxu0 %v3349
        %v3535 = vpop.f32.mrf.mxu0
        %v3536 = vadd.f32 %v3427, %v3535
        %v3537 = vpop.f32.mrf.mxu0
        %v3538 = vadd.f32 %v3429, %v3537
        %3539 = vmatmul.bf16.gmra.mxu0 %v3352
        %v3540 = vpop.f32.mrf.mxu0
        %v3541 = vadd.f32 %v3432, %v3540
        %v3542 = vpop.f32.mrf.mxu0
        %v3543 = vadd.f32 %v3434, %v3542
        %3544 = vmatmul.bf16.gmra.mxu0 %v3355
        %v3545 = vpop.f32.mrf.mxu0
        %v3546 = vadd.f32 %v3437, %v3545
        %v3547 = vpop.f32.mrf.mxu0
        %v3548 = vadd.f32 %v3439, %v3547
        %3549 = vmatmul.bf16.gmra.mxu0 %v3358
        %v3550 = vpop.f32.mrf.mxu0
        %v3551 = vadd.f32 %v3442, %v3550
        %v3552 = vpop.f32.mrf.mxu0
        %v3553 = vadd.f32 %v3444, %v3552
        %3554 = vmatmul.bf16.gmra.mxu0 %v3361
        %v3555 = vpop.f32.mrf.mxu0
        %v3556 = vadd.f32 %v3447, %v3555
        %v3557 = vpop.f32.mrf.mxu0
        %v3558 = vadd.f32 %v3449, %v3557
        %3559 = vmatmul.bf16.gmra.mxu0 %v3364
        %v3560 = vpop.f32.mrf.mxu0
        %v3561 = vadd.f32 %v3452, %v3560
        %v3562 = vpop.f32.mrf.mxu0
        %v3563 = vadd.f32 %v3454, %v3562
        %3564 = vmatmul.bf16.gmra.mxu0 %v3367
        %v3565 = vpop.f32.mrf.mxu0
        %v3566 = vadd.f32 %v3457, %v3565
        %v3567 = vpop.f32.mrf.mxu0
        %v3568 = vadd.f32 %v3459, %v3567
        %3569 = vdwg.mxu0
        %v3570 = vld [vmem:[#allocation2 + $0x10] sm:$0xf]
        %v3571 = vld [vmem:[#allocation2 + $0x14] sm:$0xf]
        %v3572 = vld [vmem:[#allocation2 + $0x18] sm:$0xf]
        %v3573 = vld [vmem:[#allocation2 + $0x1c] sm:$0xf]
        %v3574 = vld [vmem:[#allocation2 + $0x20] sm:$0xf]
        %v3575 = vld [vmem:[#allocation2 + $0x24] sm:$0xf]
        %v3576 = vld [vmem:[#allocation2 + $0x28] sm:$0xf]
        %v3577 = vld [vmem:[#allocation2 + $0x2c] sm:$0xf]
        %v3578 = vld [vmem:[#allocation2 + $0x30] sm:$0xf]
        %v3579 = vld [vmem:[#allocation2 + $0x34] sm:$0xf]
        %v3580 = vld [vmem:[#allocation2 + $0x38] sm:$0xf]
        %v3581 = vld [vmem:[#allocation2 + $0x3c] sm:$0xf]
        %v3582 = vld [vmem:[#allocation2 + $0x40] sm:$0xf]
        %v3583 = vld [vmem:[#allocation2 + $0x44] sm:$0xf]
        %v3584 = vld [vmem:[#allocation2 + $0x48] sm:$0xf]
        %v3585 = vld [vmem:[#allocation2 + $0x4c] sm:$0xf]
        %v3586 = vld [vmem:[#allocation2 + $0x50] sm:$0xf]
        %v3587 = vld [vmem:[#allocation2 + $0x54] sm:$0xf]
        %v3588 = vld [vmem:[#allocation2 + $0x58] sm:$0xf]
        %v3589 = vld [vmem:[#allocation2 + $0x5c] sm:$0xf]
        %v3590 = vld [vmem:[#allocation2 + $0x60] sm:$0xf]
        %v3591 = vld [vmem:[#allocation2 + $0x64] sm:$0xf]
        %v3592 = vld [vmem:[#allocation2 + $0x68] sm:$0xf]
        %v3593 = vld [vmem:[#allocation2 + $0x6c] sm:$0xf]
        %v3594 = vld [vmem:[#allocation2 + $0x70] sm:$0xf]
        %v3595 = vld [vmem:[#allocation2 + $0x74] sm:$0xf]
        %v3596 = vld [vmem:[#allocation2 + $0x78] sm:$0xf]
        %v3597 = vld [vmem:[#allocation2 + $0x7c] sm:$0xf]
        %v3598 = vld [vmem:[#allocation2 + $0x80] sm:$0xf]
        %v3599 = vld [vmem:[#allocation2 + $0x84] sm:$0xf]
        %v3600 = vld [vmem:[#allocation2 + $0x88] sm:$0xf]
        %v3601 = vld [vmem:[#allocation2 + $0x8c] sm:$0xf]
        %s3602 = scalar_lea.vmem %s5, 96
        %v3603 = vld [vmem:[%s3602] sm:$0xf]
        %v3604 = vld [vmem:[%s3602 + $0x4] sm:$0xf]
        %v3605 = vld [vmem:[%s3602 + $0x8] sm:$0xf]
        %v3606 = vld [vmem:[%s3602 + $0xc] sm:$0xf]
        %v3639 = vunpack.c.l.b16 %v3570
        %v3640 = vunpack.c.l.b16 %v3571
        %v3641 = vunpack.c.l.b16 %v3572
        %v3642 = vunpack.c.l.b16 %v3573
        %v3643 = vunpack.c.l.b16 %v3574
        %v3644 = vunpack.c.l.b16 %v3575
        %v3645 = vunpack.c.l.b16 %v3576
        %v3646 = vunpack.c.l.b16 %v3577
        %v3647 = vunpack.c.l.b16 %v3578
        %v3648 = vunpack.c.l.b16 %v3579
        %v3649 = vunpack.c.l.b16 %v3580
        %v3650 = vunpack.c.l.b16 %v3581
        %v3651 = vunpack.c.l.b16 %v3582
        %v3652 = vunpack.c.l.b16 %v3583
        %v3653 = vunpack.c.l.b16 %v3584
        %v3654 = vunpack.c.l.b16 %v3585
        %v3655 = vunpack.c.l.b16 %v3586
        %v3656 = vunpack.c.l.b16 %v3587
        %v3657 = vunpack.c.l.b16 %v3588
        %v3658 = vunpack.c.l.b16 %v3589
        %v3659 = vunpack.c.l.b16 %v3590
        %v3660 = vunpack.c.l.b16 %v3591
        %v3661 = vunpack.c.l.b16 %v3592
        %v3662 = vunpack.c.l.b16 %v3593
        %v3663 = vunpack.c.l.b16 %v3594
        %v3664 = vunpack.c.l.b16 %v3595
        %v3665 = vunpack.c.l.b16 %v3596
        %v3666 = vunpack.c.l.b16 %v3597
        %v3667 = vunpack.c.l.b16 %v3598
        %v3668 = vunpack.c.l.b16 %v3599
        %v3669 = vunpack.c.l.b16 %v3600
        %v3670 = vunpack.c.l.b16 %v3601
        %v3671 = vpack.c.b16 %v3640, %v3639
        %v3672 = vpack.c.b16 %v3642, %v3641
        %v3673 = vpack.c.b16 %v3644, %v3643
        %v3674 = vpack.c.b16 %v3646, %v3645
        %v3675 = vpack.c.b16 %v3648, %v3647
        %v3676 = vpack.c.b16 %v3650, %v3649
        %v3677 = vpack.c.b16 %v3652, %v3651
        %v3678 = vpack.c.b16 %v3654, %v3653
        %v3679 = vpack.c.b16 %v3656, %v3655
        %v3680 = vpack.c.b16 %v3658, %v3657
        %v3681 = vpack.c.b16 %v3660, %v3659
        %v3682 = vpack.c.b16 %v3662, %v3661
        %v3683 = vpack.c.b16 %v3664, %v3663
        %v3684 = vpack.c.b16 %v3666, %v3665
        %v3685 = vpack.c.b16 %v3668, %v3667
        %v3686 = vpack.c.b16 %v3670, %v3669
        %v3691 = vunpack.c.l.b16 %v3603
        %v3692 = vunpack.c.l.b16 %v3604
        %v3693 = vunpack.c.l.b16 %v3605
        %v3694 = vunpack.c.l.b16 %v3606
        %v3695 = vpack.c.b16 %v3692, %v3691
        %v3696 = vpack.c.b16 %v3694, %v3693
        %v3700 = vsel %vm3323, %v3671, 0
        %v3703 = vsel %vm3323, %v3672, 0
        %v3706 = vsel %vm3323, %v3673, 0
        %v3709 = vsel %vm3323, %v3674, 0
        %v3712 = vsel %vm3323, %v3675, 0
        %v3715 = vsel %vm3323, %v3676, 0
        %v3718 = vsel %vm3323, %v3677, 0
        %v3721 = vsel %vm3323, %v3678, 0
        %v3724 = vsel %vm3323, %v3679, 0
        %v3727 = vsel %vm3323, %v3680, 0
        %v3730 = vsel %vm3323, %v3681, 0
        %v3733 = vsel %vm3323, %v3682, 0
        %v3736 = vsel %vm3323, %v3683, 0
        %v3739 = vsel %vm3323, %v3684, 0
        %v3742 = vsel %vm3323, %v3685, 0
        %v3745 = vsel %vm3323, %v3686, 0
        %3747 = vmatpush.bf16.msra.mxu0 0
        %3748 = vmatpush.bf16.msra.mxu0 0
        %3749 = vmatpush.bf16.msra.mxu0 0
        %3750 = vmatpush.bf16.msra.mxu0 0
        %3751 = vmatpush.bf16.msra.mxu0 0
        %3752 = vmatpush.bf16.msra.mxu0 0
        %3753 = vmatpush.bf16.msra.mxu0 %v3696
        %3754 = vmatpush.bf16.msra.mxu0 %v3695
        %3755 = vmatmul.bf16.gmra.mxu0 %v3700
        %v3756 = vpop.f32.mrf.mxu0
        %v3757 = vadd.f32 0.0, %v3756
        %v3758 = vpop.f32.mrf.mxu0
        %v3759 = vadd.f32 0.0, %v3758
        %3760 = vmatmul.bf16.gmra.mxu0 %v3703
        %v3761 = vpop.f32.mrf.mxu0
        %v3762 = vadd.f32 0.0, %v3761
        %v3763 = vpop.f32.mrf.mxu0
        %v3764 = vadd.f32 0.0, %v3763
        %3765 = vmatmul.bf16.gmra.mxu0 %v3706
        %v3766 = vpop.f32.mrf.mxu0
        %v3767 = vadd.f32 0.0, %v3766
        %v3768 = vpop.f32.mrf.mxu0
        %v3769 = vadd.f32 0.0, %v3768
        %3770 = vmatmul.bf16.gmra.mxu0 %v3709
        %v3771 = vpop.f32.mrf.mxu0
        %v3772 = vadd.f32 0.0, %v3771
        %v3773 = vpop.f32.mrf.mxu0
        %v3774 = vadd.f32 0.0, %v3773
        %3775 = vmatmul.bf16.gmra.mxu0 %v3712
        %v3776 = vpop.f32.mrf.mxu0
        %v3777 = vadd.f32 0.0, %v3776
        %v3778 = vpop.f32.mrf.mxu0
        %v3779 = vadd.f32 0.0, %v3778
        %3780 = vmatmul.bf16.gmra.mxu0 %v3715
        %v3781 = vpop.f32.mrf.mxu0
        %v3782 = vadd.f32 0.0, %v3781
        %v3783 = vpop.f32.mrf.mxu0
        %v3784 = vadd.f32 0.0, %v3783
        %3785 = vmatmul.bf16.gmra.mxu0 %v3718
        %v3786 = vpop.f32.mrf.mxu0
        %v3787 = vadd.f32 0.0, %v3786
        %v3788 = vpop.f32.mrf.mxu0
        %v3789 = vadd.f32 0.0, %v3788
        %3790 = vmatmul.bf16.gmra.mxu0 %v3721
        %v3791 = vpop.f32.mrf.mxu0
        %v3792 = vadd.f32 0.0, %v3791
        %v3793 = vpop.f32.mrf.mxu0
        %v3794 = vadd.f32 0.0, %v3793
        %3795 = vmatmul.bf16.gmra.mxu0 %v3724
        %v3796 = vpop.f32.mrf.mxu0
        %v3797 = vadd.f32 0.0, %v3796
        %v3798 = vpop.f32.mrf.mxu0
        %v3799 = vadd.f32 0.0, %v3798
        %3800 = vmatmul.bf16.gmra.mxu0 %v3727
        %v3801 = vpop.f32.mrf.mxu0
        %v3802 = vadd.f32 0.0, %v3801
        %v3803 = vpop.f32.mrf.mxu0
        %v3804 = vadd.f32 0.0, %v3803
        %3805 = vmatmul.bf16.gmra.mxu0 %v3730
        %v3806 = vpop.f32.mrf.mxu0
        %v3807 = vadd.f32 0.0, %v3806
        %v3808 = vpop.f32.mrf.mxu0
        %v3809 = vadd.f32 0.0, %v3808
        %3810 = vmatmul.bf16.gmra.mxu0 %v3733
        %v3811 = vpop.f32.mrf.mxu0
        %v3812 = vadd.f32 0.0, %v3811
        %v3813 = vpop.f32.mrf.mxu0
        %v3814 = vadd.f32 0.0, %v3813
        %3815 = vmatmul.bf16.gmra.mxu0 %v3736
        %v3816 = vpop.f32.mrf.mxu0
        %v3817 = vadd.f32 0.0, %v3816
        %v3818 = vpop.f32.mrf.mxu0
        %v3819 = vadd.f32 0.0, %v3818
        %3820 = vmatmul.bf16.gmra.mxu0 %v3739
        %v3821 = vpop.f32.mrf.mxu0
        %v3822 = vadd.f32 0.0, %v3821
        %v3823 = vpop.f32.mrf.mxu0
        %v3824 = vadd.f32 0.0, %v3823
        %3825 = vmatmul.bf16.gmra.mxu0 %v3742
        %v3826 = vpop.f32.mrf.mxu0
        %v3827 = vadd.f32 0.0, %v3826
        %v3828 = vpop.f32.mrf.mxu0
        %v3829 = vadd.f32 0.0, %v3828
        %3830 = vmatmul.bf16.gmra.mxu0 %v3745
        %v3831 = vpop.f32.mrf.mxu0
        %v3832 = vadd.f32 0.0, %v3831
        %v3833 = vpop.f32.mrf.mxu0
        %v3834 = vadd.f32 0.0, %v3833
        %3835 = vdwg.mxu0
        %v3836 = vadd.f32 %v3491, %v3757
        %v3837 = vadd.f32 %v3493, %v3759
        %v3838 = vadd.f32 %v3496, %v3762
        %v3839 = vadd.f32 %v3498, %v3764
        %v3840 = vadd.f32 %v3501, %v3767
        %v3841 = vadd.f32 %v3503, %v3769
        %v3842 = vadd.f32 %v3506, %v3772
        %v3843 = vadd.f32 %v3508, %v3774
        %v3844 = vadd.f32 %v3511, %v3777
        %v3845 = vadd.f32 %v3513, %v3779
        %v3846 = vadd.f32 %v3516, %v3782
        %v3847 = vadd.f32 %v3518, %v3784
        %v3848 = vadd.f32 %v3521, %v3787
        %v3849 = vadd.f32 %v3523, %v3789
        %v3850 = vadd.f32 %v3526, %v3792
        %v3851 = vadd.f32 %v3528, %v3794
        %v3852 = vadd.f32 %v3531, %v3797
        %v3853 = vadd.f32 %v3533, %v3799
        %v3854 = vadd.f32 %v3536, %v3802
        %v3855 = vadd.f32 %v3538, %v3804
        %v3856 = vadd.f32 %v3541, %v3807
        %v3857 = vadd.f32 %v3543, %v3809
        %v3858 = vadd.f32 %v3546, %v3812
        %v3859 = vadd.f32 %v3548, %v3814
        %v3860 = vadd.f32 %v3551, %v3817
        %v3861 = vadd.f32 %v3553, %v3819
        %v3862 = vadd.f32 %v3556, %v3822
        %v3863 = vadd.f32 %v3558, %v3824
        %v3864 = vadd.f32 %v3561, %v3827
        %v3865 = vadd.f32 %v3563, %v3829
        %v3866 = vadd.f32 %v3566, %v3832
        %v3867 = vadd.f32 %v3568, %v3834
        %v3868 = vrot.slane %v3836, 7
        %v3869 = vrot.slane %v3837, 7
        %v3870 = vrot.slane %v3838, 7
        %v3871 = vrot.slane %v3839, 7
        %v3872 = vrot.slane %v3840, 7
        %v3873 = vrot.slane %v3841, 7
        %v3874 = vrot.slane %v3842, 7
        %v3875 = vrot.slane %v3843, 7
        %v3876 = vrot.slane %v3844, 7
        %v3877 = vrot.slane %v3845, 7
        %v3878 = vrot.slane %v3846, 7
        %v3879 = vrot.slane %v3847, 7
        %v3880 = vrot.slane %v3848, 7
        %v3881 = vrot.slane %v3849, 7
        %v3882 = vrot.slane %v3850, 7
        %v3883 = vrot.slane %v3851, 7
        %v3884 = vrot.slane %v3852, 7
        %v3885 = vrot.slane %v3853, 7
        %v3886 = vrot.slane %v3854, 7
        %v3887 = vrot.slane %v3855, 7
        %v3888 = vrot.slane %v3856, 7
        %v3889 = vrot.slane %v3857, 7
        %v3890 = vrot.slane %v3858, 7
        %v3891 = vrot.slane %v3859, 7
        %v3892 = vrot.slane %v3860, 7
        %v3893 = vrot.slane %v3861, 7
        %v3894 = vrot.slane %v3862, 7
        %v3895 = vrot.slane %v3863, 7
        %v3896 = vrot.slane %v3864, 7
        %v3897 = vrot.slane %v3865, 7
        %v3898 = vrot.slane %v3866, 7
        %v3899 = vrot.slane %v3867, 7
        %vm3900 = vcmp.lt.s32.totalorder %v350, 1
        %v3901 = vsel %vm3900, %v3898, %v3899
        %v3902 = vsel %vm3900, %v3897, %v3898
        %v3903 = vsel %vm3900, %v3896, %v3897
        %v3904 = vsel %vm3900, %v3895, %v3896
        %v3905 = vsel %vm3900, %v3894, %v3895
        %v3906 = vsel %vm3900, %v3893, %v3894
        %v3907 = vsel %vm3900, %v3892, %v3893
        %v3908 = vsel %vm3900, %v3891, %v3892
        %v3909 = vsel %vm3900, %v3890, %v3891
        %v3910 = vsel %vm3900, %v3889, %v3890
        %v3911 = vsel %vm3900, %v3888, %v3889
        %v3912 = vsel %vm3900, %v3887, %v3888
        %v3913 = vsel %vm3900, %v3886, %v3887
        %v3914 = vsel %vm3900, %v3885, %v3886
        %v3915 = vsel %vm3900, %v3884, %v3885
        %v3916 = vsel %vm3900, %v3883, %v3884
        %v3917 = vsel %vm3900, %v3882, %v3883
        %v3918 = vsel %vm3900, %v3881, %v3882
        %v3919 = vsel %vm3900, %v3880, %v3881
        %v3920 = vsel %vm3900, %v3879, %v3880
        %v3921 = vsel %vm3900, %v3878, %v3879
        %v3922 = vsel %vm3900, %v3877, %v3878
        %v3923 = vsel %vm3900, %v3876, %v3877
        %v3924 = vsel %vm3900, %v3875, %v3876
        %v3925 = vsel %vm3900, %v3874, %v3875
        %v3926 = vsel %vm3900, %v3873, %v3874
        %v3927 = vsel %vm3900, %v3872, %v3873
        %v3928 = vsel %vm3900, %v3871, %v3872
        %v3929 = vsel %vm3900, %v3870, %v3871
        %v3930 = vsel %vm3900, %v3869, %v3870
        %v3931 = vsel %vm3900, %v3868, %v3869
        %v3932 = vsel %vm3900, %v3899, %v3868
        %v3933 = vsel %vm766, 1, 0
        %v3934 = vsel %vm767, 1, 0
        %v3935 = vsel %vm768, 1, 0
        %v3936 = vsel %vm769, 1, 0
        %v3937 = vsel %vm770, 1, 0
        %v3938 = vsel %vm771, 1, 0
        %v3939 = vsel %vm772, 1, 0
        %v3940 = vsel %vm773, 1, 0
        %v3941 = vsel %vm774, 1, 0
        %v3942 = vsel %vm775, 1, 0
        %v3943 = vsel %vm776, 1, 0
        %v3944 = vsel %vm777, 1, 0
        %v3945 = vsel %vm778, 1, 0
        %v3946 = vsel %vm779, 1, 0
        %v3947 = vsel %vm780, 1, 0
        %v3948 = vsel %vm781, 1, 0
        %v3949 = vsel %vm782, 1, 0
        %v3950 = vsel %vm783, 1, 0
        %v3951 = vsel %vm784, 1, 0
        %v3952 = vsel %vm785, 1, 0
        %v3953 = vsel %vm786, 1, 0
        %v3954 = vsel %vm787, 1, 0
        %v3955 = vsel %vm788, 1, 0
        %v3956 = vsel %vm789, 1, 0
        %v3957 = vsel %vm790, 1, 0
        %v3958 = vsel %vm791, 1, 0
        %v3959 = vsel %vm792, 1, 0
        %v3960 = vsel %vm793, 1, 0
        %v3961 = vsel %vm794, 1, 0
        %v3962 = vsel %vm795, 1, 0
        %v3963 = vsel %vm796, 1, 0
        %v3964 = vsel %vm797, 1, 0
        %vm3965 = vcmp.eq.s32.totalorder %v3933, 1
        %vm3966 = vcmp.eq.s32.totalorder %v3934, 1
        %vm3967 = vcmp.eq.s32.totalorder %v3935, 1
        %vm3968 = vcmp.eq.s32.totalorder %v3936, 1
        %vm3969 = vcmp.eq.s32.totalorder %v3937, 1
        %vm3970 = vcmp.eq.s32.totalorder %v3938, 1
        %vm3971 = vcmp.eq.s32.totalorder %v3939, 1
        %vm3972 = vcmp.eq.s32.totalorder %v3940, 1
        %vm3973 = vcmp.eq.s32.totalorder %v3941, 1
        %vm3974 = vcmp.eq.s32.totalorder %v3942, 1
        %vm3975 = vcmp.eq.s32.totalorder %v3943, 1
        %vm3976 = vcmp.eq.s32.totalorder %v3944, 1
        %vm3977 = vcmp.eq.s32.totalorder %v3945, 1
        %vm3978 = vcmp.eq.s32.totalorder %v3946, 1
        %vm3979 = vcmp.eq.s32.totalorder %v3947, 1
        %vm3980 = vcmp.eq.s32.totalorder %v3948, 1
        %vm3981 = vcmp.eq.s32.totalorder %v3949, 1
        %vm3982 = vcmp.eq.s32.totalorder %v3950, 1
        %vm3983 = vcmp.eq.s32.totalorder %v3951, 1
        %vm3984 = vcmp.eq.s32.totalorder %v3952, 1
        %vm3985 = vcmp.eq.s32.totalorder %v3953, 1
        %vm3986 = vcmp.eq.s32.totalorder %v3954, 1
        %vm3987 = vcmp.eq.s32.totalorder %v3955, 1
        %vm3988 = vcmp.eq.s32.totalorder %v3956, 1
        %vm3989 = vcmp.eq.s32.totalorder %v3957, 1
        %vm3990 = vcmp.eq.s32.totalorder %v3958, 1
        %vm3991 = vcmp.eq.s32.totalorder %v3959, 1
        %vm3992 = vcmp.eq.s32.totalorder %v3960, 1
        %vm3993 = vcmp.eq.s32.totalorder %v3961, 1
        %vm3994 = vcmp.eq.s32.totalorder %v3962, 1
        %vm3995 = vcmp.eq.s32.totalorder %v3963, 1
        %vm3996 = vcmp.eq.s32.totalorder %v3964, 1
        %v3997 = vsel %vm3965, %v3932, 0.0
        %v3998 = vsel %vm3966, %v3931, 0.0
        %v3999 = vsel %vm3967, %v3930, 0.0
        %v4000 = vsel %vm3968, %v3929, 0.0
        %v4001 = vsel %vm3969, %v3928, 0.0
        %v4002 = vsel %vm3970, %v3927, 0.0
        %v4003 = vsel %vm3971, %v3926, 0.0
        %v4004 = vsel %vm3972, %v3925, 0.0
        %v4005 = vsel %vm3973, %v3924, 0.0
        %v4006 = vsel %vm3974, %v3923, 0.0
        %v4007 = vsel %vm3975, %v3922, 0.0
        %v4008 = vsel %vm3976, %v3921, 0.0
        %v4009 = vsel %vm3977, %v3920, 0.0
        %v4010 = vsel %vm3978, %v3919, 0.0
        %v4011 = vsel %vm3979, %v3918, 0.0
        %v4012 = vsel %vm3980, %v3917, 0.0
        %v4013 = vsel %vm3981, %v3916, 0.0
        %v4014 = vsel %vm3982, %v3915, 0.0
        %v4015 = vsel %vm3983, %v3914, 0.0
        %v4016 = vsel %vm3984, %v3913, 0.0
        %v4017 = vsel %vm3985, %v3912, 0.0
        %v4018 = vsel %vm3986, %v3911, 0.0
        %v4019 = vsel %vm3987, %v3910, 0.0
        %v4020 = vsel %vm3988, %v3909, 0.0
        %v4021 = vsel %vm3989, %v3908, 0.0
        %v4022 = vsel %vm3990, %v3907, 0.0
        %v4023 = vsel %vm3991, %v3906, 0.0
        %v4024 = vsel %vm3992, %v3905, 0.0
        %v4025 = vsel %vm3993, %v3904, 0.0
        %v4026 = vsel %vm3994, %v3903, 0.0
        %v4027 = vsel %vm3995, %v3902, 0.0
        %v4028 = vsel %vm3996, %v3901, 0.0
        %v4029 = vadd.f32 %v3997, 0.0
        %v4030 = vadd.f32 %v3998, 0.0
        %v4031 = vadd.f32 %v3999, 0.0
        %v4032 = vadd.f32 %v4000, 0.0
        %v4033 = vadd.f32 %v4001, 0.0
        %v4034 = vadd.f32 %v4002, 0.0
        %v4035 = vadd.f32 %v4003, 0.0
        %v4036 = vadd.f32 %v4004, 0.0
        %v4037 = vadd.f32 %v4005, 0.0
        %v4038 = vadd.f32 %v4006, 0.0
        %v4039 = vadd.f32 %v4007, 0.0
        %v4040 = vadd.f32 %v4008, 0.0
        %v4041 = vadd.f32 %v4009, 0.0
        %v4042 = vadd.f32 %v4010, 0.0
        %v4043 = vadd.f32 %v4011, 0.0
        %v4044 = vadd.f32 %v4012, 0.0
        %v4045 = vadd.f32 %v4013, 0.0
        %v4046 = vadd.f32 %v4014, 0.0
        %v4047 = vadd.f32 %v4015, 0.0
        %v4048 = vadd.f32 %v4016, 0.0
        %v4049 = vadd.f32 %v4017, 0.0
        %v4050 = vadd.f32 %v4018, 0.0
        %v4051 = vadd.f32 %v4019, 0.0
        %v4052 = vadd.f32 %v4020, 0.0
        %v4053 = vadd.f32 %v4021, 0.0
        %v4054 = vadd.f32 %v4022, 0.0
        %v4055 = vadd.f32 %v4023, 0.0
        %v4056 = vadd.f32 %v4024, 0.0
        %v4057 = vadd.f32 %v4025, 0.0
        %v4058 = vadd.f32 %v4026, 0.0
        %v4059 = vadd.f32 %v4027, 0.0
        %v4060 = vadd.f32 %v4028, 0.0
        %s4061 = scalar_lea.vmem %s5, 16
        %v4062 = vld [vmem:[%s4061] sm:$0xf]
        %v4063 = vld [vmem:[%s4061 + $0x4] sm:$0xf]
        %v4064 = vld [vmem:[%s4061 + $0x8] sm:$0xf]
        %v4065 = vld [vmem:[%s4061 + $0xc] sm:$0xf]
        %s4066 = scalar_lea.vmem %s5, 64
        %v4067 = vld [vmem:[%s4066] sm:$0xf]
        %v4068 = vld [vmem:[%s4066 + $0x4] sm:$0xf]
        %v4069 = vld [vmem:[%s4066 + $0x8] sm:$0xf]
        %v4070 = vld [vmem:[%s4066 + $0xc] sm:$0xf]
        %v4075 = vunpack.c.l.b16 %v4067
        %v4076 = vunpack.c.l.b16 %v4068
        %v4077 = vunpack.c.l.b16 %v4069
        %v4078 = vunpack.c.l.b16 %v4070
        %v4079 = vpack.c.b16 %v4076, %v4075
        %v4080 = vpack.c.b16 %v4078, %v4077
        %4083 = vmatpush.bf16.msra.mxu0 0
        %4084 = vmatpush.bf16.msra.mxu0 0
        %4085 = vmatpush.bf16.msra.mxu0 0
        %4086 = vmatpush.bf16.msra.mxu0 0
        %4087 = vmatpush.bf16.msra.mxu0 0
        %4088 = vmatpush.bf16.msra.mxu0 0
        %4089 = vmatpush.bf16.msra.mxu0 %v4080
        %4090 = vmatpush.bf16.msra.mxu0 %v4079
        %4091 = vmatmul.bf16.gmra.mxu0 %v3325
        %v4092 = vpop.f32.mrf.mxu0
        %v4093 = vadd.f32 0.0, %v4092
        %v4094 = vpop.f32.mrf.mxu0
        %v4095 = vadd.f32 0.0, %v4094
        %4096 = vmatmul.bf16.gmra.mxu0 %v3328
        %v4097 = vpop.f32.mrf.mxu0
        %v4098 = vadd.f32 0.0, %v4097
        %v4099 = vpop.f32.mrf.mxu0
        %v4100 = vadd.f32 0.0, %v4099
        %4101 = vmatmul.bf16.gmra.mxu0 %v3331
        %v4102 = vpop.f32.mrf.mxu0
        %v4103 = vadd.f32 0.0, %v4102
        %v4104 = vpop.f32.mrf.mxu0
        %v4105 = vadd.f32 0.0, %v4104
        %4106 = vmatmul.bf16.gmra.mxu0 %v3334
        %v4107 = vpop.f32.mrf.mxu0
        %v4108 = vadd.f32 0.0, %v4107
        %v4109 = vpop.f32.mrf.mxu0
        %v4110 = vadd.f32 0.0, %v4109
        %4111 = vmatmul.bf16.gmra.mxu0 %v3337
        %v4112 = vpop.f32.mrf.mxu0
        %v4113 = vadd.f32 0.0, %v4112
        %v4114 = vpop.f32.mrf.mxu0
        %v4115 = vadd.f32 0.0, %v4114
        %4116 = vmatmul.bf16.gmra.mxu0 %v3340
        %v4117 = vpop.f32.mrf.mxu0
        %v4118 = vadd.f32 0.0, %v4117
        %v4119 = vpop.f32.mrf.mxu0
        %v4120 = vadd.f32 0.0, %v4119
        %4121 = vmatmul.bf16.gmra.mxu0 %v3343
        %v4122 = vpop.f32.mrf.mxu0
        %v4123 = vadd.f32 0.0, %v4122
        %v4124 = vpop.f32.mrf.mxu0
        %v4125 = vadd.f32 0.0, %v4124
        %4126 = vmatmul.bf16.gmra.mxu0 %v3346
        %v4127 = vpop.f32.mrf.mxu0
        %v4128 = vadd.f32 0.0, %v4127
        %v4129 = vpop.f32.mrf.mxu0
        %v4130 = vadd.f32 0.0, %v4129
        %4131 = vmatmul.bf16.gmra.mxu0 %v3349
        %v4132 = vpop.f32.mrf.mxu0
        %v4133 = vadd.f32 0.0, %v4132
        %v4134 = vpop.f32.mrf.mxu0
        %v4135 = vadd.f32 0.0, %v4134
        %4136 = vmatmul.bf16.gmra.mxu0 %v3352
        %v4137 = vpop.f32.mrf.mxu0
        %v4138 = vadd.f32 0.0, %v4137
        %v4139 = vpop.f32.mrf.mxu0
        %v4140 = vadd.f32 0.0, %v4139
        %4141 = vmatmul.bf16.gmra.mxu0 %v3355
        %v4142 = vpop.f32.mrf.mxu0
        %v4143 = vadd.f32 0.0, %v4142
        %v4144 = vpop.f32.mrf.mxu0
        %v4145 = vadd.f32 0.0, %v4144
        %4146 = vmatmul.bf16.gmra.mxu0 %v3358
        %v4147 = vpop.f32.mrf.mxu0
        %v4148 = vadd.f32 0.0, %v4147
        %v4149 = vpop.f32.mrf.mxu0
        %v4150 = vadd.f32 0.0, %v4149
        %4151 = vmatmul.bf16.gmra.mxu0 %v3361
        %v4152 = vpop.f32.mrf.mxu0
        %v4153 = vadd.f32 0.0, %v4152
        %v4154 = vpop.f32.mrf.mxu0
        %v4155 = vadd.f32 0.0, %v4154
        %4156 = vmatmul.bf16.gmra.mxu0 %v3364
        %v4157 = vpop.f32.mrf.mxu0
        %v4158 = vadd.f32 0.0, %v4157
        %v4159 = vpop.f32.mrf.mxu0
        %v4160 = vadd.f32 0.0, %v4159
        %4161 = vmatmul.bf16.gmra.mxu0 %v3367
        %v4162 = vpop.f32.mrf.mxu0
        %v4163 = vadd.f32 0.0, %v4162
        %v4164 = vpop.f32.mrf.mxu0
        %v4165 = vadd.f32 0.0, %v4164
        %4166 = vmatmul.bf16.gmra.mxu0 %v3370
        %v4167 = vpop.f32.mrf.mxu0
        %v4168 = vadd.f32 0.0, %v4167
        %v4169 = vpop.f32.mrf.mxu0
        %v4170 = vadd.f32 0.0, %v4169
        %4171 = vdwg.mxu0
        %v4176 = vunpack.c.l.b16 %v4062
        %v4177 = vunpack.c.l.b16 %v4063
        %v4178 = vunpack.c.l.b16 %v4064
        %v4179 = vunpack.c.l.b16 %v4065
        %v4180 = vpack.c.b16 %v4177, %v4176
        %v4181 = vpack.c.b16 %v4179, %v4178
        %4184 = vmatpush.bf16.msra.mxu0 0
        %4185 = vmatpush.bf16.msra.mxu0 0
        %4186 = vmatpush.bf16.msra.mxu0 0
        %4187 = vmatpush.bf16.msra.mxu0 0
        %4188 = vmatpush.bf16.msra.mxu0 0
        %4189 = vmatpush.bf16.msra.mxu0 0
        %4190 = vmatpush.bf16.msra.mxu0 %v4181
        %4191 = vmatpush.bf16.msra.mxu0 %v4180
        %4192 = vmatmul.bf16.gmra.mxu0 %v3479
        %v4193 = vpop.f32.mrf.mxu0
        %v4194 = vadd.f32 %v4093, %v4193
        %v4195 = vpop.f32.mrf.mxu0
        %v4196 = vadd.f32 %v4095, %v4195
        %4197 = vmatmul.bf16.gmra.mxu0 %v3325
        %v4198 = vpop.f32.mrf.mxu0
        %v4199 = vadd.f32 %v4098, %v4198
        %v4200 = vpop.f32.mrf.mxu0
        %v4201 = vadd.f32 %v4100, %v4200
        %4202 = vmatmul.bf16.gmra.mxu0 %v3328
        %v4203 = vpop.f32.mrf.mxu0
        %v4204 = vadd.f32 %v4103, %v4203
        %v4205 = vpop.f32.mrf.mxu0
        %v4206 = vadd.f32 %v4105, %v4205
        %4207 = vmatmul.bf16.gmra.mxu0 %v3331
        %v4208 = vpop.f32.mrf.mxu0
        %v4209 = vadd.f32 %v4108, %v4208
        %v4210 = vpop.f32.mrf.mxu0
        %v4211 = vadd.f32 %v4110, %v4210
        %4212 = vmatmul.bf16.gmra.mxu0 %v3334
        %v4213 = vpop.f32.mrf.mxu0
        %v4214 = vadd.f32 %v4113, %v4213
        %v4215 = vpop.f32.mrf.mxu0
        %v4216 = vadd.f32 %v4115, %v4215
        %4217 = vmatmul.bf16.gmra.mxu0 %v3337
        %v4218 = vpop.f32.mrf.mxu0
        %v4219 = vadd.f32 %v4118, %v4218
        %v4220 = vpop.f32.mrf.mxu0
        %v4221 = vadd.f32 %v4120, %v4220
        %4222 = vmatmul.bf16.gmra.mxu0 %v3340
        %v4223 = vpop.f32.mrf.mxu0
        %v4224 = vadd.f32 %v4123, %v4223
        %v4225 = vpop.f32.mrf.mxu0
        %v4226 = vadd.f32 %v4125, %v4225
        %4227 = vmatmul.bf16.gmra.mxu0 %v3343
        %v4228 = vpop.f32.mrf.mxu0
        %v4229 = vadd.f32 %v4128, %v4228
        %v4230 = vpop.f32.mrf.mxu0
        %v4231 = vadd.f32 %v4130, %v4230
        %4232 = vmatmul.bf16.gmra.mxu0 %v3346
        %v4233 = vpop.f32.mrf.mxu0
        %v4234 = vadd.f32 %v4133, %v4233
        %v4235 = vpop.f32.mrf.mxu0
        %v4236 = vadd.f32 %v4135, %v4235
        %4237 = vmatmul.bf16.gmra.mxu0 %v3349
        %v4238 = vpop.f32.mrf.mxu0
        %v4239 = vadd.f32 %v4138, %v4238
        %v4240 = vpop.f32.mrf.mxu0
        %v4241 = vadd.f32 %v4140, %v4240
        %4242 = vmatmul.bf16.gmra.mxu0 %v3352
        %v4243 = vpop.f32.mrf.mxu0
        %v4244 = vadd.f32 %v4143, %v4243
        %v4245 = vpop.f32.mrf.mxu0
        %v4246 = vadd.f32 %v4145, %v4245
        %4247 = vmatmul.bf16.gmra.mxu0 %v3355
        %v4248 = vpop.f32.mrf.mxu0
        %v4249 = vadd.f32 %v4148, %v4248
        %v4250 = vpop.f32.mrf.mxu0
        %v4251 = vadd.f32 %v4150, %v4250
        %4252 = vmatmul.bf16.gmra.mxu0 %v3358
        %v4253 = vpop.f32.mrf.mxu0
        %v4254 = vadd.f32 %v4153, %v4253
        %v4255 = vpop.f32.mrf.mxu0
        %v4256 = vadd.f32 %v4155, %v4255
        %4257 = vmatmul.bf16.gmra.mxu0 %v3361
        %v4258 = vpop.f32.mrf.mxu0
        %v4259 = vadd.f32 %v4158, %v4258
        %v4260 = vpop.f32.mrf.mxu0
        %v4261 = vadd.f32 %v4160, %v4260
        %4262 = vmatmul.bf16.gmra.mxu0 %v3364
        %v4263 = vpop.f32.mrf.mxu0
        %v4264 = vadd.f32 %v4163, %v4263
        %v4265 = vpop.f32.mrf.mxu0
        %v4266 = vadd.f32 %v4165, %v4265
        %4267 = vmatmul.bf16.gmra.mxu0 %v3367
        %v4268 = vpop.f32.mrf.mxu0
        %v4269 = vadd.f32 %v4168, %v4268
        %v4270 = vpop.f32.mrf.mxu0
        %v4271 = vadd.f32 %v4170, %v4270
        %4272 = vdwg.mxu0
        %s4273 = scalar_lea.vmem %s5, 112
        %v4274 = vld [vmem:[%s4273] sm:$0xf]
        %v4275 = vld [vmem:[%s4273 + $0x4] sm:$0xf]
        %v4276 = vld [vmem:[%s4273 + $0x8] sm:$0xf]
        %v4277 = vld [vmem:[%s4273 + $0xc] sm:$0xf]
        %v4282 = vunpack.c.l.b16 %v4274
        %v4283 = vunpack.c.l.b16 %v4275
        %v4284 = vunpack.c.l.b16 %v4276
        %v4285 = vunpack.c.l.b16 %v4277
        %v4286 = vpack.c.b16 %v4283, %v4282
        %v4287 = vpack.c.b16 %v4285, %v4284
        %4290 = vmatpush.bf16.msra.mxu0 0
        %4291 = vmatpush.bf16.msra.mxu0 0
        %4292 = vmatpush.bf16.msra.mxu0 0
        %4293 = vmatpush.bf16.msra.mxu0 0
        %4294 = vmatpush.bf16.msra.mxu0 0
        %4295 = vmatpush.bf16.msra.mxu0 0
        %4296 = vmatpush.bf16.msra.mxu0 %v4287
        %4297 = vmatpush.bf16.msra.mxu0 %v4286
        %4298 = vmatmul.bf16.gmra.mxu0 %v3700
        %v4299 = vpop.f32.mrf.mxu0
        %v4300 = vadd.f32 0.0, %v4299
        %v4301 = vpop.f32.mrf.mxu0
        %v4302 = vadd.f32 0.0, %v4301
        %4303 = vmatmul.bf16.gmra.mxu0 %v3703
        %v4304 = vpop.f32.mrf.mxu0
        %v4305 = vadd.f32 0.0, %v4304
        %v4306 = vpop.f32.mrf.mxu0
        %v4307 = vadd.f32 0.0, %v4306
        %4308 = vmatmul.bf16.gmra.mxu0 %v3706
        %v4309 = vpop.f32.mrf.mxu0
        %v4310 = vadd.f32 0.0, %v4309
        %v4311 = vpop.f32.mrf.mxu0
        %v4312 = vadd.f32 0.0, %v4311
        %4313 = vmatmul.bf16.gmra.mxu0 %v3709
        %v4314 = vpop.f32.mrf.mxu0
        %v4315 = vadd.f32 0.0, %v4314
        %v4316 = vpop.f32.mrf.mxu0
        %v4317 = vadd.f32 0.0, %v4316
        %4318 = vmatmul.bf16.gmra.mxu0 %v3712
        %v4319 = vpop.f32.mrf.mxu0
        %v4320 = vadd.f32 0.0, %v4319
        %v4321 = vpop.f32.mrf.mxu0
        %v4322 = vadd.f32 0.0, %v4321
        %4323 = vmatmul.bf16.gmra.mxu0 %v3715
        %v4324 = vpop.f32.mrf.mxu0
        %v4325 = vadd.f32 0.0, %v4324
        %v4326 = vpop.f32.mrf.mxu0
        %v4327 = vadd.f32 0.0, %v4326
        %4328 = vmatmul.bf16.gmra.mxu0 %v3718
        %v4329 = vpop.f32.mrf.mxu0
        %v4330 = vadd.f32 0.0, %v4329
        %v4331 = vpop.f32.mrf.mxu0
        %v4332 = vadd.f32 0.0, %v4331
        %4333 = vmatmul.bf16.gmra.mxu0 %v3721
        %v4334 = vpop.f32.mrf.mxu0
        %v4335 = vadd.f32 0.0, %v4334
        %v4336 = vpop.f32.mrf.mxu0
        %v4337 = vadd.f32 0.0, %v4336
        %4338 = vmatmul.bf16.gmra.mxu0 %v3724
        %v4339 = vpop.f32.mrf.mxu0
        %v4340 = vadd.f32 0.0, %v4339
        %v4341 = vpop.f32.mrf.mxu0
        %v4342 = vadd.f32 0.0, %v4341
        %4343 = vmatmul.bf16.gmra.mxu0 %v3727
        %v4344 = vpop.f32.mrf.mxu0
        %v4345 = vadd.f32 0.0, %v4344
        %v4346 = vpop.f32.mrf.mxu0
        %v4347 = vadd.f32 0.0, %v4346
        %4348 = vmatmul.bf16.gmra.mxu0 %v3730
        %v4349 = vpop.f32.mrf.mxu0
        %v4350 = vadd.f32 0.0, %v4349
        %v4351 = vpop.f32.mrf.mxu0
        %v4352 = vadd.f32 0.0, %v4351
        %4353 = vmatmul.bf16.gmra.mxu0 %v3733
        %v4354 = vpop.f32.mrf.mxu0
        %v4355 = vadd.f32 0.0, %v4354
        %v4356 = vpop.f32.mrf.mxu0
        %v4357 = vadd.f32 0.0, %v4356
        %4358 = vmatmul.bf16.gmra.mxu0 %v3736
        %v4359 = vpop.f32.mrf.mxu0
        %v4360 = vadd.f32 0.0, %v4359
        %v4361 = vpop.f32.mrf.mxu0
        %v4362 = vadd.f32 0.0, %v4361
        %4363 = vmatmul.bf16.gmra.mxu0 %v3739
        %v4364 = vpop.f32.mrf.mxu0
        %v4365 = vadd.f32 0.0, %v4364
        %v4366 = vpop.f32.mrf.mxu0
        %v4367 = vadd.f32 0.0, %v4366
        %4368 = vmatmul.bf16.gmra.mxu0 %v3742
        %v4369 = vpop.f32.mrf.mxu0
        %v4370 = vadd.f32 0.0, %v4369
        %v4371 = vpop.f32.mrf.mxu0
        %v4372 = vadd.f32 0.0, %v4371
        %4373 = vmatmul.bf16.gmra.mxu0 %v3745
        %v4374 = vpop.f32.mrf.mxu0
        %v4375 = vadd.f32 0.0, %v4374
        %v4376 = vpop.f32.mrf.mxu0
        %v4377 = vadd.f32 0.0, %v4376
        %4378 = vdwg.mxu0
        %v4379 = vadd.f32 %v4194, %v4300
        %v4380 = vadd.f32 %v4196, %v4302
        %v4381 = vadd.f32 %v4199, %v4305
        %v4382 = vadd.f32 %v4201, %v4307
        %v4383 = vadd.f32 %v4204, %v4310
        %v4384 = vadd.f32 %v4206, %v4312
        %v4385 = vadd.f32 %v4209, %v4315
        %v4386 = vadd.f32 %v4211, %v4317
        %v4387 = vadd.f32 %v4214, %v4320
        %v4388 = vadd.f32 %v4216, %v4322
        %v4389 = vadd.f32 %v4219, %v4325
        %v4390 = vadd.f32 %v4221, %v4327
        %v4391 = vadd.f32 %v4224, %v4330
        %v4392 = vadd.f32 %v4226, %v4332
        %v4393 = vadd.f32 %v4229, %v4335
        %v4394 = vadd.f32 %v4231, %v4337
        %v4395 = vadd.f32 %v4234, %v4340
        %v4396 = vadd.f32 %v4236, %v4342
        %v4397 = vadd.f32 %v4239, %v4345
        %v4398 = vadd.f32 %v4241, %v4347
        %v4399 = vadd.f32 %v4244, %v4350
        %v4400 = vadd.f32 %v4246, %v4352
        %v4401 = vadd.f32 %v4249, %v4355
        %v4402 = vadd.f32 %v4251, %v4357
        %v4403 = vadd.f32 %v4254, %v4360
        %v4404 = vadd.f32 %v4256, %v4362
        %v4405 = vadd.f32 %v4259, %v4365
        %v4406 = vadd.f32 %v4261, %v4367
        %v4407 = vadd.f32 %v4264, %v4370
        %v4408 = vadd.f32 %v4266, %v4372
        %v4409 = vadd.f32 %v4269, %v4375
        %v4410 = vadd.f32 %v4271, %v4377
        %v4411 = vadd.f32 %v4029, %v4379
        %v4412 = vadd.f32 %v4030, %v4380
        %v4413 = vadd.f32 %v4031, %v4381
        %v4414 = vadd.f32 %v4032, %v4382
        %v4415 = vadd.f32 %v4033, %v4383
        %v4416 = vadd.f32 %v4034, %v4384
        %v4417 = vadd.f32 %v4035, %v4385
        %v4418 = vadd.f32 %v4036, %v4386
        %v4419 = vadd.f32 %v4037, %v4387
        %v4420 = vadd.f32 %v4038, %v4388
        %v4421 = vadd.f32 %v4039, %v4389
        %v4422 = vadd.f32 %v4040, %v4390
        %v4423 = vadd.f32 %v4041, %v4391
        %v4424 = vadd.f32 %v4042, %v4392
        %v4425 = vadd.f32 %v4043, %v4393
        %v4426 = vadd.f32 %v4044, %v4394
        %v4427 = vadd.f32 %v4045, %v4395
        %v4428 = vadd.f32 %v4046, %v4396
        %v4429 = vadd.f32 %v4047, %v4397
        %v4430 = vadd.f32 %v4048, %v4398
        %v4431 = vadd.f32 %v4049, %v4399
        %v4432 = vadd.f32 %v4050, %v4400
        %v4433 = vadd.f32 %v4051, %v4401
        %v4434 = vadd.f32 %v4052, %v4402
        %v4435 = vadd.f32 %v4053, %v4403
        %v4436 = vadd.f32 %v4054, %v4404
        %v4437 = vadd.f32 %v4055, %v4405
        %v4438 = vadd.f32 %v4056, %v4406
        %v4439 = vadd.f32 %v4057, %v4407
        %v4440 = vadd.f32 %v4058, %v4408
        %v4441 = vadd.f32 %v4059, %v4409
        %v4442 = vadd.f32 %v4060, %v4410
        %s4443 = scalar_lea.vmem %s5, 32
        %v4444 = vld [vmem:[%s4443] sm:$0xf]
        %v4445 = vld [vmem:[%s4443 + $0x4] sm:$0xf]
        %v4446 = vld [vmem:[%s4443 + $0x8] sm:$0xf]
        %v4447 = vld [vmem:[%s4443 + $0xc] sm:$0xf]
        %s4448 = scalar_lea.vmem %s5, 80
        %v4449 = vld [vmem:[%s4448] sm:$0xf]
        %v4450 = vld [vmem:[%s4448 + $0x4] sm:$0xf]
        %v4451 = vld [vmem:[%s4448 + $0x8] sm:$0xf]
        %v4452 = vld [vmem:[%s4448 + $0xc] sm:$0xf]
        %v4457 = vunpack.c.l.b16 %v4449
        %v4458 = vunpack.c.l.b16 %v4450
        %v4459 = vunpack.c.l.b16 %v4451
        %v4460 = vunpack.c.l.b16 %v4452
        %v4461 = vpack.c.b16 %v4458, %v4457
        %v4462 = vpack.c.b16 %v4460, %v4459
        %4465 = vmatpush.bf16.msra.mxu0 0
        %4466 = vmatpush.bf16.msra.mxu0 0
        %4467 = vmatpush.bf16.msra.mxu0 0
        %4468 = vmatpush.bf16.msra.mxu0 0
        %4469 = vmatpush.bf16.msra.mxu0 0
        %4470 = vmatpush.bf16.msra.mxu0 0
        %4471 = vmatpush.bf16.msra.mxu0 %v4462
        %4472 = vmatpush.bf16.msra.mxu0 %v4461
        %4473 = vmatmul.bf16.gmra.mxu0 %v3325
        %v4474 = vpop.f32.mrf.mxu0
        %v4475 = vadd.f32 0.0, %v4474
        %v4476 = vpop.f32.mrf.mxu0
        %v4477 = vadd.f32 0.0, %v4476
        %4478 = vmatmul.bf16.gmra.mxu0 %v3328
        %v4479 = vpop.f32.mrf.mxu0
        %v4480 = vadd.f32 0.0, %v4479
        %v4481 = vpop.f32.mrf.mxu0
        %v4482 = vadd.f32 0.0, %v4481
        %4483 = vmatmul.bf16.gmra.mxu0 %v3331
        %v4484 = vpop.f32.mrf.mxu0
        %v4485 = vadd.f32 0.0, %v4484
        %v4486 = vpop.f32.mrf.mxu0
        %v4487 = vadd.f32 0.0, %v4486
        %4488 = vmatmul.bf16.gmra.mxu0 %v3334
        %v4489 = vpop.f32.mrf.mxu0
        %v4490 = vadd.f32 0.0, %v4489
        %v4491 = vpop.f32.mrf.mxu0
        %v4492 = vadd.f32 0.0, %v4491
        %4493 = vmatmul.bf16.gmra.mxu0 %v3337
        %v4494 = vpop.f32.mrf.mxu0
        %v4495 = vadd.f32 0.0, %v4494
        %v4496 = vpop.f32.mrf.mxu0
        %v4497 = vadd.f32 0.0, %v4496
        %4498 = vmatmul.bf16.gmra.mxu0 %v3340
        %v4499 = vpop.f32.mrf.mxu0
        %v4500 = vadd.f32 0.0, %v4499
        %v4501 = vpop.f32.mrf.mxu0
        %v4502 = vadd.f32 0.0, %v4501
        %4503 = vmatmul.bf16.gmra.mxu0 %v3343
        %v4504 = vpop.f32.mrf.mxu0
        %v4505 = vadd.f32 0.0, %v4504
        %v4506 = vpop.f32.mrf.mxu0
        %v4507 = vadd.f32 0.0, %v4506
        %4508 = vmatmul.bf16.gmra.mxu0 %v3346
        %v4509 = vpop.f32.mrf.mxu0
        %v4510 = vadd.f32 0.0, %v4509
        %v4511 = vpop.f32.mrf.mxu0
        %v4512 = vadd.f32 0.0, %v4511
        %4513 = vmatmul.bf16.gmra.mxu0 %v3349
        %v4514 = vpop.f32.mrf.mxu0
        %v4515 = vadd.f32 0.0, %v4514
        %v4516 = vpop.f32.mrf.mxu0
        %v4517 = vadd.f32 0.0, %v4516
        %4518 = vmatmul.bf16.gmra.mxu0 %v3352
        %v4519 = vpop.f32.mrf.mxu0
        %v4520 = vadd.f32 0.0, %v4519
        %v4521 = vpop.f32.mrf.mxu0
        %v4522 = vadd.f32 0.0, %v4521
        %4523 = vmatmul.bf16.gmra.mxu0 %v3355
        %v4524 = vpop.f32.mrf.mxu0
        %v4525 = vadd.f32 0.0, %v4524
        %v4526 = vpop.f32.mrf.mxu0
        %v4527 = vadd.f32 0.0, %v4526
        %4528 = vmatmul.bf16.gmra.mxu0 %v3358
        %v4529 = vpop.f32.mrf.mxu0
        %v4530 = vadd.f32 0.0, %v4529
        %v4531 = vpop.f32.mrf.mxu0
        %v4532 = vadd.f32 0.0, %v4531
        %4533 = vmatmul.bf16.gmra.mxu0 %v3361
        %v4534 = vpop.f32.mrf.mxu0
        %v4535 = vadd.f32 0.0, %v4534
        %v4536 = vpop.f32.mrf.mxu0
        %v4537 = vadd.f32 0.0, %v4536
        %4538 = vmatmul.bf16.gmra.mxu0 %v3364
        %v4539 = vpop.f32.mrf.mxu0
        %v4540 = vadd.f32 0.0, %v4539
        %v4541 = vpop.f32.mrf.mxu0
        %v4542 = vadd.f32 0.0, %v4541
        %4543 = vmatmul.bf16.gmra.mxu0 %v3367
        %v4544 = vpop.f32.mrf.mxu0
        %v4545 = vadd.f32 0.0, %v4544
        %v4546 = vpop.f32.mrf.mxu0
        %v4547 = vadd.f32 0.0, %v4546
        %4548 = vmatmul.bf16.gmra.mxu0 %v3370
        %v4549 = vpop.f32.mrf.mxu0
        %v4550 = vadd.f32 0.0, %v4549
        %v4551 = vpop.f32.mrf.mxu0
        %v4552 = vadd.f32 0.0, %v4551
        %4553 = vdwg.mxu0
        %v4558 = vunpack.c.l.b16 %v4444
        %v4559 = vunpack.c.l.b16 %v4445
        %v4560 = vunpack.c.l.b16 %v4446
        %v4561 = vunpack.c.l.b16 %v4447
        %v4562 = vpack.c.b16 %v4559, %v4558
        %v4563 = vpack.c.b16 %v4561, %v4560
        %4566 = vmatpush.bf16.msra.mxu0 0
        %4567 = vmatpush.bf16.msra.mxu0 0
        %4568 = vmatpush.bf16.msra.mxu0 0
        %4569 = vmatpush.bf16.msra.mxu0 0
        %4570 = vmatpush.bf16.msra.mxu0 0
        %4571 = vmatpush.bf16.msra.mxu0 0
        %4572 = vmatpush.bf16.msra.mxu0 %v4563
        %4573 = vmatpush.bf16.msra.mxu0 %v4562
        %4574 = vmatmul.bf16.gmra.mxu0 %v3479
        %v4575 = vpop.f32.mrf.mxu0
        %v4576 = vadd.f32 %v4475, %v4575
        %v4577 = vpop.f32.mrf.mxu0
        %v4578 = vadd.f32 %v4477, %v4577
        %4579 = vmatmul.bf16.gmra.mxu0 %v3325
        %v4580 = vpop.f32.mrf.mxu0
        %v4581 = vadd.f32 %v4480, %v4580
        %v4582 = vpop.f32.mrf.mxu0
        %v4583 = vadd.f32 %v4482, %v4582
        %4584 = vmatmul.bf16.gmra.mxu0 %v3328
        %v4585 = vpop.f32.mrf.mxu0
        %v4586 = vadd.f32 %v4485, %v4585
        %v4587 = vpop.f32.mrf.mxu0
        %v4588 = vadd.f32 %v4487, %v4587
        %4589 = vmatmul.bf16.gmra.mxu0 %v3331
        %v4590 = vpop.f32.mrf.mxu0
        %v4591 = vadd.f32 %v4490, %v4590
        %v4592 = vpop.f32.mrf.mxu0
        %v4593 = vadd.f32 %v4492, %v4592
        %4594 = vmatmul.bf16.gmra.mxu0 %v3334
        %v4595 = vpop.f32.mrf.mxu0
        %v4596 = vadd.f32 %v4495, %v4595
        %v4597 = vpop.f32.mrf.mxu0
        %v4598 = vadd.f32 %v4497, %v4597
        %4599 = vmatmul.bf16.gmra.mxu0 %v3337
        %v4600 = vpop.f32.mrf.mxu0
        %v4601 = vadd.f32 %v4500, %v4600
        %v4602 = vpop.f32.mrf.mxu0
        %v4603 = vadd.f32 %v4502, %v4602
        %4604 = vmatmul.bf16.gmra.mxu0 %v3340
        %v4605 = vpop.f32.mrf.mxu0
        %v4606 = vadd.f32 %v4505, %v4605
        %v4607 = vpop.f32.mrf.mxu0
        %v4608 = vadd.f32 %v4507, %v4607
        %4609 = vmatmul.bf16.gmra.mxu0 %v3343
        %v4610 = vpop.f32.mrf.mxu0
        %v4611 = vadd.f32 %v4510, %v4610
        %v4612 = vpop.f32.mrf.mxu0
        %v4613 = vadd.f32 %v4512, %v4612
        %4614 = vmatmul.bf16.gmra.mxu0 %v3346
        %v4615 = vpop.f32.mrf.mxu0
        %v4616 = vadd.f32 %v4515, %v4615
        %v4617 = vpop.f32.mrf.mxu0
        %v4618 = vadd.f32 %v4517, %v4617
        %4619 = vmatmul.bf16.gmra.mxu0 %v3349
        %v4620 = vpop.f32.mrf.mxu0
        %v4621 = vadd.f32 %v4520, %v4620
        %v4622 = vpop.f32.mrf.mxu0
        %v4623 = vadd.f32 %v4522, %v4622
        %4624 = vmatmul.bf16.gmra.mxu0 %v3352
        %v4625 = vpop.f32.mrf.mxu0
        %v4626 = vadd.f32 %v4525, %v4625
        %v4627 = vpop.f32.mrf.mxu0
        %v4628 = vadd.f32 %v4527, %v4627
        %4629 = vmatmul.bf16.gmra.mxu0 %v3355
        %v4630 = vpop.f32.mrf.mxu0
        %v4631 = vadd.f32 %v4530, %v4630
        %v4632 = vpop.f32.mrf.mxu0
        %v4633 = vadd.f32 %v4532, %v4632
        %4634 = vmatmul.bf16.gmra.mxu0 %v3358
        %v4635 = vpop.f32.mrf.mxu0
        %v4636 = vadd.f32 %v4535, %v4635
        %v4637 = vpop.f32.mrf.mxu0
        %v4638 = vadd.f32 %v4537, %v4637
        %4639 = vmatmul.bf16.gmra.mxu0 %v3361
        %v4640 = vpop.f32.mrf.mxu0
        %v4641 = vadd.f32 %v4540, %v4640
        %v4642 = vpop.f32.mrf.mxu0
        %v4643 = vadd.f32 %v4542, %v4642
        %4644 = vmatmul.bf16.gmra.mxu0 %v3364
        %v4645 = vpop.f32.mrf.mxu0
        %v4646 = vadd.f32 %v4545, %v4645
        %v4647 = vpop.f32.mrf.mxu0
        %v4648 = vadd.f32 %v4547, %v4647
        %4649 = vmatmul.bf16.gmra.mxu0 %v3367
        %v4650 = vpop.f32.mrf.mxu0
        %v4651 = vadd.f32 %v4550, %v4650
        %v4652 = vpop.f32.mrf.mxu0
        %v4653 = vadd.f32 %v4552, %v4652
        %4654 = vdwg.mxu0
        %s4655 = scalar_lea.vmem %s5, 128
        %v4656 = vld [vmem:[%s4655] sm:$0xf]
        %v4657 = vld [vmem:[%s4655 + $0x4] sm:$0xf]
        %v4658 = vld [vmem:[%s4655 + $0x8] sm:$0xf]
        %v4659 = vld [vmem:[%s4655 + $0xc] sm:$0xf]
        %v4664 = vunpack.c.l.b16 %v4656
        %v4665 = vunpack.c.l.b16 %v4657
        %v4666 = vunpack.c.l.b16 %v4658
        %v4667 = vunpack.c.l.b16 %v4659
        %v4668 = vpack.c.b16 %v4665, %v4664
        %v4669 = vpack.c.b16 %v4667, %v4666
        %4672 = vmatpush.bf16.msra.mxu0 0
        %4673 = vmatpush.bf16.msra.mxu0 0
        %4674 = vmatpush.bf16.msra.mxu0 0
        %4675 = vmatpush.bf16.msra.mxu0 0
        %4676 = vmatpush.bf16.msra.mxu0 0
        %4677 = vmatpush.bf16.msra.mxu0 0
        %4678 = vmatpush.bf16.msra.mxu0 %v4669
        %4679 = vmatpush.bf16.msra.mxu0 %v4668
        %4680 = vmatmul.bf16.gmra.mxu0 %v3700
        %v4681 = vpop.f32.mrf.mxu0
        %v4682 = vadd.f32 0.0, %v4681
        %v4683 = vpop.f32.mrf.mxu0
        %v4684 = vadd.f32 0.0, %v4683
        %4685 = vmatmul.bf16.gmra.mxu0 %v3703
        %v4686 = vpop.f32.mrf.mxu0
        %v4687 = vadd.f32 0.0, %v4686
        %v4688 = vpop.f32.mrf.mxu0
        %v4689 = vadd.f32 0.0, %v4688
        %4690 = vmatmul.bf16.gmra.mxu0 %v3706
        %v4691 = vpop.f32.mrf.mxu0
        %v4692 = vadd.f32 0.0, %v4691
        %v4693 = vpop.f32.mrf.mxu0
        %v4694 = vadd.f32 0.0, %v4693
        %4695 = vmatmul.bf16.gmra.mxu0 %v3709
        %v4696 = vpop.f32.mrf.mxu0
        %v4697 = vadd.f32 0.0, %v4696
        %v4698 = vpop.f32.mrf.mxu0
        %v4699 = vadd.f32 0.0, %v4698
        %4700 = vmatmul.bf16.gmra.mxu0 %v3712
        %v4701 = vpop.f32.mrf.mxu0
        %v4702 = vadd.f32 0.0, %v4701
        %v4703 = vpop.f32.mrf.mxu0
        %v4704 = vadd.f32 0.0, %v4703
        %4705 = vmatmul.bf16.gmra.mxu0 %v3715
        %v4706 = vpop.f32.mrf.mxu0
        %v4707 = vadd.f32 0.0, %v4706
        %v4708 = vpop.f32.mrf.mxu0
        %v4709 = vadd.f32 0.0, %v4708
        %4710 = vmatmul.bf16.gmra.mxu0 %v3718
        %v4711 = vpop.f32.mrf.mxu0
        %v4712 = vadd.f32 0.0, %v4711
        %v4713 = vpop.f32.mrf.mxu0
        %v4714 = vadd.f32 0.0, %v4713
        %4715 = vmatmul.bf16.gmra.mxu0 %v3721
        %v4716 = vpop.f32.mrf.mxu0
        %v4717 = vadd.f32 0.0, %v4716
        %v4718 = vpop.f32.mrf.mxu0
        %v4719 = vadd.f32 0.0, %v4718
        %4720 = vmatmul.bf16.gmra.mxu0 %v3724
        %v4721 = vpop.f32.mrf.mxu0
        %v4722 = vadd.f32 0.0, %v4721
        %v4723 = vpop.f32.mrf.mxu0
        %v4724 = vadd.f32 0.0, %v4723
        %4725 = vmatmul.bf16.gmra.mxu0 %v3727
        %v4726 = vpop.f32.mrf.mxu0
        %v4727 = vadd.f32 0.0, %v4726
        %v4728 = vpop.f32.mrf.mxu0
        %v4729 = vadd.f32 0.0, %v4728
        %4730 = vmatmul.bf16.gmra.mxu0 %v3730
        %v4731 = vpop.f32.mrf.mxu0
        %v4732 = vadd.f32 0.0, %v4731
        %v4733 = vpop.f32.mrf.mxu0
        %v4734 = vadd.f32 0.0, %v4733
        %4735 = vmatmul.bf16.gmra.mxu0 %v3733
        %v4736 = vpop.f32.mrf.mxu0
        %v4737 = vadd.f32 0.0, %v4736
        %v4738 = vpop.f32.mrf.mxu0
        %v4739 = vadd.f32 0.0, %v4738
        %4740 = vmatmul.bf16.gmra.mxu0 %v3736
        %v4741 = vpop.f32.mrf.mxu0
        %v4742 = vadd.f32 0.0, %v4741
        %v4743 = vpop.f32.mrf.mxu0
        %v4744 = vadd.f32 0.0, %v4743
        %4745 = vmatmul.bf16.gmra.mxu0 %v3739
        %v4746 = vpop.f32.mrf.mxu0
        %v4747 = vadd.f32 0.0, %v4746
        %v4748 = vpop.f32.mrf.mxu0
        %v4749 = vadd.f32 0.0, %v4748
        %4750 = vmatmul.bf16.gmra.mxu0 %v3742
        %v4751 = vpop.f32.mrf.mxu0
        %v4752 = vadd.f32 0.0, %v4751
        %v4753 = vpop.f32.mrf.mxu0
        %v4754 = vadd.f32 0.0, %v4753
        %4755 = vmatmul.bf16.gmra.mxu0 %v3745
        %v4756 = vpop.f32.mrf.mxu0
        %v4757 = vadd.f32 0.0, %v4756
        %v4758 = vpop.f32.mrf.mxu0
        %v4759 = vadd.f32 0.0, %v4758
        %4760 = vdwg.mxu0
        %v4761 = vadd.f32 %v4576, %v4682
        %v4762 = vadd.f32 %v4578, %v4684
        %v4763 = vadd.f32 %v4581, %v4687
        %v4764 = vadd.f32 %v4583, %v4689
        %v4765 = vadd.f32 %v4586, %v4692
        %v4766 = vadd.f32 %v4588, %v4694
        %v4767 = vadd.f32 %v4591, %v4697
        %v4768 = vadd.f32 %v4593, %v4699
        %v4769 = vadd.f32 %v4596, %v4702
        %v4770 = vadd.f32 %v4598, %v4704
        %v4771 = vadd.f32 %v4601, %v4707
        %v4772 = vadd.f32 %v4603, %v4709
        %v4773 = vadd.f32 %v4606, %v4712
        %v4774 = vadd.f32 %v4608, %v4714
        %v4775 = vadd.f32 %v4611, %v4717
        %v4776 = vadd.f32 %v4613, %v4719
        %v4777 = vadd.f32 %v4616, %v4722
        %v4778 = vadd.f32 %v4618, %v4724
        %v4779 = vadd.f32 %v4621, %v4727
        %v4780 = vadd.f32 %v4623, %v4729
        %v4781 = vadd.f32 %v4626, %v4732
        %v4782 = vadd.f32 %v4628, %v4734
        %v4783 = vadd.f32 %v4631, %v4737
        %v4784 = vadd.f32 %v4633, %v4739
        %v4785 = vadd.f32 %v4636, %v4742
        %v4786 = vadd.f32 %v4638, %v4744
        %v4787 = vadd.f32 %v4641, %v4747
        %v4788 = vadd.f32 %v4643, %v4749
        %v4789 = vadd.f32 %v4646, %v4752
        %v4790 = vadd.f32 %v4648, %v4754
        %v4791 = vadd.f32 %v4651, %v4757
        %v4792 = vadd.f32 %v4653, %v4759
        %v4793 = vrot.slane %v4761, 1
        %v4794 = vrot.slane %v4762, 1
        %v4795 = vrot.slane %v4763, 1
        %v4796 = vrot.slane %v4764, 1
        %v4797 = vrot.slane %v4765, 1
        %v4798 = vrot.slane %v4766, 1
        %v4799 = vrot.slane %v4767, 1
        %v4800 = vrot.slane %v4768, 1
        %v4801 = vrot.slane %v4769, 1
        %v4802 = vrot.slane %v4770, 1
        %v4803 = vrot.slane %v4771, 1
        %v4804 = vrot.slane %v4772, 1
        %v4805 = vrot.slane %v4773, 1
        %v4806 = vrot.slane %v4774, 1
        %v4807 = vrot.slane %v4775, 1
        %v4808 = vrot.slane %v4776, 1
        %v4809 = vrot.slane %v4777, 1
        %v4810 = vrot.slane %v4778, 1
        %v4811 = vrot.slane %v4779, 1
        %v4812 = vrot.slane %v4780, 1
        %v4813 = vrot.slane %v4781, 1
        %v4814 = vrot.slane %v4782, 1
        %v4815 = vrot.slane %v4783, 1
        %v4816 = vrot.slane %v4784, 1
        %v4817 = vrot.slane %v4785, 1
        %v4818 = vrot.slane %v4786, 1
        %v4819 = vrot.slane %v4787, 1
        %v4820 = vrot.slane %v4788, 1
        %v4821 = vrot.slane %v4789, 1
        %v4822 = vrot.slane %v4790, 1
        %v4823 = vrot.slane %v4791, 1
        %v4824 = vrot.slane %v4792, 1
        %vm4825 = vcmp.lt.s32.totalorder %v350, 7
        %v4826 = vsel %vm4825, %v4823, %v4824
        %v4827 = vsel %vm4825, %v4822, %v4823
        %v4828 = vsel %vm4825, %v4821, %v4822
        %v4829 = vsel %vm4825, %v4820, %v4821
        %v4830 = vsel %vm4825, %v4819, %v4820
        %v4831 = vsel %vm4825, %v4818, %v4819
        %v4832 = vsel %vm4825, %v4817, %v4818
        %v4833 = vsel %vm4825, %v4816, %v4817
        %v4834 = vsel %vm4825, %v4815, %v4816
        %v4835 = vsel %vm4825, %v4814, %v4815
        %v4836 = vsel %vm4825, %v4813, %v4814
        %v4837 = vsel %vm4825, %v4812, %v4813
        %v4838 = vsel %vm4825, %v4811, %v4812
        %v4839 = vsel %vm4825, %v4810, %v4811
        %v4840 = vsel %vm4825, %v4809, %v4810
        %v4841 = vsel %vm4825, %v4808, %v4809
        %v4842 = vsel %vm4825, %v4807, %v4808
        %v4843 = vsel %vm4825, %v4806, %v4807
        %v4844 = vsel %vm4825, %v4805, %v4806
        %v4845 = vsel %vm4825, %v4804, %v4805
        %v4846 = vsel %vm4825, %v4803, %v4804
        %v4847 = vsel %vm4825, %v4802, %v4803
        %v4848 = vsel %vm4825, %v4801, %v4802
        %v4849 = vsel %vm4825, %v4800, %v4801
        %v4850 = vsel %vm4825, %v4799, %v4800
        %v4851 = vsel %vm4825, %v4798, %v4799
        %v4852 = vsel %vm4825, %v4797, %v4798
        %v4853 = vsel %vm4825, %v4796, %v4797
        %v4854 = vsel %vm4825, %v4795, %v4796
        %v4855 = vsel %vm4825, %v4794, %v4795
        %v4856 = vsel %vm4825, %v4793, %v4794
        %v4857 = vsel %vm4825, %v4824, %v4793
        %v4858 = vsel %vm798, 1, 0
        %v4859 = vsel %vm799, 1, 0
        %v4860 = vsel %vm800, 1, 0
        %v4861 = vsel %vm801, 1, 0
        %v4862 = vsel %vm802, 1, 0
        %v4863 = vsel %vm803, 1, 0
        %v4864 = vsel %vm804, 1, 0
        %v4865 = vsel %vm805, 1, 0
        %v4866 = vsel %vm806, 1, 0
        %v4867 = vsel %vm807, 1, 0
        %v4868 = vsel %vm808, 1, 0
        %v4869 = vsel %vm809, 1, 0
        %v4870 = vsel %vm810, 1, 0
        %v4871 = vsel %vm811, 1, 0
        %v4872 = vsel %vm812, 1, 0
        %v4873 = vsel %vm813, 1, 0
        %v4874 = vsel %vm814, 1, 0
        %v4875 = vsel %vm815, 1, 0
        %v4876 = vsel %vm816, 1, 0
        %v4877 = vsel %vm817, 1, 0
        %v4878 = vsel %vm818, 1, 0
        %v4879 = vsel %vm819, 1, 0
        %v4880 = vsel %vm820, 1, 0
        %v4881 = vsel %vm821, 1, 0
        %v4882 = vsel %vm822, 1, 0
        %v4883 = vsel %vm823, 1, 0
        %v4884 = vsel %vm824, 1, 0
        %v4885 = vsel %vm825, 1, 0
        %v4886 = vsel %vm826, 1, 0
        %v4887 = vsel %vm827, 1, 0
        %v4888 = vsel %vm828, 1, 0
        %v4889 = vsel %vm829, 1, 0
        %vm4890 = vcmp.eq.s32.totalorder %v4858, 1
        %vm4891 = vcmp.eq.s32.totalorder %v4859, 1
        %vm4892 = vcmp.eq.s32.totalorder %v4860, 1
        %vm4893 = vcmp.eq.s32.totalorder %v4861, 1
        %vm4894 = vcmp.eq.s32.totalorder %v4862, 1
        %vm4895 = vcmp.eq.s32.totalorder %v4863, 1
        %vm4896 = vcmp.eq.s32.totalorder %v4864, 1
        %vm4897 = vcmp.eq.s32.totalorder %v4865, 1
        %vm4898 = vcmp.eq.s32.totalorder %v4866, 1
        %vm4899 = vcmp.eq.s32.totalorder %v4867, 1
        %vm4900 = vcmp.eq.s32.totalorder %v4868, 1
        %vm4901 = vcmp.eq.s32.totalorder %v4869, 1
        %vm4902 = vcmp.eq.s32.totalorder %v4870, 1
        %vm4903 = vcmp.eq.s32.totalorder %v4871, 1
        %vm4904 = vcmp.eq.s32.totalorder %v4872, 1
        %vm4905 = vcmp.eq.s32.totalorder %v4873, 1
        %vm4906 = vcmp.eq.s32.totalorder %v4874, 1
        %vm4907 = vcmp.eq.s32.totalorder %v4875, 1
        %vm4908 = vcmp.eq.s32.totalorder %v4876, 1
        %vm4909 = vcmp.eq.s32.totalorder %v4877, 1
        %vm4910 = vcmp.eq.s32.totalorder %v4878, 1
        %vm4911 = vcmp.eq.s32.totalorder %v4879, 1
        %vm4912 = vcmp.eq.s32.totalorder %v4880, 1
        %vm4913 = vcmp.eq.s32.totalorder %v4881, 1
        %vm4914 = vcmp.eq.s32.totalorder %v4882, 1
        %vm4915 = vcmp.eq.s32.totalorder %v4883, 1
        %vm4916 = vcmp.eq.s32.totalorder %v4884, 1
        %vm4917 = vcmp.eq.s32.totalorder %v4885, 1
        %vm4918 = vcmp.eq.s32.totalorder %v4886, 1
        %vm4919 = vcmp.eq.s32.totalorder %v4887, 1
        %vm4920 = vcmp.eq.s32.totalorder %v4888, 1
        %vm4921 = vcmp.eq.s32.totalorder %v4889, 1
        %v4922 = vsel %vm4890, %v4856, 0.0
        %v4923 = vsel %vm4891, %v4855, 0.0
        %v4924 = vsel %vm4892, %v4854, 0.0
        %v4925 = vsel %vm4893, %v4853, 0.0
        %v4926 = vsel %vm4894, %v4852, 0.0
        %v4927 = vsel %vm4895, %v4851, 0.0
        %v4928 = vsel %vm4896, %v4850, 0.0
        %v4929 = vsel %vm4897, %v4849, 0.0
        %v4930 = vsel %vm4898, %v4848, 0.0
        %v4931 = vsel %vm4899, %v4847, 0.0
        %v4932 = vsel %vm4900, %v4846, 0.0
        %v4933 = vsel %vm4901, %v4845, 0.0
        %v4934 = vsel %vm4902, %v4844, 0.0
        %v4935 = vsel %vm4903, %v4843, 0.0
        %v4936 = vsel %vm4904, %v4842, 0.0
        %v4937 = vsel %vm4905, %v4841, 0.0
        %v4938 = vsel %vm4906, %v4840, 0.0
        %v4939 = vsel %vm4907, %v4839, 0.0
        %v4940 = vsel %vm4908, %v4838, 0.0
        %v4941 = vsel %vm4909, %v4837, 0.0
        %v4942 = vsel %vm4910, %v4836, 0.0
        %v4943 = vsel %vm4911, %v4835, 0.0
        %v4944 = vsel %vm4912, %v4834, 0.0
        %v4945 = vsel %vm4913, %v4833, 0.0
        %v4946 = vsel %vm4914, %v4832, 0.0
        %v4947 = vsel %vm4915, %v4831, 0.0
        %v4948 = vsel %vm4916, %v4830, 0.0
        %v4949 = vsel %vm4917, %v4829, 0.0
        %v4950 = vsel %vm4918, %v4828, 0.0
        %v4951 = vsel %vm4919, %v4827, 0.0
        %v4952 = vsel %vm4920, %v4826, 0.0
        %v4953 = vsel %vm4921, %v4857, 0.0
        %v4954 = vadd.f32 %v4411, %v4922
        %v4955 = vadd.f32 %v4412, %v4923
        %v4956 = vadd.f32 %v4413, %v4924
        %v4957 = vadd.f32 %v4414, %v4925
        %v4958 = vadd.f32 %v4415, %v4926
        %v4959 = vadd.f32 %v4416, %v4927
        %v4960 = vadd.f32 %v4417, %v4928
        %v4961 = vadd.f32 %v4418, %v4929
        %v4962 = vadd.f32 %v4419, %v4930
        %v4963 = vadd.f32 %v4420, %v4931
        %v4964 = vadd.f32 %v4421, %v4932
        %v4965 = vadd.f32 %v4422, %v4933
        %v4966 = vadd.f32 %v4423, %v4934
        %v4967 = vadd.f32 %v4424, %v4935
        %v4968 = vadd.f32 %v4425, %v4936
        %v4969 = vadd.f32 %v4426, %v4937
        %v4970 = vadd.f32 %v4427, %v4938
        %v4971 = vadd.f32 %v4428, %v4939
        %v4972 = vadd.f32 %v4429, %v4940
        %v4973 = vadd.f32 %v4430, %v4941
        %v4974 = vadd.f32 %v4431, %v4942
        %v4975 = vadd.f32 %v4432, %v4943
        %v4976 = vadd.f32 %v4433, %v4944
        %v4977 = vadd.f32 %v4434, %v4945
        %v4978 = vadd.f32 %v4435, %v4946
        %v4979 = vadd.f32 %v4436, %v4947
        %v4980 = vadd.f32 %v4437, %v4948
        %v4981 = vadd.f32 %v4438, %v4949
        %v4982 = vadd.f32 %v4439, %v4950
        %v4983 = vadd.f32 %v4440, %v4951
        %v4984 = vadd.f32 %v4441, %v4952
        %v4985 = vadd.f32 %v4442, %v4953
        %v4986 = vld [vmem:[%s6] sm:$0x1]
        %v4988 = vperm.slane %v4986, 0
        %v4990 = vadd.f32 %v4954, %v4988
        %v4991 = vadd.f32 %v4955, %v4988
        %v4992 = vadd.f32 %v4956, %v4988
        %v4993 = vadd.f32 %v4957, %v4988
        %v4994 = vadd.f32 %v4958, %v4988
        %v4995 = vadd.f32 %v4959, %v4988
        %v4996 = vadd.f32 %v4960, %v4988
        %v4997 = vadd.f32 %v4961, %v4988
        %v4998 = vadd.f32 %v4962, %v4988
        %v4999 = vadd.f32 %v4963, %v4988
        %v5000 = vadd.f32 %v4964, %v4988
        %v5001 = vadd.f32 %v4965, %v4988
        %v5002 = vadd.f32 %v4966, %v4988
        %v5003 = vadd.f32 %v4967, %v4988
        %v5004 = vadd.f32 %v4968, %v4988
        %v5005 = vadd.f32 %v4969, %v4988
        %v5006 = vadd.f32 %v4970, %v4988
        %v5007 = vadd.f32 %v4971, %v4988
        %v5008 = vadd.f32 %v4972, %v4988
        %v5009 = vadd.f32 %v4973, %v4988
        %v5010 = vadd.f32 %v4974, %v4988
        %v5011 = vadd.f32 %v4975, %v4988
        %v5012 = vadd.f32 %v4976, %v4988
        %v5013 = vadd.f32 %v4977, %v4988
        %v5014 = vadd.f32 %v4978, %v4988
        %v5015 = vadd.f32 %v4979, %v4988
        %v5016 = vadd.f32 %v4980, %v4988
        %v5017 = vadd.f32 %v4981, %v4988
        %v5018 = vadd.f32 %v4982, %v4988
        %v5019 = vadd.f32 %v4983, %v4988
        %v5020 = vadd.f32 %v4984, %v4988
        %v5021 = vadd.f32 %v4985, %v4988
        %5022 = vst [vmem:[%s342] sm:$0xff] %v4990
        %5023 = vst [vmem:[%s342 + $0x8] sm:$0xff] %v4991
        %5024 = vst [vmem:[%s342 + $0x10] sm:$0xff] %v4992
        %5025 = vst [vmem:[%s342 + $0x18] sm:$0xff] %v4993
        %5026 = vst [vmem:[%s342 + $0x20] sm:$0xff] %v4994
        %5027 = vst [vmem:[%s342 + $0x28] sm:$0xff] %v4995
        %5028 = vst [vmem:[%s342 + $0x30] sm:$0xff] %v4996
        %5029 = vst [vmem:[%s342 + $0x38] sm:$0xff] %v4997
        %5030 = vst [vmem:[%s342 + $0x40] sm:$0xff] %v4998
        %5031 = vst [vmem:[%s342 + $0x48] sm:$0xff] %v4999
        %5032 = vst [vmem:[%s342 + $0x50] sm:$0xff] %v5000
        %5033 = vst [vmem:[%s342 + $0x58] sm:$0xff] %v5001
        %5034 = vst [vmem:[%s342 + $0x60] sm:$0xff] %v5002
        %5035 = vst [vmem:[%s342 + $0x68] sm:$0xff] %v5003
        %5036 = vst [vmem:[%s342 + $0x70] sm:$0xff] %v5004
        %5037 = vst [vmem:[%s342 + $0x78] sm:$0xff] %v5005
        %5038 = vst [vmem:[%s342 + $0x80] sm:$0xff] %v5006
        %5039 = vst [vmem:[%s342 + $0x88] sm:$0xff] %v5007
        %5040 = vst [vmem:[%s342 + $0x90] sm:$0xff] %v5008
        %5041 = vst [vmem:[%s342 + $0x98] sm:$0xff] %v5009
        %5042 = vst [vmem:[%s342 + $0xa0] sm:$0xff] %v5010
        %5043 = vst [vmem:[%s342 + $0xa8] sm:$0xff] %v5011
        %5044 = vst [vmem:[%s342 + $0xb0] sm:$0xff] %v5012
        %5045 = vst [vmem:[%s342 + $0xb8] sm:$0xff] %v5013
        %5046 = vst [vmem:[%s342 + $0xc0] sm:$0xff] %v5014
        %5047 = vst [vmem:[%s342 + $0xc8] sm:$0xff] %v5015
        %5048 = vst [vmem:[%s342 + $0xd0] sm:$0xff] %v5016
        %5049 = vst [vmem:[%s342 + $0xd8] sm:$0xff] %v5017
        %5050 = vst [vmem:[%s342 + $0xe0] sm:$0xff] %v5018
        %5051 = vst [vmem:[%s342 + $0xe8] sm:$0xff] %v5019
        %5052 = vst [vmem:[%s342 + $0xf0] sm:$0xff] %v5020
        %5053 = vst [vmem:[%s342 + $0xf8] sm:$0xff] %v5021
        %s5054 = sand.u32 %s226, 1
        %s5055 = scalar_lea.sflag [#allocation5], %s5054
        %s5056 = sand.u32 %s226, 1
        %s5057 = smul.addr %s5056, 256
        %s5058 = scalar_lea.vmem [#allocation6], %s5057
        // Predicated region
        $region68: #{tpu_custom_call.1} parent=55 // pred_check
          %p5059 = pneg %p236
        $region69: #{tpu_custom_call.1} parent=55 // pred_check_branch
          %5061 = sbr.rel (%p5059) target = $region71
        $region70: #{tpu_custom_call.1} parent=55 // pred_region
          %5063 = vsyncadd %s5055, 0
          %s5064 = smul.addr %s24, 32
          %s5065 = smul.addr %s5064, 8
          %s5066 = scalar_lea.hbm %s9, %s5065
          %s5067 = sshll.u32 %s5058, 4
          %s5068 = int_to_ptr.vmem [resolvable:$true] %s5067
          %s5069 = sshll.u32 %s5066, 4
          %s5070 = int_to_ptr.hbm [resolvable:$true] %s5069
          %5075 = dma.vmem_to_hbm [thread:$0]  %s5068, 4096, %s5070, %s5055, 128, 128, 8
        $region71: #{tpu_custom_call.1} parent=55 // pred_fallthru
          _
      $region56: #{tpu_custom_call.1} parent=5 // pred_fallthru
        _
      %p5076 = scmp.le.s32.totalorder 2, %s19
      // Predicated region
      $region72: #{tpu_custom_call.1} parent=5 // pred_check
        %p5077 = pneg %p5076
      $region73: #{tpu_custom_call.1} parent=5 // pred_check_branch
        %5079 = sbr.rel (%p5077) target = $region75
      $region74: #{tpu_custom_call.1} parent=5 // pred_region
        %s5080 = ssub.s32 %s19, 2
        // Predicated region
        $region76: #{tpu_custom_call.1} parent=74 // pred_check
          %p5081 = pneg %p242
        $region77: #{tpu_custom_call.1} parent=74 // pred_check_branch
          %5083 = sbr.rel (%p5081) target = $region79
        $region78: #{tpu_custom_call.1} parent=74 // pred_region
          %s5084 = sand.u32 %s227, 1
          %s5085 = scalar_lea.sflag [#allocation5], %s5084
          %s5086 = sand.u32 %s227, 1
          %s5087 = smul.addr %s5086, 256
          %s5088 = scalar_lea.vmem [#allocation6], %s5087
          %5090 = dma.done %s5085, 4096
        $region79: #{tpu_custom_call.1} parent=74 // pred_fallthru
          _
      $region75: #{tpu_custom_call.1} parent=5 // pred_fallthru
        _
    $region6: #{tpu_custom_call.1} parent=1 // loop_footer
      %s23 = sadd.s32 1, %s19
    $region7: #{tpu_custom_call.1} parent=1 // loop_footer_branch
      %18 = sbr.rel target = $region3
    $region8: #{tpu_custom_call.1} parent=1 // loop_exit
      _
    %5091 = vsyncpa [#allocation4], 1
    %s5092 = scalar_lea.sflag [#allocation4], 1
    %5093 = vsyncpa %s5092, 1
    %5094 = vsyncpa [#allocation5], 1
    %s5095 = scalar_lea.sflag [#allocation5], 1
    %5096 = vsyncpa %s5095, 1

</llo_original>
